<compile_context>
chip_gen: v6e
topology: v6e:2x2x1
jax: 0.10.0
libtpu: 0.0.40
codegen_flags: <defaults>
</compile_context>

<pallas_src>
import functools

import jax
import jax.numpy as jnp
from jax import lax
from jax.experimental import pallas as pl
from jax.experimental.pallas import tpu as pltpu

K = 4  # every conv in the module is 4x4


def _act(name, v):
    if name == "none":
        return v
    if name == "relu":
        return jnp.maximum(v, 0.0)
    if name == "lrelu":                       # LeakyReLU(0.2)
        return jnp.where(v >= 0, v, 0.2 * v)
    if name == "tanh":
        return jnp.tanh(v)
    raise ValueError(name)


def _parity_tap(k):
    """Image index r = 2*i + k - 1 (stride 2, pad 1). Return (parity, padded
    block offset) so that r = 2*(block-1) + parity in the padded scratch."""
    p = (k + 1) % 2
    b = (k - 1 - p) // 2 + 1      # in {0, 1, 1, 2}; +1 for one pad block
    return p, b


def _vmem_limit(bytes_est):
    """Scoped-VMEM limit with headroom; capped at v7x's 64 MiB physical VMEM."""
    return int(min(64 * 1024 * 1024, max(16 * 1024 * 1024, 2 * bytes_est)))


# ----------------------------------------------------------------------------
# Down conv: Conv2d(Cx+Zd -> Cout, k=4, s=2, p=1) with fused pre-activation,
# fused z broadcast/concat and in-VMEM padding.  One MXU matmul per image.
# ----------------------------------------------------------------------------
def _down_kernel(x_ref, z_ref, w_ref, b_ref, o_ref, xp_ref, slab_ref, *,
                 Ho, Wo, Cx, Zd, pre):
    Cin = Cx + Zd
    n = pl.program_id(0)

    # Zero ONLY the 1-pixel border of the padded scratch: the interior is fully
    # overwritten below, so a full-scratch fill every step is wasted vst/VALU.
    zrow = jnp.zeros((Wo + 2, Cin), jnp.float32)
    zcol = jnp.zeros((Ho, Cin), jnp.float32)
    for rh in range(2):
        for rw in range(2):
            xp_ref[rh, rw, 0, :, :] = zrow
            xp_ref[rh, rw, Ho + 1, :, :] = zrow
            xp_ref[rh, rw, 1:Ho + 1, 0, :] = zcol
            xp_ref[rh, rw, 1:Ho + 1, Wo + 1, :] = zcol

    # Stage the activated, parity-split input + broadcast z into VMEM scratch.
    # xp[rh, rw, bi, bj, c] == image[2*(bi-1)+rh, 2*(bj-1)+rw, c]; border = 0.
    z_row = _act(pre, z_ref[pl.ds(n, 1), :].astype(jnp.float32))      # (1, Zd)
    zimg = jnp.broadcast_to(z_row.reshape(1, 1, Zd), (Ho, Wo, Zd))
    for rh in range(2):
        for rw in range(2):
            xq = x_ref[:, rh, :, rw * Cx:(rw + 1) * Cx].astype(jnp.float32)
            xp_ref[rh, rw, 1:Ho + 1, 1:Wo + 1, 0:Cx] = _act(pre, xq)
            xp_ref[rh, rw, 1:Ho + 1, 1:Wo + 1, Cx:Cin] = zimg

    # im2col: 16 direct same-shape tap copies into the 3-D slab (no per-tap
    # value reshape); all taps become contraction columns of a single matmul.
    for kh in range(K):
        ph, bh = _parity_tap(kh)
        for kw in range(K):
            pw, bw = _parity_tap(kw)
            t = kh * K + kw
            slab_ref[:, :, t * Cin:(t + 1) * Cin] = (
                xp_ref[ph, pw, bh:bh + Ho, bw:bw + Wo, :])

    y = jnp.dot(slab_ref[...].reshape(Ho * Wo, K * K * Cin), w_ref[...],
                preferred_element_type=jnp.float32)
    # TODO(synk): when Cout >= 128, store as (Ho, Wo*Cout) for unmasked vst.
    o_ref[...] = (y + b_ref[...]).astype(o_ref.dtype)   # no post-act on down


def conv_down(x, z, w_flat, b2, pre):
    """x: (N,H,W,Cx) NHWC; z: (N,Zd); w_flat: (16*(Cx+Zd), Cout); b2: (1,Cout)."""
    N, H, W, Cx = x.shape
    Zd = z.shape[1]
    Cin = Cx + Zd
    Ho, Wo = H // 2, W // 2
    Cout = w_flat.shape[1]
    # Free bitcast reshape: even/odd column pairs packed into the lane dim so
    # the kernel can do the space-to-depth split with static slices.
    x5 = x.reshape(N, Ho, 2, Wo, 2 * Cx)

    kernel = functools.partial(_down_kernel, Ho=Ho, Wo=Wo, Cx=Cx, Zd=Zd, pre=pre)

    f32 = 4
    block_bytes = (Ho * 2 * Wo * 2 * Cx + N * Zd + w_flat.size + b2.size
                   + Ho * Wo * Cout) * f32
    scratch_bytes = (4 * (Ho + 2) * (Wo + 2) * Cin
                     + Ho * Wo * K * K * Cin) * f32
    vmem = _vmem_limit(2 * block_bytes + scratch_bytes)
    cost = pl.CostEstimate(
        flops=int(2 * N * Ho * Wo * (K * K * Cin) * Cout),
        transcendentals=0,
        bytes_accessed=int((x.size + z.size + N * (w_flat.size + b2.size)
                            + N * Ho * Wo * Cout) * f32))

    out = pl.pallas_call(
        kernel,
        out_shape=jax.ShapeDtypeStruct((N, Ho * Wo, Cout), jnp.float32),
        grid=(N,),
        in_specs=[
            pl.BlockSpec((None, Ho, 2, Wo, 2 * Cx), lambda n: (n, 0, 0, 0, 0)),
            pl.BlockSpec((N, Zd), lambda n: (0, 0)),
            pl.BlockSpec(w_flat.shape, lambda n: (0, 0)),
            pl.BlockSpec(b2.shape, lambda n: (0, 0)),
        ],
        out_specs=pl.BlockSpec((None, Ho * Wo, Cout), lambda n: (n, 0, 0)),
        scratch_shapes=[
            pltpu.VMEM((2, 2, Ho + 2, Wo + 2, Cin), jnp.float32),
            pltpu.VMEM((Ho, Wo, K * K * Cin), jnp.float32),
        ],
        compiler_params=pltpu.CompilerParams(
            dimension_semantics=("parallel",), vmem_limit_bytes=vmem),
        cost_estimate=cost,
    )(x5, z, w_flat, b2)
    return out.reshape(N, Ho, Wo, Cout)                  # free reshape


# ----------------------------------------------------------------------------
# Up conv: ConvTranspose2d(Cin -> Cout, k=4, s=2, p=1) as a polyphase conv:
# one matmul (H*W, 9*Cin) @ (9*Cin, 4*Cout); the 4 output parities live in the
# matmul columns (and stay there through the store).  Fused pre (ReLU) / post
# (Tanh/none) activations and fused skip concat (multiple channel-chunk inputs).
# ----------------------------------------------------------------------------
def _up_kernel(*args, H, W, cs, Cout, pre, post):
    n_in = len(cs)
    x_refs = args[:n_in]
    w_ref, b_ref, o_ref, xp_ref, slab_ref = args[n_in:n_in + 5]
    Cin = sum(cs)

    # Border-only zero of the padded scratch (interior fully overwritten below).
    zrow = jnp.zeros((W + 2, Cin), jnp.float32)
    zcol = jnp.zeros((H, Cin), jnp.float32)
    xp_ref[0, :, :] = zrow
    xp_ref[H + 1, :, :] = zrow
    xp_ref[1:H + 1, 0, :] = zcol
    xp_ref[1:H + 1, W + 1, :] = zcol

    # Activated input in VMEM; channel chunks side by side == torch.cat([...],1)
    # feeding the ConvTranspose.
    off = 0
    for r, c in zip(x_refs, cs):
        xp_ref[1:H + 1, 1:W + 1, off:off + c] = _act(pre, r[...].astype(jnp.float32))
        off += c

    # im2col over the 3x3 window covering all four 2x2 polyphase kernels:
    # 9 direct same-shape tap copies into the 3-D slab.
    for a in range(3):
        for bb in range(3):
            t = a * 3 + bb
            slab_ref[:, :, t * Cin:(t + 1) * Cin] = xp_ref[a:a + H, bb:bb + W, :]

    y = jnp.dot(slab_ref[...].reshape(H * W, 9 * Cin), w_ref[...],
                preferred_element_type=jnp.float32)
    # Single store of the full (H*W, 4*Cout) result — columns are (ph, pw, c).
    # Parity interleave happens wrapper-side (one reshape + one transpose).
    o_ref[...] = _act(post, y + b_ref[...]).astype(o_ref.dtype)


def conv_up(xs, w_poly, b4, pre, post):
    """xs: list of NHWC chunks (implicit channel concat); w_poly: (9*Cin, 4*Cout)."""
    N, H, W, _ = xs[0].shape
    cs = tuple(int(t.shape[-1]) for t in xs)
    Cin = sum(cs)
    Cout = w_poly.shape[1] // 4

    kernel = functools.partial(_up_kernel, H=H, W=W, cs=cs, Cout=Cout,
                               pre=pre, post=post)
    in_specs = [pl.BlockSpec((None, H, W, c), lambda n: (n, 0, 0, 0)) for c in cs]
    in_specs += [pl.BlockSpec(w_poly.shape, lambda n: (0, 0)),
                 pl.BlockSpec(b4.shape, lambda n: (0, 0))]

    f32 = 4
    block_bytes = (H * W * Cin + w_poly.size + b4.size + H * W * 4 * Cout) * f32
    scratch_bytes = ((H + 2) * (W + 2) * Cin + H * W * 9 * Cin) * f32
    vmem = _vmem_limit(2 * block_bytes + scratch_bytes)
    cost = pl.CostEstimate(
        flops=int(2 * N * H * W * (9 * Cin) * (4 * Cout)),
        transcendentals=int(N * H * W * 4 * Cout) if post == "tanh" else 0,
        bytes_accessed=int((N * H * W * Cin + N * (w_poly.size + b4.size)
                            + N * H * W * 4 * Cout) * f32))

    out = pl.pallas_call(
        kernel,
        out_shape=jax.ShapeDtypeStruct((N, H * W, 4 * Cout), jnp.float32),
        grid=(N,),
        in_specs=in_specs,
        out_specs=pl.BlockSpec((None, H * W, 4 * Cout), lambda n: (n, 0, 0)),
        scratch_shapes=[
            pltpu.VMEM((H + 2, W + 2, Cin), jnp.float32),
            pltpu.VMEM((H, W, 9 * Cin), jnp.float32),
        ],
        compiler_params=pltpu.CompilerParams(
            dimension_semantics=("parallel",), vmem_limit_bytes=vmem),
        cost_estimate=cost,
    )(*xs, w_poly, b4)

    # Wrapper-side parity interleave (layout plumbing, not compute):
    # (N, H*W, 4*Cout) -> (N, H, W, 2, 2, Cout) is a free row-major split,
    # then one transpose + free merge gives (N, 2H, 2W, Cout).
    y = out.reshape(N, H, W, 2, 2, Cout)
    y = jnp.transpose(y, (0, 1, 3, 2, 4, 5))
    return y.reshape(N, 2 * H, 2 * W, Cout)


# ---- pure-JAX references (correctness check) --------------------------------
def _ref_down(x, z, w_hwio, b, pre):
    N, H, W, _ = x.shape
    zimg = jnp.broadcast_to(z[:, None, None, :], (N, H, W, z.shape[1]))
    xz = _act(pre, jnp.concatenate([x, zimg], axis=-1))
    y = lax.conv_general_dilated(xz, w_hwio, (2, 2), ((1, 1), (1, 1)),
                                 dimension_numbers=("NHWC", "HWIO", "NHWC"))
    return y + b


def _ref_up(x, w_hwio, b, pre, post):
    y = lax.conv_general_dilated(_act(pre, x), w_hwio, (1, 1), ((2, 2), (2, 2)),
                                 lhs_dilation=(2, 2),
                                 dimension_numbers=("NHWC", "HWIO", "NHWC"))
    return _act(post, y + b)


# ---- parameter init (torch layouts) and weight re-packing -------------------
def _init_conv(key, cin, cout):
    kw, kb = jax.random.split(key)
    w_pt = jax.random.normal(kw, (cout, cin, K, K), jnp.float32) * 0.05   # OIHW
    b = jax.random.normal(kb, (cout,), jnp.float32) * 0.05
    return jnp.transpose(w_pt, (2, 3, 1, 0)), b                           # HWIO


def _init_convT(key, cin, cout):
    kw, kb = jax.random.split(key)
    w_pt = jax.random.normal(kw, (cin, cout, K, K), jnp.float32) * 0.05   # IOHW
    b = jax.random.normal(kb, (cout,), jnp.float32) * 0.05
    return w_pt, b


def _convT_polyphase_weight(w_pt):
    """(Cin, Cout, 4, 4) ConvT weight -> (9*Cin, 4*Cout) polyphase matrix.

    y[2m+ph, 2n+pw, o] = sum_{dh,dw in {0,1}} xpad[m+ph+dh, n+pw+dw, :]
                         @ w_pt[:, o, 3-2*dh-ph, 3-2*dw-pw]
    i.e. a 3x3-window, stride-1 conv on the 1-padded input with the 4 output
    parities folded into the matmul N dimension.
    """
    cin, cout = int(w_pt.shape[0]), int(w_pt.shape[1])
    w_eff = jnp.zeros((3, 3, cin, 2, 2, cout), jnp.float32)
    for ph in range(2):
        for pw in range(2):
            for dh in range(2):
                for dw in range(2):
                    a, b = ph + dh, pw + dw
                    kh, kw = 3 - 2 * dh - ph, 3 - 2 * dw - pw
                    w_eff = w_eff.at[a, b, :, ph, pw, :].set(w_pt[:, :, kh, kw])
    return w_eff.reshape(9 * cin, 4 * cout)


class UnetBlockWithZ:
    """JAX/Pallas port of the PyTorch UnetBlockWithZ forward (norm_layer=None)."""

    def __init__(self, key, in_dim, out_dim, inner_dim, z_dim, submodule,
                 outermost=False, innermost=False):
        self.outermost = outermost
        self.innermost = innermost
        self.submodule = submodule
        kd, ku = jax.random.split(key)

        cin_down = in_dim + z_dim
        self.down_w_hwio, self.down_b = _init_conv(kd, cin_down, inner_dim)
        self.down_w_flat = self.down_w_hwio.reshape(K * K * cin_down, inner_dim)
        self.down_b2 = self.down_b.reshape(1, inner_dim)

        up_in = inner_dim if innermost else inner_dim * 2
        w_pt, self.up_b = _init_convT(ku, up_in, out_dim)
        # reference form: flipped taps, HWIO (for lax.conv with lhs_dilation)
        self.up_w_ref = jnp.transpose(jnp.flip(w_pt, axis=(2, 3)), (2, 3, 0, 1))
        # kernel form: polyphase matrix
        self.up_w_poly = _convT_polyphase_weight(w_pt)
        self.up_b4 = jnp.tile(self.up_b, 4).reshape(1, 4 * out_dim)

    def _down(self, x, z, pre, use_pallas):
        if use_pallas:
            return conv_down(x, z, self.down_w_flat, self.down_b2, pre)
        return _ref_down(x, z, self.down_w_hwio, self.down_b, pre)

    def _up(self, chunks, pre, post, use_pallas):
        if use_pallas:
            return conv_up(chunks, self.up_w_poly, self.up_b4, pre, post)
        x = chunks[0] if len(chunks) == 1 else jnp.concatenate(chunks, axis=-1)
        return _ref_up(x, self.up_w_ref, self.up_b, pre, post)

    def forward(self, x, z, use_pallas):
        # x: single NHWC tensor. Returns a LIST of NHWC channel chunks (the
        # implicit torch.cat of the skip connection is consumed unconcatenated
        # by the parent's up-conv kernel -> no extra HBM copy).
        if self.outermost:
            x1 = self._down(x, z, "none", use_pallas)
            x2 = self.submodule.forward(x1, z, use_pallas)
            return [self._up(x2, "relu", "tanh", use_pallas)]
        elif self.innermost:
            x1 = self._down(x, z, "lrelu", use_pallas)
            return [self._up([x1], "relu", "none", use_pallas), x]
        else:
            x1 = self._down(x, z, "lrelu", use_pallas)
            x2 = self.submodule.forward(x1, z, use_pallas)
            return [self._up(x2, "relu", "none", use_pallas), x]


def unet_apply(block, x_nchw, z, *, use_pallas=True):
    # public API is NCHW (PyTorch convention); compute runs in NHWC.
    x = jnp.transpose(x_nchw, (0, 2, 3, 1)).astype(jnp.float32)
    chunks = block.forward(x, z.astype(jnp.float32), use_pallas)
    y = chunks[0] if len(chunks) == 1 else jnp.concatenate(chunks, axis=-1)
    return jnp.transpose(y, (0, 3, 1, 2))


if __name__ == "__main__":
    key = jax.random.PRNGKey(0)
    kx, kz, kp_in, kp_out = jax.random.split(key, 4)

    N, C_in, HW, z_dim = 2, 4, 16, 8
    x = jax.random.normal(kx, (N, C_in, HW, HW), jnp.float32)
    z = jax.random.normal(kz, (N, z_dim), jnp.float32)

    # two-level UNet: innermost block wrapped by an outermost block
    inner = UnetBlockWithZ(kp_in, in_dim=8, out_dim=8, inner_dim=16, z_dim=z_dim,
                           submodule=None, innermost=True)
    outer = UnetBlockWithZ(kp_out, in_dim=C_in, out_dim=3, inner_dim=8, z_dim=z_dim,
                           submodule=inner, outermost=True)

    run_pallas = jax.jit(functools.partial(unet_apply, outer, use_pallas=True))
    run_ref = jax.jit(functools.partial(unet_apply, outer, use_pallas=False))

    out = jax.block_until_ready(run_pallas(x, z))
    ref = jax.block_until_ready(run_ref(x, z))

    assert out.shape == (N, 3, HW, HW), out.shape
    assert jnp.allclose(out, ref, atol=1e-4, rtol=1e-4), \
        float(jnp.max(jnp.abs(out - ref)))
    print("KERNEL_OK")
</pallas_src>

<mosaic_0001>
module attributes {stable_mosaic.version = 11 : i64} {
  func.func @_down_kernel(%arg0: i32, %arg1: memref<1x8x2x8x8xf32, #tpu.memory_space<vmem>>, %arg2: memref<2x8xf32, #tpu.memory_space<vmem>>, %arg3: memref<192x8xf32, #tpu.memory_space<vmem>>, %arg4: memref<1x8xf32, #tpu.memory_space<vmem>>, %arg5: memref<1x64x8xf32, #tpu.memory_space<vmem>>, %arg6: memref<2x2x10x10x12xf32, #tpu.memory_space<vmem>>, %arg7: memref<8x8x192xf32, #tpu.memory_space<vmem>>) attributes {dimension_semantics = [#tpu.dimension_semantics<parallel>], iteration_bounds = array<i64: 2>, scalar_prefetch = 0 : i64, scratch_operands = 2 : i64, tpu.core_type = #tpu.core_type<tc>, window_params = [{transform_indices = @transform_0, window_bounds = array<i64: 1, 8, 2, 8, 8>}, {pipeline_mode = #tpu.pipeline_mode<synchronous>, transform_indices = @transform_1, window_bounds = array<i64: 2, 8>}, {pipeline_mode = #tpu.pipeline_mode<synchronous>, transform_indices = @transform_2, window_bounds = array<i64: 192, 8>}, {pipeline_mode = #tpu.pipeline_mode<synchronous>, transform_indices = @transform_3, window_bounds = array<i64: 1, 8>}, {transform_indices = @transform_4, window_bounds = array<i64: 1, 64, 8>}]} {
    %cst = arith.constant 0.000000e+00 : f32
    %0 = vector.broadcast %cst : f32 to vector<10x12xf32>
    %cst_0 = arith.constant 0.000000e+00 : f32
    %1 = vector.broadcast %cst_0 : f32 to vector<8x12xf32>
    %c0 = arith.constant 0 : index
    %c0_1 = arith.constant 0 : index
    %c0_2 = arith.constant 0 : index
    %c0_3 = arith.constant 0 : index
    %c0_4 = arith.constant 0 : index
    %2 = vector.load %arg6[%c0, %c0_1, %c0_2, %c0_3, %c0_4] : memref<2x2x10x10x12xf32, #tpu.memory_space<vmem>>, vector<1x1x1x10x12xf32>
    %3 = vector.shape_cast %2 : vector<1x1x1x10x12xf32> to vector<10x12xf32>
    %4 = vector.shape_cast %0 : vector<10x12xf32> to vector<1x1x1x10x12xf32>
    tpu.vector_store %arg6[%c0, %c0_1, %c0_2, %c0_3, %c0_4], %4 {strides = array<i32>} : memref<2x2x10x10x12xf32, #tpu.memory_space<vmem>>, vector<1x1x1x10x12xf32>,
    %c0_5 = arith.constant 0 : index
    %c0_6 = arith.constant 0 : index
    %c9 = arith.constant 9 : index
    %c0_7 = arith.constant 0 : index
    %c0_8 = arith.constant 0 : index
    %5 = vector.load %arg6[%c0_5, %c0_6, %c9, %c0_7, %c0_8] : memref<2x2x10x10x12xf32, #tpu.memory_space<vmem>>, vector<1x1x1x10x12xf32>
    %6 = vector.shape_cast %5 : vector<1x1x1x10x12xf32> to vector<10x12xf32>
    %7 = vector.shape_cast %0 : vector<10x12xf32> to vector<1x1x1x10x12xf32>
    tpu.vector_store %arg6[%c0_5, %c0_6, %c9, %c0_7, %c0_8], %7 {strides = array<i32>} : memref<2x2x10x10x12xf32, #tpu.memory_space<vmem>>, vector<1x1x1x10x12xf32>,
    %c0_9 = arith.constant 0 : index
    %c0_10 = arith.constant 0 : index
    %c1 = arith.constant 1 : index
    %c0_11 = arith.constant 0 : index
    %c0_12 = arith.constant 0 : index
    %8 = vector.load %arg6[%c0_9, %c0_10, %c1, %c0_11, %c0_12] : memref<2x2x10x10x12xf32, #tpu.memory_space<vmem>>, vector<1x1x8x1x12xf32>
    %9 = vector.shape_cast %8 : vector<1x1x8x1x12xf32> to vector<8x12xf32>
    %10 = vector.shape_cast %1 : vector<8x12xf32> to vector<1x1x8x1x12xf32>
    tpu.vector_store %arg6[%c0_9, %c0_10, %c1, %c0_11, %c0_12], %10 {strides = array<i32>} : memref<2x2x10x10x12xf32, #tpu.memory_space<vmem>>, vector<1x1x8x1x12xf32>,
    %c0_13 = arith.constant 0 : index
    %c0_14 = arith.constant 0 : index
    %c1_15 = arith.constant 1 : index
    %c9_16 = arith.constant 9 : index
    %c0_17 = arith.constant 0 : index
    %11 = vector.load %arg6[%c0_13, %c0_14, %c1_15, %c9_16, %c0_17] : memref<2x2x10x10x12xf32, #tpu.memory_space<vmem>>, vector<1x1x8x1x12xf32>
    %12 = vector.shape_cast %11 : vector<1x1x8x1x12xf32> to vector<8x12xf32>
    %13 = vector.shape_cast %1 : vector<8x12xf32> to vector<1x1x8x1x12xf32>
    tpu.vector_store %arg6[%c0_13, %c0_14, %c1_15, %c9_16, %c0_17], %13 {strides = array<i32>} : memref<2x2x10x10x12xf32, #tpu.memory_space<vmem>>, vector<1x1x8x1x12xf32>,
    %c0_18 = arith.constant 0 : index
    %c1_19 = arith.constant 1 : index
    %c0_20 = arith.constant 0 : index
    %c0_21 = arith.constant 0 : index
    %c0_22 = arith.constant 0 : index
    %14 = vector.load %arg6[%c0_18, %c1_19, %c0_20, %c0_21, %c0_22] : memref<2x2x10x10x12xf32, #tpu.memory_space<vmem>>, vector<1x1x1x10x12xf32>
    %15 = vector.shape_cast %14 : vector<1x1x1x10x12xf32> to vector<10x12xf32>
    %16 = vector.shape_cast %0 : vector<10x12xf32> to vector<1x1x1x10x12xf32>
    tpu.vector_store %arg6[%c0_18, %c1_19, %c0_20, %c0_21, %c0_22], %16 {strides = array<i32>} : memref<2x2x10x10x12xf32, #tpu.memory_space<vmem>>, vector<1x1x1x10x12xf32>,
    %c0_23 = arith.constant 0 : index
    %c1_24 = arith.constant 1 : index
    %c9_25 = arith.constant 9 : index
    %c0_26 = arith.constant 0 : index
    %c0_27 = arith.constant 0 : index
    %17 = vector.load %arg6[%c0_23, %c1_24, %c9_25, %c0_26, %c0_27] : memref<2x2x10x10x12xf32, #tpu.memory_space<vmem>>, vector<1x1x1x10x12xf32>
    %18 = vector.shape_cast %17 : vector<1x1x1x10x12xf32> to vector<10x12xf32>
    %19 = vector.shape_cast %0 : vector<10x12xf32> to vector<1x1x1x10x12xf32>
    tpu.vector_store %arg6[%c0_23, %c1_24, %c9_25, %c0_26, %c0_27], %19 {strides = array<i32>} : memref<2x2x10x10x12xf32, #tpu.memory_space<vmem>>, vector<1x1x1x10x12xf32>,
    %c0_28 = arith.constant 0 : index
    %c1_29 = arith.constant 1 : index
    %c1_30 = arith.constant 1 : index
    %c0_31 = arith.constant 0 : index
    %c0_32 = arith.constant 0 : index
    %20 = vector.load %arg6[%c0_28, %c1_29, %c1_30, %c0_31, %c0_32] : memref<2x2x10x10x12xf32, #tpu.memory_space<vmem>>, vector<1x1x8x1x12xf32>
    %21 = vector.shape_cast %20 : vector<1x1x8x1x12xf32> to vector<8x12xf32>
    %22 = vector.shape_cast %1 : vector<8x12xf32> to vector<1x1x8x1x12xf32>
    tpu.vector_store %arg6[%c0_28, %c1_29, %c1_30, %c0_31, %c0_32], %22 {strides = array<i32>} : memref<2x2x10x10x12xf32, #tpu.memory_space<vmem>>, vector<1x1x8x1x12xf32>,
    %c0_33 = arith.constant 0 : index
    %c1_34 = arith.constant 1 : index
    %c1_35 = arith.constant 1 : index
    %c9_36 = arith.constant 9 : index
    %c0_37 = arith.constant 0 : index
    %23 = vector.load %arg6[%c0_33, %c1_34, %c1_35, %c9_36, %c0_37] : memref<2x2x10x10x12xf32, #tpu.memory_space<vmem>>, vector<1x1x8x1x12xf32>
    %24 = vector.shape_cast %23 : vector<1x1x8x1x12xf32> to vector<8x12xf32>
    %25 = vector.shape_cast %1 : vector<8x12xf32> to vector<1x1x8x1x12xf32>
    tpu.vector_store %arg6[%c0_33, %c1_34, %c1_35, %c9_36, %c0_37], %25 {strides = array<i32>} : memref<2x2x10x10x12xf32, #tpu.memory_space<vmem>>, vector<1x1x8x1x12xf32>,
    %c1_38 = arith.constant 1 : index
    %c0_39 = arith.constant 0 : index
    %c0_40 = arith.constant 0 : index
    %c0_41 = arith.constant 0 : index
    %c0_42 = arith.constant 0 : index
    %26 = vector.load %arg6[%c1_38, %c0_39, %c0_40, %c0_41, %c0_42] : memref<2x2x10x10x12xf32, #tpu.memory_space<vmem>>, vector<1x1x1x10x12xf32>
    %27 = vector.shape_cast %26 : vector<1x1x1x10x12xf32> to vector<10x12xf32>
    %28 = vector.shape_cast %0 : vector<10x12xf32> to vector<1x1x1x10x12xf32>
    tpu.vector_store %arg6[%c1_38, %c0_39, %c0_40, %c0_41, %c0_42], %28 {strides = array<i32>} : memref<2x2x10x10x12xf32, #tpu.memory_space<vmem>>, vector<1x1x1x10x12xf32>,
    %c1_43 = arith.constant 1 : index
    %c0_44 = arith.constant 0 : index
    %c9_45 = arith.constant 9 : index
    %c0_46 = arith.constant 0 : index
    %c0_47 = arith.constant 0 : index
    %29 = vector.load %arg6[%c1_43, %c0_44, %c9_45, %c0_46, %c0_47] : memref<2x2x10x10x12xf32, #tpu.memory_space<vmem>>, vector<1x1x1x10x12xf32>
    %30 = vector.shape_cast %29 : vector<1x1x1x10x12xf32> to vector<10x12xf32>
    %31 = vector.shape_cast %0 : vector<10x12xf32> to vector<1x1x1x10x12xf32>
    tpu.vector_store %arg6[%c1_43, %c0_44, %c9_45, %c0_46, %c0_47], %31 {strides = array<i32>} : memref<2x2x10x10x12xf32, #tpu.memory_space<vmem>>, vector<1x1x1x10x12xf32>,
    %c1_48 = arith.constant 1 : index
    %c0_49 = arith.constant 0 : index
    %c1_50 = arith.constant 1 : index
    %c0_51 = arith.constant 0 : index
    %c0_52 = arith.constant 0 : index
    %32 = vector.load %arg6[%c1_48, %c0_49, %c1_50, %c0_51, %c0_52] : memref<2x2x10x10x12xf32, #tpu.memory_space<vmem>>, vector<1x1x8x1x12xf32>
    %33 = vector.shape_cast %32 : vector<1x1x8x1x12xf32> to vector<8x12xf32>
    %34 = vector.shape_cast %1 : vector<8x12xf32> to vector<1x1x8x1x12xf32>
    tpu.vector_store %arg6[%c1_48, %c0_49, %c1_50, %c0_51, %c0_52], %34 {strides = array<i32>} : memref<2x2x10x10x12xf32, #tpu.memory_space<vmem>>, vector<1x1x8x1x12xf32>,
    %c1_53 = arith.constant 1 : index
    %c0_54 = arith.constant 0 : index
    %c1_55 = arith.constant 1 : index
    %c9_56 = arith.constant 9 : index
    %c0_57 = arith.constant 0 : index
    %35 = vector.load %arg6[%c1_53, %c0_54, %c1_55, %c9_56, %c0_57] : memref<2x2x10x10x12xf32, #tpu.memory_space<vmem>>, vector<1x1x8x1x12xf32>
    %36 = vector.shape_cast %35 : vector<1x1x8x1x12xf32> to vector<8x12xf32>
    %37 = vector.shape_cast %1 : vector<8x12xf32> to vector<1x1x8x1x12xf32>
    tpu.vector_store %arg6[%c1_53, %c0_54, %c1_55, %c9_56, %c0_57], %37 {strides = array<i32>} : memref<2x2x10x10x12xf32, #tpu.memory_space<vmem>>, vector<1x1x8x1x12xf32>,
    %c1_58 = arith.constant 1 : index
    %c1_59 = arith.constant 1 : index
    %c0_60 = arith.constant 0 : index
    %c0_61 = arith.constant 0 : index
    %c0_62 = arith.constant 0 : index
    %38 = vector.load %arg6[%c1_58, %c1_59, %c0_60, %c0_61, %c0_62] : memref<2x2x10x10x12xf32, #tpu.memory_space<vmem>>, vector<1x1x1x10x12xf32>
    %39 = vector.shape_cast %38 : vector<1x1x1x10x12xf32> to vector<10x12xf32>
    %40 = vector.shape_cast %0 : vector<10x12xf32> to vector<1x1x1x10x12xf32>
    tpu.vector_store %arg6[%c1_58, %c1_59, %c0_60, %c0_61, %c0_62], %40 {strides = array<i32>} : memref<2x2x10x10x12xf32, #tpu.memory_space<vmem>>, vector<1x1x1x10x12xf32>,
    %c1_63 = arith.constant 1 : index
    %c1_64 = arith.constant 1 : index
    %c9_65 = arith.constant 9 : index
    %c0_66 = arith.constant 0 : index
    %c0_67 = arith.constant 0 : index
    %41 = vector.load %arg6[%c1_63, %c1_64, %c9_65, %c0_66, %c0_67] : memref<2x2x10x10x12xf32, #tpu.memory_space<vmem>>, vector<1x1x1x10x12xf32>
    %42 = vector.shape_cast %41 : vector<1x1x1x10x12xf32> to vector<10x12xf32>
    %43 = vector.shape_cast %0 : vector<10x12xf32> to vector<1x1x1x10x12xf32>
    tpu.vector_store %arg6[%c1_63, %c1_64, %c9_65, %c0_66, %c0_67], %43 {strides = array<i32>} : memref<2x2x10x10x12xf32, #tpu.memory_space<vmem>>, vector<1x1x1x10x12xf32>,
    %c1_68 = arith.constant 1 : index
    %c1_69 = arith.constant 1 : index
    %c1_70 = arith.constant 1 : index
    %c0_71 = arith.constant 0 : index
    %c0_72 = arith.constant 0 : index
    %44 = vector.load %arg6[%c1_68, %c1_69, %c1_70, %c0_71, %c0_72] : memref<2x2x10x10x12xf32, #tpu.memory_space<vmem>>, vector<1x1x8x1x12xf32>
    %45 = vector.shape_cast %44 : vector<1x1x8x1x12xf32> to vector<8x12xf32>
    %46 = vector.shape_cast %1 : vector<8x12xf32> to vector<1x1x8x1x12xf32>
    tpu.vector_store %arg6[%c1_68, %c1_69, %c1_70, %c0_71, %c0_72], %46 {strides = array<i32>} : memref<2x2x10x10x12xf32, #tpu.memory_space<vmem>>, vector<1x1x8x1x12xf32>,
    %c1_73 = arith.constant 1 : index
    %c1_74 = arith.constant 1 : index
    %c1_75 = arith.constant 1 : index
    %c9_76 = arith.constant 9 : index
    %c0_77 = arith.constant 0 : index
    %47 = vector.load %arg6[%c1_73, %c1_74, %c1_75, %c9_76, %c0_77] : memref<2x2x10x10x12xf32, #tpu.memory_space<vmem>>, vector<1x1x8x1x12xf32>
    %48 = vector.shape_cast %47 : vector<1x1x8x1x12xf32> to vector<8x12xf32>
    %49 = vector.shape_cast %1 : vector<8x12xf32> to vector<1x1x8x1x12xf32>
    tpu.vector_store %arg6[%c1_73, %c1_74, %c1_75, %c9_76, %c0_77], %49 {strides = array<i32>} : memref<2x2x10x10x12xf32, #tpu.memory_space<vmem>>, vector<1x1x8x1x12xf32>,
    %50 = arith.index_cast %arg0 : i32 to index
    %c0_78 = arith.constant 0 : index
    %51 = vector.load %arg2[%50, %c0_78] : memref<2x8xf32, #tpu.memory_space<vmem>>, vector<1x8xf32>
    %52 = vector.shape_cast %51 : vector<1x8xf32> to vector<1x1x8xf32>
    %53 = vector.shape_cast %52 : vector<1x1x8xf32> to vector<1x1x8xf32>
    %54 = vector.broadcast %53 : vector<1x1x8xf32> to vector<8x8x8xf32>
    %c0_79 = arith.constant 0 : index
    %c0_80 = arith.constant 0 : index
    %c0_81 = arith.constant 0 : index
    %c0_82 = arith.constant 0 : index
    %c0_83 = arith.constant 0 : index
    %55 = vector.load %arg1[%c0_79, %c0_80, %c0_81, %c0_82, %c0_83] : memref<1x8x2x8x8xf32, #tpu.memory_space<vmem>>, vector<1x8x1x8x4xf32>
    %56 = vector.shape_cast %55 : vector<1x8x1x8x4xf32> to vector<8x8x4xf32>
    %c0_84 = arith.constant 0 : index
    %c0_85 = arith.constant 0 : index
    %c1_86 = arith.constant 1 : index
    %c1_87 = arith.constant 1 : index
    %c0_88 = arith.constant 0 : index
    %57 = vector.load %arg6[%c0_84, %c0_85, %c1_86, %c1_87, %c0_88] : memref<2x2x10x10x12xf32, #tpu.memory_space<vmem>>, vector<1x1x8x8x4xf32>
    %58 = vector.shape_cast %57 : vector<1x1x8x8x4xf32> to vector<8x8x4xf32>
    %59 = vector.shape_cast %56 : vector<8x8x4xf32> to vector<1x1x8x8x4xf32>
    tpu.vector_store %arg6[%c0_84, %c0_85, %c1_86, %c1_87, %c0_88], %59 {strides = array<i32>} : memref<2x2x10x10x12xf32, #tpu.memory_space<vmem>>, vector<1x1x8x8x4xf32>,
    %c0_89 = arith.constant 0 : index
    %c0_90 = arith.constant 0 : index
    %c1_91 = arith.constant 1 : index
    %c1_92 = arith.constant 1 : index
    %c4 = arith.constant 4 : index
    %60 = vector.load %arg6[%c0_89, %c0_90, %c1_91, %c1_92, %c4] : memref<2x2x10x10x12xf32, #tpu.memory_space<vmem>>, vector<1x1x8x8x8xf32>
    %61 = vector.shape_cast %60 : vector<1x1x8x8x8xf32> to vector<8x8x8xf32>
    %62 = vector.shape_cast %54 : vector<8x8x8xf32> to vector<1x1x8x8x8xf32>
    tpu.vector_store %arg6[%c0_89, %c0_90, %c1_91, %c1_92, %c4], %62 {strides = array<i32>} : memref<2x2x10x10x12xf32, #tpu.memory_space<vmem>>, vector<1x1x8x8x8xf32>,
    %c0_93 = arith.constant 0 : index
    %c0_94 = arith.constant 0 : index
    %c0_95 = arith.constant 0 : index
    %c0_96 = arith.constant 0 : index
    %c4_97 = arith.constant 4 : index
    %63 = vector.load %arg1[%c0_93, %c0_94, %c0_95, %c0_96, %c4_97] : memref<1x8x2x8x8xf32, #tpu.memory_space<vmem>>, vector<1x8x1x8x4xf32>
    %64 = vector.shape_cast %63 : vector<1x8x1x8x4xf32> to vector<8x8x4xf32>
    %c0_98 = arith.constant 0 : index
    %c1_99 = arith.constant 1 : index
    %c1_100 = arith.constant 1 : index
    %c1_101 = arith.constant 1 : index
    %c0_102 = arith.constant 0 : index
    %65 = vector.load %arg6[%c0_98, %c1_99, %c1_100, %c1_101, %c0_102] : memref<2x2x10x10x12xf32, #tpu.memory_space<vmem>>, vector<1x1x8x8x4xf32>
    %66 = vector.shape_cast %65 : vector<1x1x8x8x4xf32> to vector<8x8x4xf32>
    %67 = vector.shape_cast %64 : vector<8x8x4xf32> to vector<1x1x8x8x4xf32>
    tpu.vector_store %arg6[%c0_98, %c1_99, %c1_100, %c1_101, %c0_102], %67 {strides = array<i32>} : memref<2x2x10x10x12xf32, #tpu.memory_space<vmem>>, vector<1x1x8x8x4xf32>,
    %c0_103 = arith.constant 0 : index
    %c1_104 = arith.constant 1 : index
    %c1_105 = arith.constant 1 : index
    %c1_106 = arith.constant 1 : index
    %c4_107 = arith.constant 4 : index
    %68 = vector.load %arg6[%c0_103, %c1_104, %c1_105, %c1_106, %c4_107] : memref<2x2x10x10x12xf32, #tpu.memory_space<vmem>>, vector<1x1x8x8x8xf32>
    %69 = vector.shape_cast %68 : vector<1x1x8x8x8xf32> to vector<8x8x8xf32>
    %70 = vector.shape_cast %54 : vector<8x8x8xf32> to vector<1x1x8x8x8xf32>
    tpu.vector_store %arg6[%c0_103, %c1_104, %c1_105, %c1_106, %c4_107], %70 {strides = array<i32>} : memref<2x2x10x10x12xf32, #tpu.memory_space<vmem>>, vector<1x1x8x8x8xf32>,
    %c0_108 = arith.constant 0 : index
    %c0_109 = arith.constant 0 : index
    %c1_110 = arith.constant 1 : index
    %c0_111 = arith.constant 0 : index
    %c0_112 = arith.constant 0 : index
    %71 = vector.load %arg1[%c0_108, %c0_109, %c1_110, %c0_111, %c0_112] : memref<1x8x2x8x8xf32, #tpu.memory_space<vmem>>, vector<1x8x1x8x4xf32>
    %72 = vector.shape_cast %71 : vector<1x8x1x8x4xf32> to vector<8x8x4xf32>
    %c1_113 = arith.constant 1 : index
    %c0_114 = arith.constant 0 : index
    %c1_115 = arith.constant 1 : index
    %c1_116 = arith.constant 1 : index
    %c0_117 = arith.constant 0 : index
    %73 = vector.load %arg6[%c1_113, %c0_114, %c1_115, %c1_116, %c0_117] : memref<2x2x10x10x12xf32, #tpu.memory_space<vmem>>, vector<1x1x8x8x4xf32>
    %74 = vector.shape_cast %73 : vector<1x1x8x8x4xf32> to vector<8x8x4xf32>
    %75 = vector.shape_cast %72 : vector<8x8x4xf32> to vector<1x1x8x8x4xf32>
    tpu.vector_store %arg6[%c1_113, %c0_114, %c1_115, %c1_116, %c0_117], %75 {strides = array<i32>} : memref<2x2x10x10x12xf32, #tpu.memory_space<vmem>>, vector<1x1x8x8x4xf32>,
    %c1_118 = arith.constant 1 : index
    %c0_119 = arith.constant 0 : index
    %c1_120 = arith.constant 1 : index
    %c1_121 = arith.constant 1 : index
    %c4_122 = arith.constant 4 : index
    %76 = vector.load %arg6[%c1_118, %c0_119, %c1_120, %c1_121, %c4_122] : memref<2x2x10x10x12xf32, #tpu.memory_space<vmem>>, vector<1x1x8x8x8xf32>
    %77 = vector.shape_cast %76 : vector<1x1x8x8x8xf32> to vector<8x8x8xf32>
    %78 = vector.shape_cast %54 : vector<8x8x8xf32> to vector<1x1x8x8x8xf32>
    tpu.vector_store %arg6[%c1_118, %c0_119, %c1_120, %c1_121, %c4_122], %78 {strides = array<i32>} : memref<2x2x10x10x12xf32, #tpu.memory_space<vmem>>, vector<1x1x8x8x8xf32>,
    %c0_123 = arith.constant 0 : index
    %c0_124 = arith.constant 0 : index
    %c1_125 = arith.constant 1 : index
    %c0_126 = arith.constant 0 : index
    %c4_127 = arith.constant 4 : index
    %79 = vector.load %arg1[%c0_123, %c0_124, %c1_125, %c0_126, %c4_127] : memref<1x8x2x8x8xf32, #tpu.memory_space<vmem>>, vector<1x8x1x8x4xf32>
    %80 = vector.shape_cast %79 : vector<1x8x1x8x4xf32> to vector<8x8x4xf32>
    %c1_128 = arith.constant 1 : index
    %c1_129 = arith.constant 1 : index
    %c1_130 = arith.constant 1 : index
    %c1_131 = arith.constant 1 : index
    %c0_132 = arith.constant 0 : index
    %81 = vector.load %arg6[%c1_128, %c1_129, %c1_130, %c1_131, %c0_132] : memref<2x2x10x10x12xf32, #tpu.memory_space<vmem>>, vector<1x1x8x8x4xf32>
    %82 = vector.shape_cast %81 : vector<1x1x8x8x4xf32> to vector<8x8x4xf32>
    %83 = vector.shape_cast %80 : vector<8x8x4xf32> to vector<1x1x8x8x4xf32>
    tpu.vector_store %arg6[%c1_128, %c1_129, %c1_130, %c1_131, %c0_132], %83 {strides = array<i32>} : memref<2x2x10x10x12xf32, #tpu.memory_space<vmem>>, vector<1x1x8x8x4xf32>,
    %c1_133 = arith.constant 1 : index
    %c1_134 = arith.constant 1 : index
    %c1_135 = arith.constant 1 : index
    %c1_136 = arith.constant 1 : index
    %c4_137 = arith.constant 4 : index
    %84 = vector.load %arg6[%c1_133, %c1_134, %c1_135, %c1_136, %c4_137] : memref<2x2x10x10x12xf32, #tpu.memory_space<vmem>>, vector<1x1x8x8x8xf32>
    %85 = vector.shape_cast %84 : vector<1x1x8x8x8xf32> to vector<8x8x8xf32>
    %86 = vector.shape_cast %54 : vector<8x8x8xf32> to vector<1x1x8x8x8xf32>
    tpu.vector_store %arg6[%c1_133, %c1_134, %c1_135, %c1_136, %c4_137], %86 {strides = array<i32>} : memref<2x2x10x10x12xf32, #tpu.memory_space<vmem>>, vector<1x1x8x8x8xf32>,
    %c1_138 = arith.constant 1 : index
    %c1_139 = arith.constant 1 : index
    %c0_140 = arith.constant 0 : index
    %c0_141 = arith.constant 0 : index
    %c0_142 = arith.constant 0 : index
    %87 = vector.load %arg6[%c1_138, %c1_139, %c0_140, %c0_141, %c0_142] : memref<2x2x10x10x12xf32, #tpu.memory_space<vmem>>, vector<1x1x8x8x12xf32>
    %88 = vector.shape_cast %87 : vector<1x1x8x8x12xf32> to vector<8x8x12xf32>
    %c0_143 = arith.constant 0 : index
    %c0_144 = arith.constant 0 : index
    %c0_145 = arith.constant 0 : index
    %89 = vector.load %arg7[%c0_143, %c0_144, %c0_145] : memref<8x8x192xf32, #tpu.memory_space<vmem>>, vector<8x8x12xf32>
    tpu.vector_store %arg7[%c0_143, %c0_144, %c0_145], %88 {strides = array<i32>} : memref<8x8x192xf32, #tpu.memory_space<vmem>>, vector<8x8x12xf32>,
    %c1_146 = arith.constant 1 : index
    %c0_147 = arith.constant 0 : index
    %c0_148 = arith.constant 0 : index
    %c1_149 = arith.constant 1 : index
    %c0_150 = arith.constant 0 : index
    %90 = vector.load %arg6[%c1_146, %c0_147, %c0_148, %c1_149, %c0_150] : memref<2x2x10x10x12xf32, #tpu.memory_space<vmem>>, vector<1x1x8x8x12xf32>
    %91 = vector.shape_cast %90 : vector<1x1x8x8x12xf32> to vector<8x8x12xf32>
    %c0_151 = arith.constant 0 : index
    %c0_152 = arith.constant 0 : index
    %c12 = arith.constant 12 : index
    %92 = vector.load %arg7[%c0_151, %c0_152, %c12] : memref<8x8x192xf32, #tpu.memory_space<vmem>>, vector<8x8x12xf32>
    tpu.vector_store %arg7[%c0_151, %c0_152, %c12], %91 {strides = array<i32>} : memref<8x8x192xf32, #tpu.memory_space<vmem>>, vector<8x8x12xf32>,
    %c1_153 = arith.constant 1 : index
    %c1_154 = arith.constant 1 : index
    %c0_155 = arith.constant 0 : index
    %c1_156 = arith.constant 1 : index
    %c0_157 = arith.constant 0 : index
    %93 = vector.load %arg6[%c1_153, %c1_154, %c0_155, %c1_156, %c0_157] : memref<2x2x10x10x12xf32, #tpu.memory_space<vmem>>, vector<1x1x8x8x12xf32>
    %94 = vector.shape_cast %93 : vector<1x1x8x8x12xf32> to vector<8x8x12xf32>
    %c0_158 = arith.constant 0 : index
    %c0_159 = arith.constant 0 : index
    %c24 = arith.constant 24 : index
    %95 = vector.load %arg7[%c0_158, %c0_159, %c24] : memref<8x8x192xf32, #tpu.memory_space<vmem>>, vector<8x8x12xf32>
    tpu.vector_store %arg7[%c0_158, %c0_159, %c24], %94 {strides = array<i32>} : memref<8x8x192xf32, #tpu.memory_space<vmem>>, vector<8x8x12xf32>,
    %c1_160 = arith.constant 1 : index
    %c0_161 = arith.constant 0 : index
    %c0_162 = arith.constant 0 : index
    %c2 = arith.constant 2 : index
    %c0_163 = arith.constant 0 : index
    %96 = vector.load %arg6[%c1_160, %c0_161, %c0_162, %c2, %c0_163] : memref<2x2x10x10x12xf32, #tpu.memory_space<vmem>>, vector<1x1x8x8x12xf32>
    %97 = vector.shape_cast %96 : vector<1x1x8x8x12xf32> to vector<8x8x12xf32>
    %c0_164 = arith.constant 0 : index
    %c0_165 = arith.constant 0 : index
    %c36 = arith.constant 36 : index
    %98 = vector.load %arg7[%c0_164, %c0_165, %c36] : memref<8x8x192xf32, #tpu.memory_space<vmem>>, vector<8x8x12xf32>
    tpu.vector_store %arg7[%c0_164, %c0_165, %c36], %97 {strides = array<i32>} : memref<8x8x192xf32, #tpu.memory_space<vmem>>, vector<8x8x12xf32>,
    %c0_166 = arith.constant 0 : index
    %c1_167 = arith.constant 1 : index
    %c1_168 = arith.constant 1 : index
    %c0_169 = arith.constant 0 : index
    %c0_170 = arith.constant 0 : index
    %99 = vector.load %arg6[%c0_166, %c1_167, %c1_168, %c0_169, %c0_170] : memref<2x2x10x10x12xf32, #tpu.memory_space<vmem>>, vector<1x1x8x8x12xf32>
    %100 = vector.shape_cast %99 : vector<1x1x8x8x12xf32> to vector<8x8x12xf32>
    %c0_171 = arith.constant 0 : index
    %c0_172 = arith.constant 0 : index
    %c48 = arith.constant 48 : index
    %101 = vector.load %arg7[%c0_171, %c0_172, %c48] : memref<8x8x192xf32, #tpu.memory_space<vmem>>, vector<8x8x12xf32>
    tpu.vector_store %arg7[%c0_171, %c0_172, %c48], %100 {strides = array<i32>} : memref<8x8x192xf32, #tpu.memory_space<vmem>>, vector<8x8x12xf32>,
    %c0_173 = arith.constant 0 : index
    %c0_174 = arith.constant 0 : index
    %c1_175 = arith.constant 1 : index
    %c1_176 = arith.constant 1 : index
    %c0_177 = arith.constant 0 : index
    %102 = vector.load %arg6[%c0_173, %c0_174, %c1_175, %c1_176, %c0_177] : memref<2x2x10x10x12xf32, #tpu.memory_space<vmem>>, vector<1x1x8x8x12xf32>
    %103 = vector.shape_cast %102 : vector<1x1x8x8x12xf32> to vector<8x8x12xf32>
    %c0_178 = arith.constant 0 : index
    %c0_179 = arith.constant 0 : index
    %c60 = arith.constant 60 : index
    %104 = vector.load %arg7[%c0_178, %c0_179, %c60] : memref<8x8x192xf32, #tpu.memory_space<vmem>>, vector<8x8x12xf32>
    tpu.vector_store %arg7[%c0_178, %c0_179, %c60], %103 {strides = array<i32>} : memref<8x8x192xf32, #tpu.memory_space<vmem>>, vector<8x8x12xf32>,
    %c0_180 = arith.constant 0 : index
    %c1_181 = arith.constant 1 : index
    %c1_182 = arith.constant 1 : index
    %c1_183 = arith.constant 1 : index
    %c0_184 = arith.constant 0 : index
    %105 = vector.load %arg6[%c0_180, %c1_181, %c1_182, %c1_183, %c0_184] : memref<2x2x10x10x12xf32, #tpu.memory_space<vmem>>, vector<1x1x8x8x12xf32>
    %106 = vector.shape_cast %105 : vector<1x1x8x8x12xf32> to vector<8x8x12xf32>
    %c0_185 = arith.constant 0 : index
    %c0_186 = arith.constant 0 : index
    %c72 = arith.constant 72 : index
    %107 = vector.load %arg7[%c0_185, %c0_186, %c72] : memref<8x8x192xf32, #tpu.memory_space<vmem>>, vector<8x8x12xf32>
    tpu.vector_store %arg7[%c0_185, %c0_186, %c72], %106 {strides = array<i32>} : memref<8x8x192xf32, #tpu.memory_space<vmem>>, vector<8x8x12xf32>,
    %c0_187 = arith.constant 0 : index
    %c0_188 = arith.constant 0 : index
    %c1_189 = arith.constant 1 : index
    %c2_190 = arith.constant 2 : index
    %c0_191 = arith.constant 0 : index
    %108 = vector.load %arg6[%c0_187, %c0_188, %c1_189, %c2_190, %c0_191] : memref<2x2x10x10x12xf32, #tpu.memory_space<vmem>>, vector<1x1x8x8x12xf32>
    %109 = vector.shape_cast %108 : vector<1x1x8x8x12xf32> to vector<8x8x12xf32>
    %c0_192 = arith.constant 0 : index
    %c0_193 = arith.constant 0 : index
    %c84 = arith.constant 84 : index
    %110 = vector.load %arg7[%c0_192, %c0_193, %c84] : memref<8x8x192xf32, #tpu.memory_space<vmem>>, vector<8x8x12xf32>
    tpu.vector_store %arg7[%c0_192, %c0_193, %c84], %109 {strides = array<i32>} : memref<8x8x192xf32, #tpu.memory_space<vmem>>, vector<8x8x12xf32>,
    %c1_194 = arith.constant 1 : index
    %c1_195 = arith.constant 1 : index
    %c1_196 = arith.constant 1 : index
    %c0_197 = arith.constant 0 : index
    %c0_198 = arith.constant 0 : index
    %111 = vector.load %arg6[%c1_194, %c1_195, %c1_196, %c0_197, %c0_198] : memref<2x2x10x10x12xf32, #tpu.memory_space<vmem>>, vector<1x1x8x8x12xf32>
    %112 = vector.shape_cast %111 : vector<1x1x8x8x12xf32> to vector<8x8x12xf32>
    %c0_199 = arith.constant 0 : index
    %c0_200 = arith.constant 0 : index
    %c96 = arith.constant 96 : index
    %113 = vector.load %arg7[%c0_199, %c0_200, %c96] : memref<8x8x192xf32, #tpu.memory_space<vmem>>, vector<8x8x12xf32>
    tpu.vector_store %arg7[%c0_199, %c0_200, %c96], %112 {strides = array<i32>} : memref<8x8x192xf32, #tpu.memory_space<vmem>>, vector<8x8x12xf32>,
    %c1_201 = arith.constant 1 : index
    %c0_202 = arith.constant 0 : index
    %c1_203 = arith.constant 1 : index
    %c1_204 = arith.constant 1 : index
    %c0_205 = arith.constant 0 : index
    %114 = vector.load %arg6[%c1_201, %c0_202, %c1_203, %c1_204, %c0_205] : memref<2x2x10x10x12xf32, #tpu.memory_space<vmem>>, vector<1x1x8x8x12xf32>
    %115 = vector.shape_cast %114 : vector<1x1x8x8x12xf32> to vector<8x8x12xf32>
    %c0_206 = arith.constant 0 : index
    %c0_207 = arith.constant 0 : index
    %c108 = arith.constant 108 : index
    %116 = vector.load %arg7[%c0_206, %c0_207, %c108] : memref<8x8x192xf32, #tpu.memory_space<vmem>>, vector<8x8x12xf32>
    tpu.vector_store %arg7[%c0_206, %c0_207, %c108], %115 {strides = array<i32>} : memref<8x8x192xf32, #tpu.memory_space<vmem>>, vector<8x8x12xf32>,
    %c1_208 = arith.constant 1 : index
    %c1_209 = arith.constant 1 : index
    %c1_210 = arith.constant 1 : index
    %c1_211 = arith.constant 1 : index
    %c0_212 = arith.constant 0 : index
    %117 = vector.load %arg6[%c1_208, %c1_209, %c1_210, %c1_211, %c0_212] : memref<2x2x10x10x12xf32, #tpu.memory_space<vmem>>, vector<1x1x8x8x12xf32>
    %118 = vector.shape_cast %117 : vector<1x1x8x8x12xf32> to vector<8x8x12xf32>
    %c0_213 = arith.constant 0 : index
    %c0_214 = arith.constant 0 : index
    %c120 = arith.constant 120 : index
    %119 = vector.load %arg7[%c0_213, %c0_214, %c120] : memref<8x8x192xf32, #tpu.memory_space<vmem>>, vector<8x8x12xf32>
    tpu.vector_store %arg7[%c0_213, %c0_214, %c120], %118 {strides = array<i32>} : memref<8x8x192xf32, #tpu.memory_space<vmem>>, vector<8x8x12xf32>,
    %c1_215 = arith.constant 1 : index
    %c0_216 = arith.constant 0 : index
    %c1_217 = arith.constant 1 : index
    %c2_218 = arith.constant 2 : index
    %c0_219 = arith.constant 0 : index
    %120 = vector.load %arg6[%c1_215, %c0_216, %c1_217, %c2_218, %c0_219] : memref<2x2x10x10x12xf32, #tpu.memory_space<vmem>>, vector<1x1x8x8x12xf32>
    %121 = vector.shape_cast %120 : vector<1x1x8x8x12xf32> to vector<8x8x12xf32>
    %c0_220 = arith.constant 0 : index
    %c0_221 = arith.constant 0 : index
    %c132 = arith.constant 132 : index
    %122 = vector.load %arg7[%c0_220, %c0_221, %c132] : memref<8x8x192xf32, #tpu.memory_space<vmem>>, vector<8x8x12xf32>
    tpu.vector_store %arg7[%c0_220, %c0_221, %c132], %121 {strides = array<i32>} : memref<8x8x192xf32, #tpu.memory_space<vmem>>, vector<8x8x12xf32>,
    %c0_222 = arith.constant 0 : index
    %c1_223 = arith.constant 1 : index
    %c2_224 = arith.constant 2 : index
    %c0_225 = arith.constant 0 : index
    %c0_226 = arith.constant 0 : index
    %123 = vector.load %arg6[%c0_222, %c1_223, %c2_224, %c0_225, %c0_226] : memref<2x2x10x10x12xf32, #tpu.memory_space<vmem>>, vector<1x1x8x8x12xf32>
    %124 = vector.shape_cast %123 : vector<1x1x8x8x12xf32> to vector<8x8x12xf32>
    %c0_227 = arith.constant 0 : index
    %c0_228 = arith.constant 0 : index
    %c144 = arith.constant 144 : index
    %125 = vector.load %arg7[%c0_227, %c0_228, %c144] : memref<8x8x192xf32, #tpu.memory_space<vmem>>, vector<8x8x12xf32>
    tpu.vector_store %arg7[%c0_227, %c0_228, %c144], %124 {strides = array<i32>} : memref<8x8x192xf32, #tpu.memory_space<vmem>>, vector<8x8x12xf32>,
    %c0_229 = arith.constant 0 : index
    %c0_230 = arith.constant 0 : index
    %c2_231 = arith.constant 2 : index
    %c1_232 = arith.constant 1 : index
    %c0_233 = arith.constant 0 : index
    %126 = vector.load %arg6[%c0_229, %c0_230, %c2_231, %c1_232, %c0_233] : memref<2x2x10x10x12xf32, #tpu.memory_space<vmem>>, vector<1x1x8x8x12xf32>
    %127 = vector.shape_cast %126 : vector<1x1x8x8x12xf32> to vector<8x8x12xf32>
    %c0_234 = arith.constant 0 : index
    %c0_235 = arith.constant 0 : index
    %c156 = arith.constant 156 : index
    %128 = vector.load %arg7[%c0_234, %c0_235, %c156] : memref<8x8x192xf32, #tpu.memory_space<vmem>>, vector<8x8x12xf32>
    tpu.vector_store %arg7[%c0_234, %c0_235, %c156], %127 {strides = array<i32>} : memref<8x8x192xf32, #tpu.memory_space<vmem>>, vector<8x8x12xf32>,
    %c0_236 = arith.constant 0 : index
    %c1_237 = arith.constant 1 : index
    %c2_238 = arith.constant 2 : index
    %c1_239 = arith.constant 1 : index
    %c0_240 = arith.constant 0 : index
    %129 = vector.load %arg6[%c0_236, %c1_237, %c2_238, %c1_239, %c0_240] : memref<2x2x10x10x12xf32, #tpu.memory_space<vmem>>, vector<1x1x8x8x12xf32>
    %130 = vector.shape_cast %129 : vector<1x1x8x8x12xf32> to vector<8x8x12xf32>
    %c0_241 = arith.constant 0 : index
    %c0_242 = arith.constant 0 : index
    %c168 = arith.constant 168 : index
    %131 = vector.load %arg7[%c0_241, %c0_242, %c168] : memref<8x8x192xf32, #tpu.memory_space<vmem>>, vector<8x8x12xf32>
    tpu.vector_store %arg7[%c0_241, %c0_242, %c168], %130 {strides = array<i32>} : memref<8x8x192xf32, #tpu.memory_space<vmem>>, vector<8x8x12xf32>,
    %c0_243 = arith.constant 0 : index
    %c0_244 = arith.constant 0 : index
    %c2_245 = arith.constant 2 : index
    %c2_246 = arith.constant 2 : index
    %c0_247 = arith.constant 0 : index
    %132 = vector.load %arg6[%c0_243, %c0_244, %c2_245, %c2_246, %c0_247] : memref<2x2x10x10x12xf32, #tpu.memory_space<vmem>>, vector<1x1x8x8x12xf32>
    %133 = vector.shape_cast %132 : vector<1x1x8x8x12xf32> to vector<8x8x12xf32>
    %c0_248 = arith.constant 0 : index
    %c0_249 = arith.constant 0 : index
    %c180 = arith.constant 180 : index
    %134 = vector.load %arg7[%c0_248, %c0_249, %c180] : memref<8x8x192xf32, #tpu.memory_space<vmem>>, vector<8x8x12xf32>
    tpu.vector_store %arg7[%c0_248, %c0_249, %c180], %133 {strides = array<i32>} : memref<8x8x192xf32, #tpu.memory_space<vmem>>, vector<8x8x12xf32>,
    %c0_250 = arith.constant 0 : index
    %c0_251 = arith.constant 0 : index
    %c0_252 = arith.constant 0 : index
    %135 = vector.load %arg7[%c0_250, %c0_251, %c0_252] : memref<8x8x192xf32, #tpu.memory_space<vmem>>, vector<8x8x192xf32>
    %136 = vector.shape_cast %135 : vector<8x8x192xf32> to vector<64x192xf32>
    %c0_253 = arith.constant 0 : index
    %c0_254 = arith.constant 0 : index
    %137 = vector.load %arg3[%c0_253, %c0_254] : memref<192x8xf32, #tpu.memory_space<vmem>>, vector<192x8xf32>
    %cst_255 = arith.constant dense<0.000000e+00> : vector<64x8xf32>
    %138 = tpu.matmul %136, %137, %cst_255 {dimension_numbers = #tpu.dot_dimension_numbers<[1], [0], [0], [1], [0, 0, 1, 1], [], []>} : vector<64x192xf32>, vector<192x8xf32>, vector<64x8xf32> -> vector<64x8xf32>
    %c0_256 = arith.constant 0 : index
    %c0_257 = arith.constant 0 : index
    %139 = vector.load %arg4[%c0_256, %c0_257] : memref<1x8xf32, #tpu.memory_space<vmem>>, vector<1x8xf32>
    %140 = vector.broadcast %139 : vector<1x8xf32> to vector<64x8xf32>
    %141 = arith.addf %138, %140 : vector<64x8xf32>
    %c0_258 = arith.constant 0 : index
    %c0_259 = arith.constant 0 : index
    %c0_260 = arith.constant 0 : index
    %142 = vector.load %arg5[%c0_258, %c0_259, %c0_260] : memref<1x64x8xf32, #tpu.memory_space<vmem>>, vector<1x64x8xf32>
    %143 = vector.shape_cast %142 : vector<1x64x8xf32> to vector<64x8xf32>
    %144 = vector.shape_cast %141 : vector<64x8xf32> to vector<1x64x8xf32>
    tpu.vector_store %arg5[%c0_258, %c0_259, %c0_260], %144 {strides = array<i32>} : memref<1x64x8xf32, #tpu.memory_space<vmem>>, vector<1x64x8xf32>,
    return
  }
  func.func @transform_0(%arg0: i32) -> (i32, i32, i32, i32, i32) {
    %c0_i32 = arith.constant 0 : i32
    %c0_i32_0 = arith.constant 0 : i32
    %c0_i32_1 = arith.constant 0 : i32
    %c0_i32_2 = arith.constant 0 : i32
    %c0_i32_3 = arith.constant 0 : i32
    return %arg0, %c0_i32, %c0_i32_0, %c0_i32_1, %c0_i32_2 : i32, i32, i32, i32, i32
  }
  func.func @transform_1(%arg0: i32) -> (i32, i32) {
    %c0_i32 = arith.constant 0 : i32
    %c0_i32_0 = arith.constant 0 : i32
    %c0_i32_1 = arith.constant 0 : i32
    return %c0_i32, %c0_i32_0 : i32, i32
  }
  func.func @transform_2(%arg0: i32) -> (i32, i32) {
    %c0_i32 = arith.constant 0 : i32
    %c0_i32_0 = arith.constant 0 : i32
    %c0_i32_1 = arith.constant 0 : i32
    return %c0_i32, %c0_i32_0 : i32, i32
  }
  func.func @transform_3(%arg0: i32) -> (i32, i32) {
    %c0_i32 = arith.constant 0 : i32
    %c0_i32_0 = arith.constant 0 : i32
    %c0_i32_1 = arith.constant 0 : i32
    return %c0_i32, %c0_i32_0 : i32, i32
  }
  func.func @transform_4(%arg0: i32) -> (i32, i32, i32) {
    %c0_i32 = arith.constant 0 : i32
    %c0_i32_0 = arith.constant 0 : i32
    %c0_i32_1 = arith.constant 0 : i32
    return %arg0, %c0_i32, %c0_i32_0 : i32, i32, i32
  }
}

module attributes {stable_mosaic.version = 11 : i64} {
  func.func @_up_kernel(%arg0: i32, %arg1: memref<1x4x4x16xf32, #tpu.memory_space<vmem>>, %arg2: memref<144x32xf32, #tpu.memory_space<vmem>>, %arg3: memref<1x32xf32, #tpu.memory_space<vmem>>, %arg4: memref<1x16x32xf32, #tpu.memory_space<vmem>>, %arg5: memref<6x6x16xf32, #tpu.memory_space<vmem>>, %arg6: memref<4x4x144xf32, #tpu.memory_space<vmem>>) attributes {dimension_semantics = [#tpu.dimension_semantics<parallel>], iteration_bounds = array<i64: 2>, scalar_prefetch = 0 : i64, scratch_operands = 2 : i64, tpu.core_type = #tpu.core_type<tc>, window_params = [{transform_indices = @transform_0, window_bounds = array<i64: 1, 4, 4, 16>}, {pipeline_mode = #tpu.pipeline_mode<synchronous>, transform_indices = @transform_1, window_bounds = array<i64: 144, 32>}, {pipeline_mode = #tpu.pipeline_mode<synchronous>, transform_indices = @transform_2, window_bounds = array<i64: 1, 32>}, {transform_indices = @transform_3, window_bounds = array<i64: 1, 16, 32>}]} {
    %cst = arith.constant 0.000000e+00 : f32
    %0 = vector.broadcast %cst : f32 to vector<6x16xf32>
    %cst_0 = arith.constant 0.000000e+00 : f32
    %1 = vector.broadcast %cst_0 : f32 to vector<4x16xf32>
    %c0 = arith.constant 0 : index
    %c0_1 = arith.constant 0 : index
    %c0_2 = arith.constant 0 : index
    %2 = vector.load %arg5[%c0, %c0_1, %c0_2] : memref<6x6x16xf32, #tpu.memory_space<vmem>>, vector<1x6x16xf32>
    %3 = vector.shape_cast %2 : vector<1x6x16xf32> to vector<6x16xf32>
    %4 = vector.shape_cast %0 : vector<6x16xf32> to vector<1x6x16xf32>
    tpu.vector_store %arg5[%c0, %c0_1, %c0_2], %4 {strides = array<i32>} : memref<6x6x16xf32, #tpu.memory_space<vmem>>, vector<1x6x16xf32>,
    %c5 = arith.constant 5 : index
    %c0_3 = arith.constant 0 : index
    %c0_4 = arith.constant 0 : index
    %5 = vector.load %arg5[%c5, %c0_3, %c0_4] : memref<6x6x16xf32, #tpu.memory_space<vmem>>, vector<1x6x16xf32>
    %6 = vector.shape_cast %5 : vector<1x6x16xf32> to vector<6x16xf32>
    %7 = vector.shape_cast %0 : vector<6x16xf32> to vector<1x6x16xf32>
    tpu.vector_store %arg5[%c5, %c0_3, %c0_4], %7 {strides = array<i32>} : memref<6x6x16xf32, #tpu.memory_space<vmem>>, vector<1x6x16xf32>,
    %c1 = arith.constant 1 : index
    %c0_5 = arith.constant 0 : index
    %c0_6 = arith.constant 0 : index
    %8 = vector.load %arg5[%c1, %c0_5, %c0_6] : memref<6x6x16xf32, #tpu.memory_space<vmem>>, vector<4x1x16xf32>
    %9 = vector.shape_cast %8 : vector<4x1x16xf32> to vector<4x16xf32>
    %10 = vector.shape_cast %1 : vector<4x16xf32> to vector<4x1x16xf32>
    tpu.vector_store %arg5[%c1, %c0_5, %c0_6], %10 {strides = array<i32>} : memref<6x6x16xf32, #tpu.memory_space<vmem>>, vector<4x1x16xf32>,
    %c1_7 = arith.constant 1 : index
    %c5_8 = arith.constant 5 : index
    %c0_9 = arith.constant 0 : index
    %11 = vector.load %arg5[%c1_7, %c5_8, %c0_9] : memref<6x6x16xf32, #tpu.memory_space<vmem>>, vector<4x1x16xf32>
    %12 = vector.shape_cast %11 : vector<4x1x16xf32> to vector<4x16xf32>
    %13 = vector.shape_cast %1 : vector<4x16xf32> to vector<4x1x16xf32>
    tpu.vector_store %arg5[%c1_7, %c5_8, %c0_9], %13 {strides = array<i32>} : memref<6x6x16xf32, #tpu.memory_space<vmem>>, vector<4x1x16xf32>,
    %c0_10 = arith.constant 0 : index
    %c0_11 = arith.constant 0 : index
    %c0_12 = arith.constant 0 : index
    %c0_13 = arith.constant 0 : index
    %14 = vector.load %arg1[%c0_10, %c0_11, %c0_12, %c0_13] : memref<1x4x4x16xf32, #tpu.memory_space<vmem>>, vector<1x4x4x16xf32>
    %15 = vector.shape_cast %14 : vector<1x4x4x16xf32> to vector<4x4x16xf32>
    %cst_14 = arith.constant 0.000000e+00 : f32
    %16 = vector.broadcast %cst_14 : f32 to vector<4x4x16xf32>
    %17 = arith.maximumf %15, %16 : vector<4x4x16xf32>
    %c1_15 = arith.constant 1 : index
    %c1_16 = arith.constant 1 : index
    %c0_17 = arith.constant 0 : index
    %18 = vector.load %arg5[%c1_15, %c1_16, %c0_17] : memref<6x6x16xf32, #tpu.memory_space<vmem>>, vector<4x4x16xf32>
    tpu.vector_store %arg5[%c1_15, %c1_16, %c0_17], %17 {strides = array<i32>} : memref<6x6x16xf32, #tpu.memory_space<vmem>>, vector<4x4x16xf32>,
    %c0_18 = arith.constant 0 : index
    %c0_19 = arith.constant 0 : index
    %c0_20 = arith.constant 0 : index
    %19 = vector.load %arg5[%c0_18, %c0_19, %c0_20] : memref<6x6x16xf32, #tpu.memory_space<vmem>>, vector<4x4x16xf32>
    %c0_21 = arith.constant 0 : index
    %c0_22 = arith.constant 0 : index
    %c0_23 = arith.constant 0 : index
    %20 = vector.load %arg6[%c0_21, %c0_22, %c0_23] : memref<4x4x144xf32, #tpu.memory_space<vmem>>, vector<4x4x16xf32>
    tpu.vector_store %arg6[%c0_21, %c0_22, %c0_23], %19 {strides = array<i32>} : memref<4x4x144xf32, #tpu.memory_space<vmem>>, vector<4x4x16xf32>,
    %c0_24 = arith.constant 0 : index
    %c1_25 = arith.constant 1 : index
    %c0_26 = arith.constant 0 : index
    %21 = vector.load %arg5[%c0_24, %c1_25, %c0_26] : memref<6x6x16xf32, #tpu.memory_space<vmem>>, vector<4x4x16xf32>
    %c0_27 = arith.constant 0 : index
    %c0_28 = arith.constant 0 : index
    %c16 = arith.constant 16 : index
    %22 = vector.load %arg6[%c0_27, %c0_28, %c16] : memref<4x4x144xf32, #tpu.memory_space<vmem>>, vector<4x4x16xf32>
    tpu.vector_store %arg6[%c0_27, %c0_28, %c16], %21 {strides = array<i32>} : memref<4x4x144xf32, #tpu.memory_space<vmem>>, vector<4x4x16xf32>,
    %c0_29 = arith.constant 0 : index
    %c2 = arith.constant 2 : index
    %c0_30 = arith.constant 0 : index
    %23 = vector.load %arg5[%c0_29, %c2, %c0_30] : memref<6x6x16xf32, #tpu.memory_space<vmem>>, vector<4x4x16xf32>
    %c0_31 = arith.constant 0 : index
    %c0_32 = arith.constant 0 : index
    %c32 = arith.constant 32 : index
    %24 = vector.load %arg6[%c0_31, %c0_32, %c32] : memref<4x4x144xf32, #tpu.memory_space<vmem>>, vector<4x4x16xf32>
    tpu.vector_store %arg6[%c0_31, %c0_32, %c32], %23 {strides = array<i32>} : memref<4x4x144xf32, #tpu.memory_space<vmem>>, vector<4x4x16xf32>,
    %c1_33 = arith.constant 1 : index
    %c0_34 = arith.constant 0 : index
    %c0_35 = arith.constant 0 : index
    %25 = vector.load %arg5[%c1_33, %c0_34, %c0_35] : memref<6x6x16xf32, #tpu.memory_space<vmem>>, vector<4x4x16xf32>
    %c0_36 = arith.constant 0 : index
    %c0_37 = arith.constant 0 : index
    %c48 = arith.constant 48 : index
    %26 = vector.load %arg6[%c0_36, %c0_37, %c48] : memref<4x4x144xf32, #tpu.memory_space<vmem>>, vector<4x4x16xf32>
    tpu.vector_store %arg6[%c0_36, %c0_37, %c48], %25 {strides = array<i32>} : memref<4x4x144xf32, #tpu.memory_space<vmem>>, vector<4x4x16xf32>,
    %c1_38 = arith.constant 1 : index
    %c1_39 = arith.constant 1 : index
    %c0_40 = arith.constant 0 : index
    %27 = vector.load %arg5[%c1_38, %c1_39, %c0_40] : memref<6x6x16xf32, #tpu.memory_space<vmem>>, vector<4x4x16xf32>
    %c0_41 = arith.constant 0 : index
    %c0_42 = arith.constant 0 : index
    %c64 = arith.constant 64 : index
    %28 = vector.load %arg6[%c0_41, %c0_42, %c64] : memref<4x4x144xf32, #tpu.memory_space<vmem>>, vector<4x4x16xf32>
    tpu.vector_store %arg6[%c0_41, %c0_42, %c64], %27 {strides = array<i32>} : memref<4x4x144xf32, #tpu.memory_space<vmem>>, vector<4x4x16xf32>,
    %c1_43 = arith.constant 1 : index
    %c2_44 = arith.constant 2 : index
    %c0_45 = arith.constant 0 : index
    %29 = vector.load %arg5[%c1_43, %c2_44, %c0_45] : memref<6x6x16xf32, #tpu.memory_space<vmem>>, vector<4x4x16xf32>
    %c0_46 = arith.constant 0 : index
    %c0_47 = arith.constant 0 : index
    %c80 = arith.constant 80 : index
    %30 = vector.load %arg6[%c0_46, %c0_47, %c80] : memref<4x4x144xf32, #tpu.memory_space<vmem>>, vector<4x4x16xf32>
    tpu.vector_store %arg6[%c0_46, %c0_47, %c80], %29 {strides = array<i32>} : memref<4x4x144xf32, #tpu.memory_space<vmem>>, vector<4x4x16xf32>,
    %c2_48 = arith.constant 2 : index
    %c0_49 = arith.constant 0 : index
    %c0_50 = arith.constant 0 : index
    %31 = vector.load %arg5[%c2_48, %c0_49, %c0_50] : memref<6x6x16xf32, #tpu.memory_space<vmem>>, vector<4x4x16xf32>
    %c0_51 = arith.constant 0 : index
    %c0_52 = arith.constant 0 : index
    %c96 = arith.constant 96 : index
    %32 = vector.load %arg6[%c0_51, %c0_52, %c96] : memref<4x4x144xf32, #tpu.memory_space<vmem>>, vector<4x4x16xf32>
    tpu.vector_store %arg6[%c0_51, %c0_52, %c96], %31 {strides = array<i32>} : memref<4x4x144xf32, #tpu.memory_space<vmem>>, vector<4x4x16xf32>,
    %c2_53 = arith.constant 2 : index
    %c1_54 = arith.constant 1 : index
    %c0_55 = arith.constant 0 : index
    %33 = vector.load %arg5[%c2_53, %c1_54, %c0_55] : memref<6x6x16xf32, #tpu.memory_space<vmem>>, vector<4x4x16xf32>
    %c0_56 = arith.constant 0 : index
    %c0_57 = arith.constant 0 : index
    %c112 = arith.constant 112 : index
    %34 = vector.load %arg6[%c0_56, %c0_57, %c112] : memref<4x4x144xf32, #tpu.memory_space<vmem>>, vector<4x4x16xf32>
    tpu.vector_store %arg6[%c0_56, %c0_57, %c112], %33 {strides = array<i32>} : memref<4x4x144xf32, #tpu.memory_space<vmem>>, vector<4x4x16xf32>,
    %c2_58 = arith.constant 2 : index
    %c2_59 = arith.constant 2 : index
    %c0_60 = arith.constant 0 : index
    %35 = vector.load %arg5[%c2_58, %c2_59, %c0_60] : memref<6x6x16xf32, #tpu.memory_space<vmem>>, vector<4x4x16xf32>
    %c0_61 = arith.constant 0 : index
    %c0_62 = arith.constant 0 : index
    %c128 = arith.constant 128 : index
    %36 = vector.load %arg6[%c0_61, %c0_62, %c128] : memref<4x4x144xf32, #tpu.memory_space<vmem>>, vector<4x4x16xf32>
    tpu.vector_store %arg6[%c0_61, %c0_62, %c128], %35 {strides = array<i32>} : memref<4x4x144xf32, #tpu.memory_space<vmem>>, vector<4x4x16xf32>,
    %c0_63 = arith.constant 0 : index
    %c0_64 = arith.constant 0 : index
    %c0_65 = arith.constant 0 : index
    %37 = vector.load %arg6[%c0_63, %c0_64, %c0_65] : memref<4x4x144xf32, #tpu.memory_space<vmem>>, vector<4x4x144xf32>
    %38 = vector.shape_cast %37 : vector<4x4x144xf32> to vector<16x144xf32>
    %c0_66 = arith.constant 0 : index
    %c0_67 = arith.constant 0 : index
    %39 = vector.load %arg2[%c0_66, %c0_67] : memref<144x32xf32, #tpu.memory_space<vmem>>, vector<144x32xf32>
    %cst_68 = arith.constant dense<0.000000e+00> : vector<16x32xf32>
    %40 = tpu.matmul %38, %39, %cst_68 {dimension_numbers = #tpu.dot_dimension_numbers<[1], [0], [0], [1], [0, 0, 1, 1], [], []>} : vector<16x144xf32>, vector<144x32xf32>, vector<16x32xf32> -> vector<16x32xf32>
    %c0_69 = arith.constant 0 : index
    %c0_70 = arith.constant 0 : index
    %41 = vector.load %arg3[%c0_69, %c0_70] : memref<1x32xf32, #tpu.memory_space<vmem>>, vector<1x32xf32>
    %42 = vector.broadcast %41 : vector<1x32xf32> to vector<16x32xf32>
    %43 = arith.addf %40, %42 : vector<16x32xf32>
    %c0_71 = arith.constant 0 : index
    %c0_72 = arith.constant 0 : index
    %c0_73 = arith.constant 0 : index
    %44 = vector.load %arg4[%c0_71, %c0_72, %c0_73] : memref<1x16x32xf32, #tpu.memory_space<vmem>>, vector<1x16x32xf32>
    %45 = vector.shape_cast %44 : vector<1x16x32xf32> to vector<16x32xf32>
    %46 = vector.shape_cast %43 : vector<16x32xf32> to vector<1x16x32xf32>
    tpu.vector_store %arg4[%c0_71, %c0_72, %c0_73], %46 {strides = array<i32>} : memref<1x16x32xf32, #tpu.memory_space<vmem>>, vector<1x16x32xf32>,
    return
  }
  func.func @transform_0(%arg0: i32) -> (i32, i32, i32, i32) {
    %c0_i32 = arith.constant 0 : i32
    %c0_i32_0 = arith.constant 0 : i32
    %c0_i32_1 = arith.constant 0 : i32
    %c0_i32_2 = arith.constant 0 : i32
    return %arg0, %c0_i32, %c0_i32_0, %c0_i32_1 : i32, i32, i32, i32
  }
  func.func @transform_1(%arg0: i32) -> (i32, i32) {
    %c0_i32 = arith.constant 0 : i32
    %c0_i32_0 = arith.constant 0 : i32
    %c0_i32_1 = arith.constant 0 : i32
    return %c0_i32, %c0_i32_0 : i32, i32
  }
  func.func @transform_2(%arg0: i32) -> (i32, i32) {
    %c0_i32 = arith.constant 0 : i32
    %c0_i32_0 = arith.constant 0 : i32
    %c0_i32_1 = arith.constant 0 : i32
    return %c0_i32, %c0_i32_0 : i32, i32
  }
  func.func @transform_3(%arg0: i32) -> (i32, i32, i32) {
    %c0_i32 = arith.constant 0 : i32
    %c0_i32_0 = arith.constant 0 : i32
    %c0_i32_1 = arith.constant 0 : i32
    return %arg0, %c0_i32, %c0_i32_0 : i32, i32, i32
  }
}

module attributes {stable_mosaic.version = 11 : i64} {
  func.func @_down_kernel(%arg0: i32, %arg1: memref<1x4x2x4x16xf32, #tpu.memory_space<vmem>>, %arg2: memref<2x8xf32, #tpu.memory_space<vmem>>, %arg3: memref<256x16xf32, #tpu.memory_space<vmem>>, %arg4: memref<1x16xf32, #tpu.memory_space<vmem>>, %arg5: memref<1x16x16xf32, #tpu.memory_space<vmem>>, %arg6: memref<2x2x6x6x16xf32, #tpu.memory_space<vmem>>, %arg7: memref<4x4x256xf32, #tpu.memory_space<vmem>>) attributes {dimension_semantics = [#tpu.dimension_semantics<parallel>], iteration_bounds = array<i64: 2>, scalar_prefetch = 0 : i64, scratch_operands = 2 : i64, tpu.core_type = #tpu.core_type<tc>, window_params = [{transform_indices = @transform_0, window_bounds = array<i64: 1, 4, 2, 4, 16>}, {pipeline_mode = #tpu.pipeline_mode<synchronous>, transform_indices = @transform_1, window_bounds = array<i64: 2, 8>}, {pipeline_mode = #tpu.pipeline_mode<synchronous>, transform_indices = @transform_2, window_bounds = array<i64: 256, 16>}, {pipeline_mode = #tpu.pipeline_mode<synchronous>, transform_indices = @transform_3, window_bounds = array<i64: 1, 16>}, {transform_indices = @transform_4, window_bounds = array<i64: 1, 16, 16>}]} {
    %cst = arith.constant 0.000000e+00 : f32
    %0 = vector.broadcast %cst : f32 to vector<6x16xf32>
    %cst_0 = arith.constant 0.000000e+00 : f32
    %1 = vector.broadcast %cst_0 : f32 to vector<4x16xf32>
    %c0 = arith.constant 0 : index
    %c0_1 = arith.constant 0 : index
    %c0_2 = arith.constant 0 : index
    %c0_3 = arith.constant 0 : index
    %c0_4 = arith.constant 0 : index
    %2 = vector.load %arg6[%c0, %c0_1, %c0_2, %c0_3, %c0_4] : memref<2x2x6x6x16xf32, #tpu.memory_space<vmem>>, vector<1x1x1x6x16xf32>
    %3 = vector.shape_cast %2 : vector<1x1x1x6x16xf32> to vector<6x16xf32>
    %4 = vector.shape_cast %0 : vector<6x16xf32> to vector<1x1x1x6x16xf32>
    tpu.vector_store %arg6[%c0, %c0_1, %c0_2, %c0_3, %c0_4], %4 {strides = array<i32>} : memref<2x2x6x6x16xf32, #tpu.memory_space<vmem>>, vector<1x1x1x6x16xf32>,
    %c0_5 = arith.constant 0 : index
    %c0_6 = arith.constant 0 : index
    %c5 = arith.constant 5 : index
    %c0_7 = arith.constant 0 : index
    %c0_8 = arith.constant 0 : index
    %5 = vector.load %arg6[%c0_5, %c0_6, %c5, %c0_7, %c0_8] : memref<2x2x6x6x16xf32, #tpu.memory_space<vmem>>, vector<1x1x1x6x16xf32>
    %6 = vector.shape_cast %5 : vector<1x1x1x6x16xf32> to vector<6x16xf32>
    %7 = vector.shape_cast %0 : vector<6x16xf32> to vector<1x1x1x6x16xf32>
    tpu.vector_store %arg6[%c0_5, %c0_6, %c5, %c0_7, %c0_8], %7 {strides = array<i32>} : memref<2x2x6x6x16xf32, #tpu.memory_space<vmem>>, vector<1x1x1x6x16xf32>,
    %c0_9 = arith.constant 0 : index
    %c0_10 = arith.constant 0 : index
    %c1 = arith.constant 1 : index
    %c0_11 = arith.constant 0 : index
    %c0_12 = arith.constant 0 : index
    %8 = vector.load %arg6[%c0_9, %c0_10, %c1, %c0_11, %c0_12] : memref<2x2x6x6x16xf32, #tpu.memory_space<vmem>>, vector<1x1x4x1x16xf32>
    %9 = vector.shape_cast %8 : vector<1x1x4x1x16xf32> to vector<4x16xf32>
    %10 = vector.shape_cast %1 : vector<4x16xf32> to vector<1x1x4x1x16xf32>
    tpu.vector_store %arg6[%c0_9, %c0_10, %c1, %c0_11, %c0_12], %10 {strides = array<i32>} : memref<2x2x6x6x16xf32, #tpu.memory_space<vmem>>, vector<1x1x4x1x16xf32>,
    %c0_13 = arith.constant 0 : index
    %c0_14 = arith.constant 0 : index
    %c1_15 = arith.constant 1 : index
    %c5_16 = arith.constant 5 : index
    %c0_17 = arith.constant 0 : index
    %11 = vector.load %arg6[%c0_13, %c0_14, %c1_15, %c5_16, %c0_17] : memref<2x2x6x6x16xf32, #tpu.memory_space<vmem>>, vector<1x1x4x1x16xf32>
    %12 = vector.shape_cast %11 : vector<1x1x4x1x16xf32> to vector<4x16xf32>
    %13 = vector.shape_cast %1 : vector<4x16xf32> to vector<1x1x4x1x16xf32>
    tpu.vector_store %arg6[%c0_13, %c0_14, %c1_15, %c5_16, %c0_17], %13 {strides = array<i32>} : memref<2x2x6x6x16xf32, #tpu.memory_space<vmem>>, vector<1x1x4x1x16xf32>,
    %c0_18 = arith.constant 0 : index
    %c1_19 = arith.constant 1 : index
    %c0_20 = arith.constant 0 : index
    %c0_21 = arith.constant 0 : index
    %c0_22 = arith.constant 0 : index
    %14 = vector.load %arg6[%c0_18, %c1_19, %c0_20, %c0_21, %c0_22] : memref<2x2x6x6x16xf32, #tpu.memory_space<vmem>>, vector<1x1x1x6x16xf32>
    %15 = vector.shape_cast %14 : vector<1x1x1x6x16xf32> to vector<6x16xf32>
    %16 = vector.shape_cast %0 : vector<6x16xf32> to vector<1x1x1x6x16xf32>
    tpu.vector_store %arg6[%c0_18, %c1_19, %c0_20, %c0_21, %c0_22], %16 {strides = array<i32>} : memref<2x2x6x6x16xf32, #tpu.memory_space<vmem>>, vector<1x1x1x6x16xf32>,
    %c0_23 = arith.constant 0 : index
    %c1_24 = arith.constant 1 : index
    %c5_25 = arith.constant 5 : index
    %c0_26 = arith.constant 0 : index
    %c0_27 = arith.constant 0 : index
    %17 = vector.load %arg6[%c0_23, %c1_24, %c5_25, %c0_26, %c0_27] : memref<2x2x6x6x16xf32, #tpu.memory_space<vmem>>, vector<1x1x1x6x16xf32>
    %18 = vector.shape_cast %17 : vector<1x1x1x6x16xf32> to vector<6x16xf32>
    %19 = vector.shape_cast %0 : vector<6x16xf32> to vector<1x1x1x6x16xf32>
    tpu.vector_store %arg6[%c0_23, %c1_24, %c5_25, %c0_26, %c0_27], %19 {strides = array<i32>} : memref<2x2x6x6x16xf32, #tpu.memory_space<vmem>>, vector<1x1x1x6x16xf32>,
    %c0_28 = arith.constant 0 : index
    %c1_29 = arith.constant 1 : index
    %c1_30 = arith.constant 1 : index
    %c0_31 = arith.constant 0 : index
    %c0_32 = arith.constant 0 : index
    %20 = vector.load %arg6[%c0_28, %c1_29, %c1_30, %c0_31, %c0_32] : memref<2x2x6x6x16xf32, #tpu.memory_space<vmem>>, vector<1x1x4x1x16xf32>
    %21 = vector.shape_cast %20 : vector<1x1x4x1x16xf32> to vector<4x16xf32>
    %22 = vector.shape_cast %1 : vector<4x16xf32> to vector<1x1x4x1x16xf32>
    tpu.vector_store %arg6[%c0_28, %c1_29, %c1_30, %c0_31, %c0_32], %22 {strides = array<i32>} : memref<2x2x6x6x16xf32, #tpu.memory_space<vmem>>, vector<1x1x4x1x16xf32>,
    %c0_33 = arith.constant 0 : index
    %c1_34 = arith.constant 1 : index
    %c1_35 = arith.constant 1 : index
    %c5_36 = arith.constant 5 : index
    %c0_37 = arith.constant 0 : index
    %23 = vector.load %arg6[%c0_33, %c1_34, %c1_35, %c5_36, %c0_37] : memref<2x2x6x6x16xf32, #tpu.memory_space<vmem>>, vector<1x1x4x1x16xf32>
    %24 = vector.shape_cast %23 : vector<1x1x4x1x16xf32> to vector<4x16xf32>
    %25 = vector.shape_cast %1 : vector<4x16xf32> to vector<1x1x4x1x16xf32>
    tpu.vector_store %arg6[%c0_33, %c1_34, %c1_35, %c5_36, %c0_37], %25 {strides = array<i32>} : memref<2x2x6x6x16xf32, #tpu.memory_space<vmem>>, vector<1x1x4x1x16xf32>,
    %c1_38 = arith.constant 1 : index
    %c0_39 = arith.constant 0 : index
    %c0_40 = arith.constant 0 : index
    %c0_41 = arith.constant 0 : index
    %c0_42 = arith.constant 0 : index
    %26 = vector.load %arg6[%c1_38, %c0_39, %c0_40, %c0_41, %c0_42] : memref<2x2x6x6x16xf32, #tpu.memory_space<vmem>>, vector<1x1x1x6x16xf32>
    %27 = vector.shape_cast %26 : vector<1x1x1x6x16xf32> to vector<6x16xf32>
    %28 = vector.shape_cast %0 : vector<6x16xf32> to vector<1x1x1x6x16xf32>
    tpu.vector_store %arg6[%c1_38, %c0_39, %c0_40, %c0_41, %c0_42], %28 {strides = array<i32>} : memref<2x2x6x6x16xf32, #tpu.memory_space<vmem>>, vector<1x1x1x6x16xf32>,
    %c1_43 = arith.constant 1 : index
    %c0_44 = arith.constant 0 : index
    %c5_45 = arith.constant 5 : index
    %c0_46 = arith.constant 0 : index
    %c0_47 = arith.constant 0 : index
    %29 = vector.load %arg6[%c1_43, %c0_44, %c5_45, %c0_46, %c0_47] : memref<2x2x6x6x16xf32, #tpu.memory_space<vmem>>, vector<1x1x1x6x16xf32>
    %30 = vector.shape_cast %29 : vector<1x1x1x6x16xf32> to vector<6x16xf32>
    %31 = vector.shape_cast %0 : vector<6x16xf32> to vector<1x1x1x6x16xf32>
    tpu.vector_store %arg6[%c1_43, %c0_44, %c5_45, %c0_46, %c0_47], %31 {strides = array<i32>} : memref<2x2x6x6x16xf32, #tpu.memory_space<vmem>>, vector<1x1x1x6x16xf32>,
    %c1_48 = arith.constant 1 : index
    %c0_49 = arith.constant 0 : index
    %c1_50 = arith.constant 1 : index
    %c0_51 = arith.constant 0 : index
    %c0_52 = arith.constant 0 : index
    %32 = vector.load %arg6[%c1_48, %c0_49, %c1_50, %c0_51, %c0_52] : memref<2x2x6x6x16xf32, #tpu.memory_space<vmem>>, vector<1x1x4x1x16xf32>
    %33 = vector.shape_cast %32 : vector<1x1x4x1x16xf32> to vector<4x16xf32>
    %34 = vector.shape_cast %1 : vector<4x16xf32> to vector<1x1x4x1x16xf32>
    tpu.vector_store %arg6[%c1_48, %c0_49, %c1_50, %c0_51, %c0_52], %34 {strides = array<i32>} : memref<2x2x6x6x16xf32, #tpu.memory_space<vmem>>, vector<1x1x4x1x16xf32>,
    %c1_53 = arith.constant 1 : index
    %c0_54 = arith.constant 0 : index
    %c1_55 = arith.constant 1 : index
    %c5_56 = arith.constant 5 : index
    %c0_57 = arith.constant 0 : index
    %35 = vector.load %arg6[%c1_53, %c0_54, %c1_55, %c5_56, %c0_57] : memref<2x2x6x6x16xf32, #tpu.memory_space<vmem>>, vector<1x1x4x1x16xf32>
    %36 = vector.shape_cast %35 : vector<1x1x4x1x16xf32> to vector<4x16xf32>
    %37 = vector.shape_cast %1 : vector<4x16xf32> to vector<1x1x4x1x16xf32>
    tpu.vector_store %arg6[%c1_53, %c0_54, %c1_55, %c5_56, %c0_57], %37 {strides = array<i32>} : memref<2x2x6x6x16xf32, #tpu.memory_space<vmem>>, vector<1x1x4x1x16xf32>,
    %c1_58 = arith.constant 1 : index
    %c1_59 = arith.constant 1 : index
    %c0_60 = arith.constant 0 : index
    %c0_61 = arith.constant 0 : index
    %c0_62 = arith.constant 0 : index
    %38 = vector.load %arg6[%c1_58, %c1_59, %c0_60, %c0_61, %c0_62] : memref<2x2x6x6x16xf32, #tpu.memory_space<vmem>>, vector<1x1x1x6x16xf32>
    %39 = vector.shape_cast %38 : vector<1x1x1x6x16xf32> to vector<6x16xf32>
    %40 = vector.shape_cast %0 : vector<6x16xf32> to vector<1x1x1x6x16xf32>
    tpu.vector_store %arg6[%c1_58, %c1_59, %c0_60, %c0_61, %c0_62], %40 {strides = array<i32>} : memref<2x2x6x6x16xf32, #tpu.memory_space<vmem>>, vector<1x1x1x6x16xf32>,
    %c1_63 = arith.constant 1 : index
    %c1_64 = arith.constant 1 : index
    %c5_65 = arith.constant 5 : index
    %c0_66 = arith.constant 0 : index
    %c0_67 = arith.constant 0 : index
    %41 = vector.load %arg6[%c1_63, %c1_64, %c5_65, %c0_66, %c0_67] : memref<2x2x6x6x16xf32, #tpu.memory_space<vmem>>, vector<1x1x1x6x16xf32>
    %42 = vector.shape_cast %41 : vector<1x1x1x6x16xf32> to vector<6x16xf32>
    %43 = vector.shape_cast %0 : vector<6x16xf32> to vector<1x1x1x6x16xf32>
    tpu.vector_store %arg6[%c1_63, %c1_64, %c5_65, %c0_66, %c0_67], %43 {strides = array<i32>} : memref<2x2x6x6x16xf32, #tpu.memory_space<vmem>>, vector<1x1x1x6x16xf32>,
    %c1_68 = arith.constant 1 : index
    %c1_69 = arith.constant 1 : index
    %c1_70 = arith.constant 1 : index
    %c0_71 = arith.constant 0 : index
    %c0_72 = arith.constant 0 : index
    %44 = vector.load %arg6[%c1_68, %c1_69, %c1_70, %c0_71, %c0_72] : memref<2x2x6x6x16xf32, #tpu.memory_space<vmem>>, vector<1x1x4x1x16xf32>
    %45 = vector.shape_cast %44 : vector<1x1x4x1x16xf32> to vector<4x16xf32>
    %46 = vector.shape_cast %1 : vector<4x16xf32> to vector<1x1x4x1x16xf32>
    tpu.vector_store %arg6[%c1_68, %c1_69, %c1_70, %c0_71, %c0_72], %46 {strides = array<i32>} : memref<2x2x6x6x16xf32, #tpu.memory_space<vmem>>, vector<1x1x4x1x16xf32>,
    %c1_73 = arith.constant 1 : index
    %c1_74 = arith.constant 1 : index
    %c1_75 = arith.constant 1 : index
    %c5_76 = arith.constant 5 : index
    %c0_77 = arith.constant 0 : index
    %47 = vector.load %arg6[%c1_73, %c1_74, %c1_75, %c5_76, %c0_77] : memref<2x2x6x6x16xf32, #tpu.memory_space<vmem>>, vector<1x1x4x1x16xf32>
    %48 = vector.shape_cast %47 : vector<1x1x4x1x16xf32> to vector<4x16xf32>
    %49 = vector.shape_cast %1 : vector<4x16xf32> to vector<1x1x4x1x16xf32>
    tpu.vector_store %arg6[%c1_73, %c1_74, %c1_75, %c5_76, %c0_77], %49 {strides = array<i32>} : memref<2x2x6x6x16xf32, #tpu.memory_space<vmem>>, vector<1x1x4x1x16xf32>,
    %50 = arith.index_cast %arg0 : i32 to index
    %c0_78 = arith.constant 0 : index
    %51 = vector.load %arg2[%50, %c0_78] : memref<2x8xf32, #tpu.memory_space<vmem>>, vector<1x8xf32>
    %cst_79 = arith.constant 0.000000e+00 : f32
    %52 = vector.broadcast %cst_79 : f32 to vector<1x8xf32>
    %53 = arith.cmpf oge, %51, %52 : vector<1x8xf32>
    %cst_80 = arith.constant 2.000000e-01 : f32
    %54 = vector.broadcast %cst_80 : f32 to vector<1x8xf32>
    %55 = arith.mulf %54, %51 : vector<1x8xf32>
    %56 = arith.select %53, %51, %55 : vector<1x8xi1>, vector<1x8xf32>
    %57 = vector.shape_cast %56 : vector<1x8xf32> to vector<1x1x8xf32>
    %58 = vector.shape_cast %57 : vector<1x1x8xf32> to vector<1x1x8xf32>
    %59 = vector.broadcast %58 : vector<1x1x8xf32> to vector<4x4x8xf32>
    %c0_81 = arith.constant 0 : index
    %c0_82 = arith.constant 0 : index
    %c0_83 = arith.constant 0 : index
    %c0_84 = arith.constant 0 : index
    %c0_85 = arith.constant 0 : index
    %60 = vector.load %arg1[%c0_81, %c0_82, %c0_83, %c0_84, %c0_85] : memref<1x4x2x4x16xf32, #tpu.memory_space<vmem>>, vector<1x4x1x4x8xf32>
    %61 = vector.shape_cast %60 : vector<1x4x1x4x8xf32> to vector<4x4x8xf32>
    %cst_86 = arith.constant 0.000000e+00 : f32
    %62 = vector.broadcast %cst_86 : f32 to vector<4x4x8xf32>
    %63 = arith.cmpf oge, %61, %62 : vector<4x4x8xf32>
    %cst_87 = arith.constant 2.000000e-01 : f32
    %64 = vector.broadcast %cst_87 : f32 to vector<4x4x8xf32>
    %65 = arith.mulf %64, %61 : vector<4x4x8xf32>
    %66 = arith.select %63, %61, %65 : vector<4x4x8xi1>, vector<4x4x8xf32>
    %c0_88 = arith.constant 0 : index
    %c0_89 = arith.constant 0 : index
    %c1_90 = arith.constant 1 : index
    %c1_91 = arith.constant 1 : index
    %c0_92 = arith.constant 0 : index
    %67 = vector.load %arg6[%c0_88, %c0_89, %c1_90, %c1_91, %c0_92] : memref<2x2x6x6x16xf32, #tpu.memory_space<vmem>>, vector<1x1x4x4x8xf32>
    %68 = vector.shape_cast %67 : vector<1x1x4x4x8xf32> to vector<4x4x8xf32>
    %69 = vector.shape_cast %66 : vector<4x4x8xf32> to vector<1x1x4x4x8xf32>
    tpu.vector_store %arg6[%c0_88, %c0_89, %c1_90, %c1_91, %c0_92], %69 {strides = array<i32>} : memref<2x2x6x6x16xf32, #tpu.memory_space<vmem>>, vector<1x1x4x4x8xf32>,
    %c0_93 = arith.constant 0 : index
    %c0_94 = arith.constant 0 : index
    %c1_95 = arith.constant 1 : index
    %c1_96 = arith.constant 1 : index
    %c8 = arith.constant 8 : index
    %70 = vector.load %arg6[%c0_93, %c0_94, %c1_95, %c1_96, %c8] : memref<2x2x6x6x16xf32, #tpu.memory_space<vmem>>, vector<1x1x4x4x8xf32>
    %71 = vector.shape_cast %70 : vector<1x1x4x4x8xf32> to vector<4x4x8xf32>
    %72 = vector.shape_cast %59 : vector<4x4x8xf32> to vector<1x1x4x4x8xf32>
    tpu.vector_store %arg6[%c0_93, %c0_94, %c1_95, %c1_96, %c8], %72 {strides = array<i32>} : memref<2x2x6x6x16xf32, #tpu.memory_space<vmem>>, vector<1x1x4x4x8xf32>,
    %c0_97 = arith.constant 0 : index
    %c0_98 = arith.constant 0 : index
    %c0_99 = arith.constant 0 : index
    %c0_100 = arith.constant 0 : index
    %c8_101 = arith.constant 8 : index
    %73 = vector.load %arg1[%c0_97, %c0_98, %c0_99, %c0_100, %c8_101] : memref<1x4x2x4x16xf32, #tpu.memory_space<vmem>>, vector<1x4x1x4x8xf32>
    %74 = vector.shape_cast %73 : vector<1x4x1x4x8xf32> to vector<4x4x8xf32>
    %cst_102 = arith.constant 0.000000e+00 : f32
    %75 = vector.broadcast %cst_102 : f32 to vector<4x4x8xf32>
    %76 = arith.cmpf oge, %74, %75 : vector<4x4x8xf32>
    %cst_103 = arith.constant 2.000000e-01 : f32
    %77 = vector.broadcast %cst_103 : f32 to vector<4x4x8xf32>
    %78 = arith.mulf %77, %74 : vector<4x4x8xf32>
    %79 = arith.select %76, %74, %78 : vector<4x4x8xi1>, vector<4x4x8xf32>
    %c0_104 = arith.constant 0 : index
    %c1_105 = arith.constant 1 : index
    %c1_106 = arith.constant 1 : index
    %c1_107 = arith.constant 1 : index
    %c0_108 = arith.constant 0 : index
    %80 = vector.load %arg6[%c0_104, %c1_105, %c1_106, %c1_107, %c0_108] : memref<2x2x6x6x16xf32, #tpu.memory_space<vmem>>, vector<1x1x4x4x8xf32>
    %81 = vector.shape_cast %80 : vector<1x1x4x4x8xf32> to vector<4x4x8xf32>
    %82 = vector.shape_cast %79 : vector<4x4x8xf32> to vector<1x1x4x4x8xf32>
    tpu.vector_store %arg6[%c0_104, %c1_105, %c1_106, %c1_107, %c0_108], %82 {strides = array<i32>} : memref<2x2x6x6x16xf32, #tpu.memory_space<vmem>>, vector<1x1x4x4x8xf32>,
    %c0_109 = arith.constant 0 : index
    %c1_110 = arith.constant 1 : index
    %c1_111 = arith.constant 1 : index
    %c1_112 = arith.constant 1 : index
    %c8_113 = arith.constant 8 : index
    %83 = vector.load %arg6[%c0_109, %c1_110, %c1_111, %c1_112, %c8_113] : memref<2x2x6x6x16xf32, #tpu.memory_space<vmem>>, vector<1x1x4x4x8xf32>
    %84 = vector.shape_cast %83 : vector<1x1x4x4x8xf32> to vector<4x4x8xf32>
    %85 = vector.shape_cast %59 : vector<4x4x8xf32> to vector<1x1x4x4x8xf32>
    tpu.vector_store %arg6[%c0_109, %c1_110, %c1_111, %c1_112, %c8_113], %85 {strides = array<i32>} : memref<2x2x6x6x16xf32, #tpu.memory_space<vmem>>, vector<1x1x4x4x8xf32>,
    %c0_114 = arith.constant 0 : index
    %c0_115 = arith.constant 0 : index
    %c1_116 = arith.constant 1 : index
    %c0_117 = arith.constant 0 : index
    %c0_118 = arith.constant 0 : index
    %86 = vector.load %arg1[%c0_114, %c0_115, %c1_116, %c0_117, %c0_118] : memref<1x4x2x4x16xf32, #tpu.memory_space<vmem>>, vector<1x4x1x4x8xf32>
    %87 = vector.shape_cast %86 : vector<1x4x1x4x8xf32> to vector<4x4x8xf32>
    %cst_119 = arith.constant 0.000000e+00 : f32
    %88 = vector.broadcast %cst_119 : f32 to vector<4x4x8xf32>
    %89 = arith.cmpf oge, %87, %88 : vector<4x4x8xf32>
    %cst_120 = arith.constant 2.000000e-01 : f32
    %90 = vector.broadcast %cst_120 : f32 to vector<4x4x8xf32>
    %91 = arith.mulf %90, %87 : vector<4x4x8xf32>
    %92 = arith.select %89, %87, %91 : vector<4x4x8xi1>, vector<4x4x8xf32>
    %c1_121 = arith.constant 1 : index
    %c0_122 = arith.constant 0 : index
    %c1_123 = arith.constant 1 : index
    %c1_124 = arith.constant 1 : index
    %c0_125 = arith.constant 0 : index
    %93 = vector.load %arg6[%c1_121, %c0_122, %c1_123, %c1_124, %c0_125] : memref<2x2x6x6x16xf32, #tpu.memory_space<vmem>>, vector<1x1x4x4x8xf32>
    %94 = vector.shape_cast %93 : vector<1x1x4x4x8xf32> to vector<4x4x8xf32>
    %95 = vector.shape_cast %92 : vector<4x4x8xf32> to vector<1x1x4x4x8xf32>
    tpu.vector_store %arg6[%c1_121, %c0_122, %c1_123, %c1_124, %c0_125], %95 {strides = array<i32>} : memref<2x2x6x6x16xf32, #tpu.memory_space<vmem>>, vector<1x1x4x4x8xf32>,
    %c1_126 = arith.constant 1 : index
    %c0_127 = arith.constant 0 : index
    %c1_128 = arith.constant 1 : index
    %c1_129 = arith.constant 1 : index
    %c8_130 = arith.constant 8 : index
    %96 = vector.load %arg6[%c1_126, %c0_127, %c1_128, %c1_129, %c8_130] : memref<2x2x6x6x16xf32, #tpu.memory_space<vmem>>, vector<1x1x4x4x8xf32>
    %97 = vector.shape_cast %96 : vector<1x1x4x4x8xf32> to vector<4x4x8xf32>
    %98 = vector.shape_cast %59 : vector<4x4x8xf32> to vector<1x1x4x4x8xf32>
    tpu.vector_store %arg6[%c1_126, %c0_127, %c1_128, %c1_129, %c8_130], %98 {strides = array<i32>} : memref<2x2x6x6x16xf32, #tpu.memory_space<vmem>>, vector<1x1x4x4x8xf32>,
    %c0_131 = arith.constant 0 : index
    %c0_132 = arith.constant 0 : index
    %c1_133 = arith.constant 1 : index
    %c0_134 = arith.constant 0 : index
    %c8_135 = arith.constant 8 : index
    %99 = vector.load %arg1[%c0_131, %c0_132, %c1_133, %c0_134, %c8_135] : memref<1x4x2x4x16xf32, #tpu.memory_space<vmem>>, vector<1x4x1x4x8xf32>
    %100 = vector.shape_cast %99 : vector<1x4x1x4x8xf32> to vector<4x4x8xf32>
    %cst_136 = arith.constant 0.000000e+00 : f32
    %101 = vector.broadcast %cst_136 : f32 to vector<4x4x8xf32>
    %102 = arith.cmpf oge, %100, %101 : vector<4x4x8xf32>
    %cst_137 = arith.constant 2.000000e-01 : f32
    %103 = vector.broadcast %cst_137 : f32 to vector<4x4x8xf32>
    %104 = arith.mulf %103, %100 : vector<4x4x8xf32>
    %105 = arith.select %102, %100, %104 : vector<4x4x8xi1>, vector<4x4x8xf32>
    %c1_138 = arith.constant 1 : index
    %c1_139 = arith.constant 1 : index
    %c1_140 = arith.constant 1 : index
    %c1_141 = arith.constant 1 : index
    %c0_142 = arith.constant 0 : index
    %106 = vector.load %arg6[%c1_138, %c1_139, %c1_140, %c1_141, %c0_142] : memref<2x2x6x6x16xf32, #tpu.memory_space<vmem>>, vector<1x1x4x4x8xf32>
    %107 = vector.shape_cast %106 : vector<1x1x4x4x8xf32> to vector<4x4x8xf32>
    %108 = vector.shape_cast %105 : vector<4x4x8xf32> to vector<1x1x4x4x8xf32>
    tpu.vector_store %arg6[%c1_138, %c1_139, %c1_140, %c1_141, %c0_142], %108 {strides = array<i32>} : memref<2x2x6x6x16xf32, #tpu.memory_space<vmem>>, vector<1x1x4x4x8xf32>,
    %c1_143 = arith.constant 1 : index
    %c1_144 = arith.constant 1 : index
    %c1_145 = arith.constant 1 : index
    %c1_146 = arith.constant 1 : index
    %c8_147 = arith.constant 8 : index
    %109 = vector.load %arg6[%c1_143, %c1_144, %c1_145, %c1_146, %c8_147] : memref<2x2x6x6x16xf32, #tpu.memory_space<vmem>>, vector<1x1x4x4x8xf32>
    %110 = vector.shape_cast %109 : vector<1x1x4x4x8xf32> to vector<4x4x8xf32>
    %111 = vector.shape_cast %59 : vector<4x4x8xf32> to vector<1x1x4x4x8xf32>
    tpu.vector_store %arg6[%c1_143, %c1_144, %c1_145, %c1_146, %c8_147], %111 {strides = array<i32>} : memref<2x2x6x6x16xf32, #tpu.memory_space<vmem>>, vector<1x1x4x4x8xf32>,
    %c1_148 = arith.constant 1 : index
    %c1_149 = arith.constant 1 : index
    %c0_150 = arith.constant 0 : index
    %c0_151 = arith.constant 0 : index
    %c0_152 = arith.constant 0 : index
    %112 = vector.load %arg6[%c1_148, %c1_149, %c0_150, %c0_151, %c0_152] : memref<2x2x6x6x16xf32, #tpu.memory_space<vmem>>, vector<1x1x4x4x16xf32>
    %113 = vector.shape_cast %112 : vector<1x1x4x4x16xf32> to vector<4x4x16xf32>
    %c0_153 = arith.constant 0 : index
    %c0_154 = arith.constant 0 : index
    %c0_155 = arith.constant 0 : index
    %114 = vector.load %arg7[%c0_153, %c0_154, %c0_155] : memref<4x4x256xf32, #tpu.memory_space<vmem>>, vector<4x4x16xf32>
    tpu.vector_store %arg7[%c0_153, %c0_154, %c0_155], %113 {strides = array<i32>} : memref<4x4x256xf32, #tpu.memory_space<vmem>>, vector<4x4x16xf32>,
    %c1_156 = arith.constant 1 : index
    %c0_157 = arith.constant 0 : index
    %c0_158 = arith.constant 0 : index
    %c1_159 = arith.constant 1 : index
    %c0_160 = arith.constant 0 : index
    %115 = vector.load %arg6[%c1_156, %c0_157, %c0_158, %c1_159, %c0_160] : memref<2x2x6x6x16xf32, #tpu.memory_space<vmem>>, vector<1x1x4x4x16xf32>
    %116 = vector.shape_cast %115 : vector<1x1x4x4x16xf32> to vector<4x4x16xf32>
    %c0_161 = arith.constant 0 : index
    %c0_162 = arith.constant 0 : index
    %c16 = arith.constant 16 : index
    %117 = vector.load %arg7[%c0_161, %c0_162, %c16] : memref<4x4x256xf32, #tpu.memory_space<vmem>>, vector<4x4x16xf32>
    tpu.vector_store %arg7[%c0_161, %c0_162, %c16], %116 {strides = array<i32>} : memref<4x4x256xf32, #tpu.memory_space<vmem>>, vector<4x4x16xf32>,
    %c1_163 = arith.constant 1 : index
    %c1_164 = arith.constant 1 : index
    %c0_165 = arith.constant 0 : index
    %c1_166 = arith.constant 1 : index
    %c0_167 = arith.constant 0 : index
    %118 = vector.load %arg6[%c1_163, %c1_164, %c0_165, %c1_166, %c0_167] : memref<2x2x6x6x16xf32, #tpu.memory_space<vmem>>, vector<1x1x4x4x16xf32>
    %119 = vector.shape_cast %118 : vector<1x1x4x4x16xf32> to vector<4x4x16xf32>
    %c0_168 = arith.constant 0 : index
    %c0_169 = arith.constant 0 : index
    %c32 = arith.constant 32 : index
    %120 = vector.load %arg7[%c0_168, %c0_169, %c32] : memref<4x4x256xf32, #tpu.memory_space<vmem>>, vector<4x4x16xf32>
    tpu.vector_store %arg7[%c0_168, %c0_169, %c32], %119 {strides = array<i32>} : memref<4x4x256xf32, #tpu.memory_space<vmem>>, vector<4x4x16xf32>,
    %c1_170 = arith.constant 1 : index
    %c0_171 = arith.constant 0 : index
    %c0_172 = arith.constant 0 : index
    %c2 = arith.constant 2 : index
    %c0_173 = arith.constant 0 : index
    %121 = vector.load %arg6[%c1_170, %c0_171, %c0_172, %c2, %c0_173] : memref<2x2x6x6x16xf32, #tpu.memory_space<vmem>>, vector<1x1x4x4x16xf32>
    %122 = vector.shape_cast %121 : vector<1x1x4x4x16xf32> to vector<4x4x16xf32>
    %c0_174 = arith.constant 0 : index
    %c0_175 = arith.constant 0 : index
    %c48 = arith.constant 48 : index
    %123 = vector.load %arg7[%c0_174, %c0_175, %c48] : memref<4x4x256xf32, #tpu.memory_space<vmem>>, vector<4x4x16xf32>
    tpu.vector_store %arg7[%c0_174, %c0_175, %c48], %122 {strides = array<i32>} : memref<4x4x256xf32, #tpu.memory_space<vmem>>, vector<4x4x16xf32>,
    %c0_176 = arith.constant 0 : index
    %c1_177 = arith.constant 1 : index
    %c1_178 = arith.constant 1 : index
    %c0_179 = arith.constant 0 : index
    %c0_180 = arith.constant 0 : index
    %124 = vector.load %arg6[%c0_176, %c1_177, %c1_178, %c0_179, %c0_180] : memref<2x2x6x6x16xf32, #tpu.memory_space<vmem>>, vector<1x1x4x4x16xf32>
    %125 = vector.shape_cast %124 : vector<1x1x4x4x16xf32> to vector<4x4x16xf32>
    %c0_181 = arith.constant 0 : index
    %c0_182 = arith.constant 0 : index
    %c64 = arith.constant 64 : index
    %126 = vector.load %arg7[%c0_181, %c0_182, %c64] : memref<4x4x256xf32, #tpu.memory_space<vmem>>, vector<4x4x16xf32>
    tpu.vector_store %arg7[%c0_181, %c0_182, %c64], %125 {strides = array<i32>} : memref<4x4x256xf32, #tpu.memory_space<vmem>>, vector<4x4x16xf32>,
    %c0_183 = arith.constant 0 : index
    %c0_184 = arith.constant 0 : index
    %c1_185 = arith.constant 1 : index
    %c1_186 = arith.constant 1 : index
    %c0_187 = arith.constant 0 : index
    %127 = vector.load %arg6[%c0_183, %c0_184, %c1_185, %c1_186, %c0_187] : memref<2x2x6x6x16xf32, #tpu.memory_space<vmem>>, vector<1x1x4x4x16xf32>
    %128 = vector.shape_cast %127 : vector<1x1x4x4x16xf32> to vector<4x4x16xf32>
    %c0_188 = arith.constant 0 : index
    %c0_189 = arith.constant 0 : index
    %c80 = arith.constant 80 : index
    %129 = vector.load %arg7[%c0_188, %c0_189, %c80] : memref<4x4x256xf32, #tpu.memory_space<vmem>>, vector<4x4x16xf32>
    tpu.vector_store %arg7[%c0_188, %c0_189, %c80], %128 {strides = array<i32>} : memref<4x4x256xf32, #tpu.memory_space<vmem>>, vector<4x4x16xf32>,
    %c0_190 = arith.constant 0 : index
    %c1_191 = arith.constant 1 : index
    %c1_192 = arith.constant 1 : index
    %c1_193 = arith.constant 1 : index
    %c0_194 = arith.constant 0 : index
    %130 = vector.load %arg6[%c0_190, %c1_191, %c1_192, %c1_193, %c0_194] : memref<2x2x6x6x16xf32, #tpu.memory_space<vmem>>, vector<1x1x4x4x16xf32>
    %131 = vector.shape_cast %130 : vector<1x1x4x4x16xf32> to vector<4x4x16xf32>
    %c0_195 = arith.constant 0 : index
    %c0_196 = arith.constant 0 : index
    %c96 = arith.constant 96 : index
    %132 = vector.load %arg7[%c0_195, %c0_196, %c96] : memref<4x4x256xf32, #tpu.memory_space<vmem>>, vector<4x4x16xf32>
    tpu.vector_store %arg7[%c0_195, %c0_196, %c96], %131 {strides = array<i32>} : memref<4x4x256xf32, #tpu.memory_space<vmem>>, vector<4x4x16xf32>,
    %c0_197 = arith.constant 0 : index
    %c0_198 = arith.constant 0 : index
    %c1_199 = arith.constant 1 : index
    %c2_200 = arith.constant 2 : index
    %c0_201 = arith.constant 0 : index
    %133 = vector.load %arg6[%c0_197, %c0_198, %c1_199, %c2_200, %c0_201] : memref<2x2x6x6x16xf32, #tpu.memory_space<vmem>>, vector<1x1x4x4x16xf32>
    %134 = vector.shape_cast %133 : vector<1x1x4x4x16xf32> to vector<4x4x16xf32>
    %c0_202 = arith.constant 0 : index
    %c0_203 = arith.constant 0 : index
    %c112 = arith.constant 112 : index
    %135 = vector.load %arg7[%c0_202, %c0_203, %c112] : memref<4x4x256xf32, #tpu.memory_space<vmem>>, vector<4x4x16xf32>
    tpu.vector_store %arg7[%c0_202, %c0_203, %c112], %134 {strides = array<i32>} : memref<4x4x256xf32, #tpu.memory_space<vmem>>, vector<4x4x16xf32>,
    %c1_204 = arith.constant 1 : index
    %c1_205 = arith.constant 1 : index
    %c1_206 = arith.constant 1 : index
    %c0_207 = arith.constant 0 : index
    %c0_208 = arith.constant 0 : index
    %136 = vector.load %arg6[%c1_204, %c1_205, %c1_206, %c0_207, %c0_208] : memref<2x2x6x6x16xf32, #tpu.memory_space<vmem>>, vector<1x1x4x4x16xf32>
    %137 = vector.shape_cast %136 : vector<1x1x4x4x16xf32> to vector<4x4x16xf32>
    %c0_209 = arith.constant 0 : index
    %c0_210 = arith.constant 0 : index
    %c128 = arith.constant 128 : index
    %138 = vector.load %arg7[%c0_209, %c0_210, %c128] : memref<4x4x256xf32, #tpu.memory_space<vmem>>, vector<4x4x16xf32>
    tpu.vector_store %arg7[%c0_209, %c0_210, %c128], %137 {strides = array<i32>} : memref<4x4x256xf32, #tpu.memory_space<vmem>>, vector<4x4x16xf32>,
    %c1_211 = arith.constant 1 : index
    %c0_212 = arith.constant 0 : index
    %c1_213 = arith.constant 1 : index
    %c1_214 = arith.constant 1 : index
    %c0_215 = arith.constant 0 : index
    %139 = vector.load %arg6[%c1_211, %c0_212, %c1_213, %c1_214, %c0_215] : memref<2x2x6x6x16xf32, #tpu.memory_space<vmem>>, vector<1x1x4x4x16xf32>
    %140 = vector.shape_cast %139 : vector<1x1x4x4x16xf32> to vector<4x4x16xf32>
    %c0_216 = arith.constant 0 : index
    %c0_217 = arith.constant 0 : index
    %c144 = arith.constant 144 : index
    %141 = vector.load %arg7[%c0_216, %c0_217, %c144] : memref<4x4x256xf32, #tpu.memory_space<vmem>>, vector<4x4x16xf32>
    tpu.vector_store %arg7[%c0_216, %c0_217, %c144], %140 {strides = array<i32>} : memref<4x4x256xf32, #tpu.memory_space<vmem>>, vector<4x4x16xf32>,
    %c1_218 = arith.constant 1 : index
    %c1_219 = arith.constant 1 : index
    %c1_220 = arith.constant 1 : index
    %c1_221 = arith.constant 1 : index
    %c0_222 = arith.constant 0 : index
    %142 = vector.load %arg6[%c1_218, %c1_219, %c1_220, %c1_221, %c0_222] : memref<2x2x6x6x16xf32, #tpu.memory_space<vmem>>, vector<1x1x4x4x16xf32>
    %143 = vector.shape_cast %142 : vector<1x1x4x4x16xf32> to vector<4x4x16xf32>
    %c0_223 = arith.constant 0 : index
    %c0_224 = arith.constant 0 : index
    %c160 = arith.constant 160 : index
    %144 = vector.load %arg7[%c0_223, %c0_224, %c160] : memref<4x4x256xf32, #tpu.memory_space<vmem>>, vector<4x4x16xf32>
    tpu.vector_store %arg7[%c0_223, %c0_224, %c160], %143 {strides = array<i32>} : memref<4x4x256xf32, #tpu.memory_space<vmem>>, vector<4x4x16xf32>,
    %c1_225 = arith.constant 1 : index
    %c0_226 = arith.constant 0 : index
    %c1_227 = arith.constant 1 : index
    %c2_228 = arith.constant 2 : index
    %c0_229 = arith.constant 0 : index
    %145 = vector.load %arg6[%c1_225, %c0_226, %c1_227, %c2_228, %c0_229] : memref<2x2x6x6x16xf32, #tpu.memory_space<vmem>>, vector<1x1x4x4x16xf32>
    %146 = vector.shape_cast %145 : vector<1x1x4x4x16xf32> to vector<4x4x16xf32>
    %c0_230 = arith.constant 0 : index
    %c0_231 = arith.constant 0 : index
    %c176 = arith.constant 176 : index
    %147 = vector.load %arg7[%c0_230, %c0_231, %c176] : memref<4x4x256xf32, #tpu.memory_space<vmem>>, vector<4x4x16xf32>
    tpu.vector_store %arg7[%c0_230, %c0_231, %c176], %146 {strides = array<i32>} : memref<4x4x256xf32, #tpu.memory_space<vmem>>, vector<4x4x16xf32>,
    %c0_232 = arith.constant 0 : index
    %c1_233 = arith.constant 1 : index
    %c2_234 = arith.constant 2 : index
    %c0_235 = arith.constant 0 : index
    %c0_236 = arith.constant 0 : index
    %148 = vector.load %arg6[%c0_232, %c1_233, %c2_234, %c0_235, %c0_236] : memref<2x2x6x6x16xf32, #tpu.memory_space<vmem>>, vector<1x1x4x4x16xf32>
    %149 = vector.shape_cast %148 : vector<1x1x4x4x16xf32> to vector<4x4x16xf32>
    %c0_237 = arith.constant 0 : index
    %c0_238 = arith.constant 0 : index
    %c192 = arith.constant 192 : index
    %150 = vector.load %arg7[%c0_237, %c0_238, %c192] : memref<4x4x256xf32, #tpu.memory_space<vmem>>, vector<4x4x16xf32>
    tpu.vector_store %arg7[%c0_237, %c0_238, %c192], %149 {strides = array<i32>} : memref<4x4x256xf32, #tpu.memory_space<vmem>>, vector<4x4x16xf32>,
    %c0_239 = arith.constant 0 : index
    %c0_240 = arith.constant 0 : index
    %c2_241 = arith.constant 2 : index
    %c1_242 = arith.constant 1 : index
    %c0_243 = arith.constant 0 : index
    %151 = vector.load %arg6[%c0_239, %c0_240, %c2_241, %c1_242, %c0_243] : memref<2x2x6x6x16xf32, #tpu.memory_space<vmem>>, vector<1x1x4x4x16xf32>
    %152 = vector.shape_cast %151 : vector<1x1x4x4x16xf32> to vector<4x4x16xf32>
    %c0_244 = arith.constant 0 : index
    %c0_245 = arith.constant 0 : index
    %c208 = arith.constant 208 : index
    %153 = vector.load %arg7[%c0_244, %c0_245, %c208] : memref<4x4x256xf32, #tpu.memory_space<vmem>>, vector<4x4x16xf32>
    tpu.vector_store %arg7[%c0_244, %c0_245, %c208], %152 {strides = array<i32>} : memref<4x4x256xf32, #tpu.memory_space<vmem>>, vector<4x4x16xf32>,
    %c0_246 = arith.constant 0 : index
    %c1_247 = arith.constant 1 : index
    %c2_248 = arith.constant 2 : index
    %c1_249 = arith.constant 1 : index
    %c0_250 = arith.constant 0 : index
    %154 = vector.load %arg6[%c0_246, %c1_247, %c2_248, %c1_249, %c0_250] : memref<2x2x6x6x16xf32, #tpu.memory_space<vmem>>, vector<1x1x4x4x16xf32>
    %155 = vector.shape_cast %154 : vector<1x1x4x4x16xf32> to vector<4x4x16xf32>
    %c0_251 = arith.constant 0 : index
    %c0_252 = arith.constant 0 : index
    %c224 = arith.constant 224 : index
    %156 = vector.load %arg7[%c0_251, %c0_252, %c224] : memref<4x4x256xf32, #tpu.memory_space<vmem>>, vector<4x4x16xf32>
    tpu.vector_store %arg7[%c0_251, %c0_252, %c224], %155 {strides = array<i32>} : memref<4x4x256xf32, #tpu.memory_space<vmem>>, vector<4x4x16xf32>,
    %c0_253 = arith.constant 0 : index
    %c0_254 = arith.constant 0 : index
    %c2_255 = arith.constant 2 : index
    %c2_256 = arith.constant 2 : index
    %c0_257 = arith.constant 0 : index
    %157 = vector.load %arg6[%c0_253, %c0_254, %c2_255, %c2_256, %c0_257] : memref<2x2x6x6x16xf32, #tpu.memory_space<vmem>>, vector<1x1x4x4x16xf32>
    %158 = vector.shape_cast %157 : vector<1x1x4x4x16xf32> to vector<4x4x16xf32>
    %c0_258 = arith.constant 0 : index
    %c0_259 = arith.constant 0 : index
    %c240 = arith.constant 240 : index
    %159 = vector.load %arg7[%c0_258, %c0_259, %c240] : memref<4x4x256xf32, #tpu.memory_space<vmem>>, vector<4x4x16xf32>
    tpu.vector_store %arg7[%c0_258, %c0_259, %c240], %158 {strides = array<i32>} : memref<4x4x256xf32, #tpu.memory_space<vmem>>, vector<4x4x16xf32>,
    %c0_260 = arith.constant 0 : index
    %c0_261 = arith.constant 0 : index
    %c0_262 = arith.constant 0 : index
    %160 = vector.load %arg7[%c0_260, %c0_261, %c0_262] : memref<4x4x256xf32, #tpu.memory_space<vmem>>, vector<4x4x256xf32>
    %161 = vector.shape_cast %160 : vector<4x4x256xf32> to vector<16x256xf32>
    %c0_263 = arith.constant 0 : index
    %c0_264 = arith.constant 0 : index
    %162 = vector.load %arg3[%c0_263, %c0_264] : memref<256x16xf32, #tpu.memory_space<vmem>>, vector<256x16xf32>
    %cst_265 = arith.constant dense<0.000000e+00> : vector<16x16xf32>
    %163 = tpu.matmul %161, %162, %cst_265 {dimension_numbers = #tpu.dot_dimension_numbers<[1], [0], [0], [1], [0, 0, 1, 1], [], []>} : vector<16x256xf32>, vector<256x16xf32>, vector<16x16xf32> -> vector<16x16xf32>
    %c0_266 = arith.constant 0 : index
    %c0_267 = arith.constant 0 : index
    %164 = vector.load %arg4[%c0_266, %c0_267] : memref<1x16xf32, #tpu.memory_space<vmem>>, vector<1x16xf32>
    %165 = vector.broadcast %164 : vector<1x16xf32> to vector<16x16xf32>
    %166 = arith.addf %163, %165 : vector<16x16xf32>
    %c0_268 = arith.constant 0 : index
    %c0_269 = arith.constant 0 : index
    %c0_270 = arith.constant 0 : index
    %167 = vector.load %arg5[%c0_268, %c0_269, %c0_270] : memref<1x16x16xf32, #tpu.memory_space<vmem>>, vector<1x16x16xf32>
    %168 = vector.shape_cast %167 : vector<1x16x16xf32> to vector<16x16xf32>
    %169 = vector.shape_cast %166 : vector<16x16xf32> to vector<1x16x16xf32>
    tpu.vector_store %arg5[%c0_268, %c0_269, %c0_270], %169 {strides = array<i32>} : memref<1x16x16xf32, #tpu.memory_space<vmem>>, vector<1x16x16xf32>,
    return
  }
  func.func @transform_0(%arg0: i32) -> (i32, i32, i32, i32, i32) {
    %c0_i32 = arith.constant 0 : i32
    %c0_i32_0 = arith.constant 0 : i32
    %c0_i32_1 = arith.constant 0 : i32
    %c0_i32_2 = arith.constant 0 : i32
    %c0_i32_3 = arith.constant 0 : i32
    return %arg0, %c0_i32, %c0_i32_0, %c0_i32_1, %c0_i32_2 : i32, i32, i32, i32, i32
  }
  func.func @transform_1(%arg0: i32) -> (i32, i32) {
    %c0_i32 = arith.constant 0 : i32
    %c0_i32_0 = arith.constant 0 : i32
    %c0_i32_1 = arith.constant 0 : i32
    return %c0_i32, %c0_i32_0 : i32, i32
  }
  func.func @transform_2(%arg0: i32) -> (i32, i32) {
    %c0_i32 = arith.constant 0 : i32
    %c0_i32_0 = arith.constant 0 : i32
    %c0_i32_1 = arith.constant 0 : i32
    return %c0_i32, %c0_i32_0 : i32, i32
  }
  func.func @transform_3(%arg0: i32) -> (i32, i32) {
    %c0_i32 = arith.constant 0 : i32
    %c0_i32_0 = arith.constant 0 : i32
    %c0_i32_1 = arith.constant 0 : i32
    return %c0_i32, %c0_i32_0 : i32, i32
  }
  func.func @transform_4(%arg0: i32) -> (i32, i32, i32) {
    %c0_i32 = arith.constant 0 : i32
    %c0_i32_0 = arith.constant 0 : i32
    %c0_i32_1 = arith.constant 0 : i32
    return %arg0, %c0_i32, %c0_i32_0 : i32, i32, i32
  }
}

module attributes {stable_mosaic.version = 11 : i64} {
  func.func @_up_kernel(%arg0: i32, %arg1: memref<1x8x8x8xf32, #tpu.memory_space<vmem>>, %arg2: memref<1x8x8x8xf32, #tpu.memory_space<vmem>>, %arg3: memref<144x12xf32, #tpu.memory_space<vmem>>, %arg4: memref<1x12xf32, #tpu.memory_space<vmem>>, %arg5: memref<1x64x12xf32, #tpu.memory_space<vmem>>, %arg6: memref<10x10x16xf32, #tpu.memory_space<vmem>>, %arg7: memref<8x8x144xf32, #tpu.memory_space<vmem>>) attributes {dimension_semantics = [#tpu.dimension_semantics<parallel>], iteration_bounds = array<i64: 2>, scalar_prefetch = 0 : i64, scratch_operands = 2 : i64, tpu.core_type = #tpu.core_type<tc>, window_params = [{transform_indices = @transform_0, window_bounds = array<i64: 1, 8, 8, 8>}, {transform_indices = @transform_1, window_bounds = array<i64: 1, 8, 8, 8>}, {pipeline_mode = #tpu.pipeline_mode<synchronous>, transform_indices = @transform_2, window_bounds = array<i64: 144, 12>}, {pipeline_mode = #tpu.pipeline_mode<synchronous>, transform_indices = @transform_3, window_bounds = array<i64: 1, 12>}, {transform_indices = @transform_4, window_bounds = array<i64: 1, 64, 12>}]} {
    %cst = arith.constant 0.000000e+00 : f32
    %0 = vector.broadcast %cst : f32 to vector<10x16xf32>
    %cst_0 = arith.constant 0.000000e+00 : f32
    %1 = vector.broadcast %cst_0 : f32 to vector<8x16xf32>
    %c0 = arith.constant 0 : index
    %c0_1 = arith.constant 0 : index
    %c0_2 = arith.constant 0 : index
    %2 = vector.load %arg6[%c0, %c0_1, %c0_2] : memref<10x10x16xf32, #tpu.memory_space<vmem>>, vector<1x10x16xf32>
    %3 = vector.shape_cast %2 : vector<1x10x16xf32> to vector<10x16xf32>
    %4 = vector.shape_cast %0 : vector<10x16xf32> to vector<1x10x16xf32>
    tpu.vector_store %arg6[%c0, %c0_1, %c0_2], %4 {strides = array<i32>} : memref<10x10x16xf32, #tpu.memory_space<vmem>>, vector<1x10x16xf32>,
    %c9 = arith.constant 9 : index
    %c0_3 = arith.constant 0 : index
    %c0_4 = arith.constant 0 : index
    %5 = vector.load %arg6[%c9, %c0_3, %c0_4] : memref<10x10x16xf32, #tpu.memory_space<vmem>>, vector<1x10x16xf32>
    %6 = vector.shape_cast %5 : vector<1x10x16xf32> to vector<10x16xf32>
    %7 = vector.shape_cast %0 : vector<10x16xf32> to vector<1x10x16xf32>
    tpu.vector_store %arg6[%c9, %c0_3, %c0_4], %7 {strides = array<i32>} : memref<10x10x16xf32, #tpu.memory_space<vmem>>, vector<1x10x16xf32>,
    %c1 = arith.constant 1 : index
    %c0_5 = arith.constant 0 : index
    %c0_6 = arith.constant 0 : index
    %8 = vector.load %arg6[%c1, %c0_5, %c0_6] : memref<10x10x16xf32, #tpu.memory_space<vmem>>, vector<8x1x16xf32>
    %9 = vector.shape_cast %8 : vector<8x1x16xf32> to vector<8x16xf32>
    %10 = vector.shape_cast %1 : vector<8x16xf32> to vector<8x1x16xf32>
    tpu.vector_store %arg6[%c1, %c0_5, %c0_6], %10 {strides = array<i32>} : memref<10x10x16xf32, #tpu.memory_space<vmem>>, vector<8x1x16xf32>,
    %c1_7 = arith.constant 1 : index
    %c9_8 = arith.constant 9 : index
    %c0_9 = arith.constant 0 : index
    %11 = vector.load %arg6[%c1_7, %c9_8, %c0_9] : memref<10x10x16xf32, #tpu.memory_space<vmem>>, vector<8x1x16xf32>
    %12 = vector.shape_cast %11 : vector<8x1x16xf32> to vector<8x16xf32>
    %13 = vector.shape_cast %1 : vector<8x16xf32> to vector<8x1x16xf32>
    tpu.vector_store %arg6[%c1_7, %c9_8, %c0_9], %13 {strides = array<i32>} : memref<10x10x16xf32, #tpu.memory_space<vmem>>, vector<8x1x16xf32>,
    %c0_10 = arith.constant 0 : index
    %c0_11 = arith.constant 0 : index
    %c0_12 = arith.constant 0 : index
    %c0_13 = arith.constant 0 : index
    %14 = vector.load %arg1[%c0_10, %c0_11, %c0_12, %c0_13] : memref<1x8x8x8xf32, #tpu.memory_space<vmem>>, vector<1x8x8x8xf32>
    %15 = vector.shape_cast %14 : vector<1x8x8x8xf32> to vector<8x8x8xf32>
    %cst_14 = arith.constant 0.000000e+00 : f32
    %16 = vector.broadcast %cst_14 : f32 to vector<8x8x8xf32>
    %17 = arith.maximumf %15, %16 : vector<8x8x8xf32>
    %c1_15 = arith.constant 1 : index
    %c1_16 = arith.constant 1 : index
    %c0_17 = arith.constant 0 : index
    %18 = vector.load %arg6[%c1_15, %c1_16, %c0_17] : memref<10x10x16xf32, #tpu.memory_space<vmem>>, vector<8x8x8xf32>
    tpu.vector_store %arg6[%c1_15, %c1_16, %c0_17], %17 {strides = array<i32>} : memref<10x10x16xf32, #tpu.memory_space<vmem>>, vector<8x8x8xf32>,
    %c0_18 = arith.constant 0 : index
    %c0_19 = arith.constant 0 : index
    %c0_20 = arith.constant 0 : index
    %c0_21 = arith.constant 0 : index
    %19 = vector.load %arg2[%c0_18, %c0_19, %c0_20, %c0_21] : memref<1x8x8x8xf32, #tpu.memory_space<vmem>>, vector<1x8x8x8xf32>
    %20 = vector.shape_cast %19 : vector<1x8x8x8xf32> to vector<8x8x8xf32>
    %cst_22 = arith.constant 0.000000e+00 : f32
    %21 = vector.broadcast %cst_22 : f32 to vector<8x8x8xf32>
    %22 = arith.maximumf %20, %21 : vector<8x8x8xf32>
    %c1_23 = arith.constant 1 : index
    %c1_24 = arith.constant 1 : index
    %c8 = arith.constant 8 : index
    %23 = vector.load %arg6[%c1_23, %c1_24, %c8] : memref<10x10x16xf32, #tpu.memory_space<vmem>>, vector<8x8x8xf32>
    tpu.vector_store %arg6[%c1_23, %c1_24, %c8], %22 {strides = array<i32>} : memref<10x10x16xf32, #tpu.memory_space<vmem>>, vector<8x8x8xf32>,
    %c0_25 = arith.constant 0 : index
    %c0_26 = arith.constant 0 : index
    %c0_27 = arith.constant 0 : index
    %24 = vector.load %arg6[%c0_25, %c0_26, %c0_27] : memref<10x10x16xf32, #tpu.memory_space<vmem>>, vector<8x8x16xf32>
    %c0_28 = arith.constant 0 : index
    %c0_29 = arith.constant 0 : index
    %c0_30 = arith.constant 0 : index
    %25 = vector.load %arg7[%c0_28, %c0_29, %c0_30] : memref<8x8x144xf32, #tpu.memory_space<vmem>>, vector<8x8x16xf32>
    tpu.vector_store %arg7[%c0_28, %c0_29, %c0_30], %24 {strides = array<i32>} : memref<8x8x144xf32, #tpu.memory_space<vmem>>, vector<8x8x16xf32>,
    %c0_31 = arith.constant 0 : index
    %c1_32 = arith.constant 1 : index
    %c0_33 = arith.constant 0 : index
    %26 = vector.load %arg6[%c0_31, %c1_32, %c0_33] : memref<10x10x16xf32, #tpu.memory_space<vmem>>, vector<8x8x16xf32>
    %c0_34 = arith.constant 0 : index
    %c0_35 = arith.constant 0 : index
    %c16 = arith.constant 16 : index
    %27 = vector.load %arg7[%c0_34, %c0_35, %c16] : memref<8x8x144xf32, #tpu.memory_space<vmem>>, vector<8x8x16xf32>
    tpu.vector_store %arg7[%c0_34, %c0_35, %c16], %26 {strides = array<i32>} : memref<8x8x144xf32, #tpu.memory_space<vmem>>, vector<8x8x16xf32>,
    %c0_36 = arith.constant 0 : index
    %c2 = arith.constant 2 : index
    %c0_37 = arith.constant 0 : index
    %28 = vector.load %arg6[%c0_36, %c2, %c0_37] : memref<10x10x16xf32, #tpu.memory_space<vmem>>, vector<8x8x16xf32>
    %c0_38 = arith.constant 0 : index
    %c0_39 = arith.constant 0 : index
    %c32 = arith.constant 32 : index
    %29 = vector.load %arg7[%c0_38, %c0_39, %c32] : memref<8x8x144xf32, #tpu.memory_space<vmem>>, vector<8x8x16xf32>
    tpu.vector_store %arg7[%c0_38, %c0_39, %c32], %28 {strides = array<i32>} : memref<8x8x144xf32, #tpu.memory_space<vmem>>, vector<8x8x16xf32>,
    %c1_40 = arith.constant 1 : index
    %c0_41 = arith.constant 0 : index
    %c0_42 = arith.constant 0 : index
    %30 = vector.load %arg6[%c1_40, %c0_41, %c0_42] : memref<10x10x16xf32, #tpu.memory_space<vmem>>, vector<8x8x16xf32>
    %c0_43 = arith.constant 0 : index
    %c0_44 = arith.constant 0 : index
    %c48 = arith.constant 48 : index
    %31 = vector.load %arg7[%c0_43, %c0_44, %c48] : memref<8x8x144xf32, #tpu.memory_space<vmem>>, vector<8x8x16xf32>
    tpu.vector_store %arg7[%c0_43, %c0_44, %c48], %30 {strides = array<i32>} : memref<8x8x144xf32, #tpu.memory_space<vmem>>, vector<8x8x16xf32>,
    %c1_45 = arith.constant 1 : index
    %c1_46 = arith.constant 1 : index
    %c0_47 = arith.constant 0 : index
    %32 = vector.load %arg6[%c1_45, %c1_46, %c0_47] : memref<10x10x16xf32, #tpu.memory_space<vmem>>, vector<8x8x16xf32>
    %c0_48 = arith.constant 0 : index
    %c0_49 = arith.constant 0 : index
    %c64 = arith.constant 64 : index
    %33 = vector.load %arg7[%c0_48, %c0_49, %c64] : memref<8x8x144xf32, #tpu.memory_space<vmem>>, vector<8x8x16xf32>
    tpu.vector_store %arg7[%c0_48, %c0_49, %c64], %32 {strides = array<i32>} : memref<8x8x144xf32, #tpu.memory_space<vmem>>, vector<8x8x16xf32>,
    %c1_50 = arith.constant 1 : index
    %c2_51 = arith.constant 2 : index
    %c0_52 = arith.constant 0 : index
    %34 = vector.load %arg6[%c1_50, %c2_51, %c0_52] : memref<10x10x16xf32, #tpu.memory_space<vmem>>, vector<8x8x16xf32>
    %c0_53 = arith.constant 0 : index
    %c0_54 = arith.constant 0 : index
    %c80 = arith.constant 80 : index
    %35 = vector.load %arg7[%c0_53, %c0_54, %c80] : memref<8x8x144xf32, #tpu.memory_space<vmem>>, vector<8x8x16xf32>
    tpu.vector_store %arg7[%c0_53, %c0_54, %c80], %34 {strides = array<i32>} : memref<8x8x144xf32, #tpu.memory_space<vmem>>, vector<8x8x16xf32>,
    %c2_55 = arith.constant 2 : index
    %c0_56 = arith.constant 0 : index
    %c0_57 = arith.constant 0 : index
    %36 = vector.load %arg6[%c2_55, %c0_56, %c0_57] : memref<10x10x16xf32, #tpu.memory_space<vmem>>, vector<8x8x16xf32>
    %c0_58 = arith.constant 0 : index
    %c0_59 = arith.constant 0 : index
    %c96 = arith.constant 96 : index
    %37 = vector.load %arg7[%c0_58, %c0_59, %c96] : memref<8x8x144xf32, #tpu.memory_space<vmem>>, vector<8x8x16xf32>
    tpu.vector_store %arg7[%c0_58, %c0_59, %c96], %36 {strides = array<i32>} : memref<8x8x144xf32, #tpu.memory_space<vmem>>, vector<8x8x16xf32>,
    %c2_60 = arith.constant 2 : index
    %c1_61 = arith.constant 1 : index
    %c0_62 = arith.constant 0 : index
    %38 = vector.load %arg6[%c2_60, %c1_61, %c0_62] : memref<10x10x16xf32, #tpu.memory_space<vmem>>, vector<8x8x16xf32>
    %c0_63 = arith.constant 0 : index
    %c0_64 = arith.constant 0 : index
    %c112 = arith.constant 112 : index
    %39 = vector.load %arg7[%c0_63, %c0_64, %c112] : memref<8x8x144xf32, #tpu.memory_space<vmem>>, vector<8x8x16xf32>
    tpu.vector_store %arg7[%c0_63, %c0_64, %c112], %38 {strides = array<i32>} : memref<8x8x144xf32, #tpu.memory_space<vmem>>, vector<8x8x16xf32>,
    %c2_65 = arith.constant 2 : index
    %c2_66 = arith.constant 2 : index
    %c0_67 = arith.constant 0 : index
    %40 = vector.load %arg6[%c2_65, %c2_66, %c0_67] : memref<10x10x16xf32, #tpu.memory_space<vmem>>, vector<8x8x16xf32>
    %c0_68 = arith.constant 0 : index
    %c0_69 = arith.constant 0 : index
    %c128 = arith.constant 128 : index
    %41 = vector.load %arg7[%c0_68, %c0_69, %c128] : memref<8x8x144xf32, #tpu.memory_space<vmem>>, vector<8x8x16xf32>
    tpu.vector_store %arg7[%c0_68, %c0_69, %c128], %40 {strides = array<i32>} : memref<8x8x144xf32, #tpu.memory_space<vmem>>, vector<8x8x16xf32>,
    %c0_70 = arith.constant 0 : index
    %c0_71 = arith.constant 0 : index
    %c0_72 = arith.constant 0 : index
    %42 = vector.load %arg7[%c0_70, %c0_71, %c0_72] : memref<8x8x144xf32, #tpu.memory_space<vmem>>, vector<8x8x144xf32>
    %43 = vector.shape_cast %42 : vector<8x8x144xf32> to vector<64x144xf32>
    %c0_73 = arith.constant 0 : index
    %c0_74 = arith.constant 0 : index
    %44 = vector.load %arg3[%c0_73, %c0_74] : memref<144x12xf32, #tpu.memory_space<vmem>>, vector<144x12xf32>
    %cst_75 = arith.constant dense<0.000000e+00> : vector<64x12xf32>
    %45 = tpu.matmul %43, %44, %cst_75 {dimension_numbers = #tpu.dot_dimension_numbers<[1], [0], [0], [1], [0, 0, 1, 1], [], []>} : vector<64x144xf32>, vector<144x12xf32>, vector<64x12xf32> -> vector<64x12xf32>
    %c0_76 = arith.constant 0 : index
    %c0_77 = arith.constant 0 : index
    %46 = vector.load %arg4[%c0_76, %c0_77] : memref<1x12xf32, #tpu.memory_space<vmem>>, vector<1x12xf32>
    %47 = vector.broadcast %46 : vector<1x12xf32> to vector<64x12xf32>
    %48 = arith.addf %45, %47 : vector<64x12xf32>
    %49 = math.tanh %48 : vector<64x12xf32>
    %c0_78 = arith.constant 0 : index
    %c0_79 = arith.constant 0 : index
    %c0_80 = arith.constant 0 : index
    %50 = vector.load %arg5[%c0_78, %c0_79, %c0_80] : memref<1x64x12xf32, #tpu.memory_space<vmem>>, vector<1x64x12xf32>
    %51 = vector.shape_cast %50 : vector<1x64x12xf32> to vector<64x12xf32>
    %52 = vector.shape_cast %49 : vector<64x12xf32> to vector<1x64x12xf32>
    tpu.vector_store %arg5[%c0_78, %c0_79, %c0_80], %52 {strides = array<i32>} : memref<1x64x12xf32, #tpu.memory_space<vmem>>, vector<1x64x12xf32>,
    return
  }
  func.func @transform_0(%arg0: i32) -> (i32, i32, i32, i32) {
    %c0_i32 = arith.constant 0 : i32
    %c0_i32_0 = arith.constant 0 : i32
    %c0_i32_1 = arith.constant 0 : i32
    %c0_i32_2 = arith.constant 0 : i32
    return %arg0, %c0_i32, %c0_i32_0, %c0_i32_1 : i32, i32, i32, i32
  }
  func.func @transform_1(%arg0: i32) -> (i32, i32, i32, i32) {
    %c0_i32 = arith.constant 0 : i32
    %c0_i32_0 = arith.constant 0 : i32
    %c0_i32_1 = arith.constant 0 : i32
    %c0_i32_2 = arith.constant 0 : i32
    return %arg0, %c0_i32, %c0_i32_0, %c0_i32_1 : i32, i32, i32, i32
  }
  func.func @transform_2(%arg0: i32) -> (i32, i32) {
    %c0_i32 = arith.constant 0 : i32
    %c0_i32_0 = arith.constant 0 : i32
    %c0_i32_1 = arith.constant 0 : i32
    return %c0_i32, %c0_i32_0 : i32, i32
  }
  func.func @transform_3(%arg0: i32) -> (i32, i32) {
    %c0_i32 = arith.constant 0 : i32
    %c0_i32_0 = arith.constant 0 : i32
    %c0_i32_1 = arith.constant 0 : i32
    return %c0_i32, %c0_i32_0 : i32, i32
  }
  func.func @transform_4(%arg0: i32) -> (i32, i32, i32) {
    %c0_i32 = arith.constant 0 : i32
    %c0_i32_0 = arith.constant 0 : i32
    %c0_i32_1 = arith.constant 0 : i32
    return %arg0, %c0_i32, %c0_i32_0 : i32, i32, i32
  }
}

</mosaic_0001>

<llo_original>
// kernel: unet_apply.6
$region0: #{unet_apply.6}
  #allocation0 [shape = 'u32[]', space=smem, size = 0x4, offset = 0x4, fixed_abs, tag = 'smem constant byte address 0x4 - core index']
  #allocation1 [shape = 'u32[144,128]{1,0:T(1,128)}', space=vmem, size = 0x12000, scoped, tag = 'internal scratch']
  #allocation2 [shape = 'f32[6,6,16]{2,1,0:T(8,128)}', space=vmem, size = 0x6000, scoped, tag = 'scratch operand']
  #allocation3 [shape = 'f32[4,4,144]{2,1,0:T(4,128)}', space=vmem, size = 0x4000, scoped, tag = 'scratch operand']
  %s0 = inlined_call_operand.vmem [shape: f32[2,4,4,16], index: 0, kind: input, shape index: {}]
  %s1 = inlined_call_operand.vmem [shape: f32[144,32], index: 1, kind: input, shape index: {}]
  %s2 = inlined_call_operand.vmem [shape: f32[1,32], index: 2, kind: input, shape index: {}]
  %s3 = inlined_call_operand.vmem [shape: f32[2,16,32], index: 3, kind: output, shape index: {}]
  %s4 = sld [smem:[#allocation0]]
  $region45: #{unet_apply.6} parent=0
    _
  %s6 = ssub.s32 1, %s4
  %s7 = scalar_select 0, %s6, %s4
  loop: start=0, step=1, limit=4
  $region2: #{unet_apply.6} parent=0 // loop_pre_header
    _
  $region3: #{unet_apply.6} parent=0 // loop_header
    %s9 = sphi 0, %s13
    %p10 = scmp.ge.s32.totalorder %s9, 4
    %s19 = sphi 0, %s21
    %s22 = sphi 0, %s19
    %s23 = sphi 0, %s22
    %s39 = sphi 0, %s23
    %s43 = sphi 0, %s43
    %s45 = sphi 0, %s43
    %s46 = sphi 0, %s45
    %s60 = sphi 0, %s46
    %s64 = sphi 0, %s64
    %s66 = sphi 0, %s64
    %s67 = sphi 0, %s66
    %s81 = sphi 0, %s67
    %s87 = sphi 0, %s89
    %s90 = sphi 0, %s87
    %s91 = sphi 0, %s90
    %s107 = sphi 0, %s91
  $region4: #{unet_apply.6} parent=0 // loop_header_branch
    %12 = sbr.rel (%p10) target = $region8
  $region5: #{unet_apply.6} parent=0 // loop_body
    %s14 = ssub.s32 %s9, 1
    %s15 = ssub.s32 %s9, 2
    %s16 = sadd.s32 %s9, 1
    %s17 = ssub.s32 %s9, %s16
    %p18 = scmp.eq.s32.totalorder %s17, 0
    %s20 = sadd.s32 %s19, 1
    %s21 = scalar_select %p18, %s19, %s20
    %p24 = pneg %p18
    %p25 = scmp.eq.s32.totalorder %s9, 1
    %p26 = por %p24, %p25
    %p27 = scmp.ne.s32.totalorder %s19, %s22
    %p28 = scmp.eq.s32.totalorder %s9, 0
    %p29 = por %p27, %p28
    %p30 = scmp.ne.s32.totalorder %s19, %s22
    %p31 = scmp.eq.s32.totalorder %s14, 1
    %p32 = por %p30, %p31
    %p33 = scmp.ne.s32.totalorder %s22, %s23
    %p34 = scmp.eq.s32.totalorder %s14, 0
    %p35 = por %p33, %p34
    %p36 = scmp.ne.s32.totalorder %s22, %s23
    %p37 = scmp.eq.s32.totalorder %s15, 1
    %p38 = por %p36, %p37
    %p40 = scmp.ne.s32.totalorder %s23, %s39
    %p41 = scmp.eq.s32.totalorder %s15, 0
    %p42 = por %p40, %p41
    %s44 = sadd.s32 %s43, 1
    %p47 = scmp.eq.s32.totalorder %s9, 1
    %p48 = scmp.ne.s32.totalorder %s43, %s45
    %p49 = scmp.eq.s32.totalorder %s9, 0
    %p50 = por %p48, %p49
    %p51 = scmp.ne.s32.totalorder %s43, %s45
    %p52 = scmp.eq.s32.totalorder %s14, 1
    %p53 = por %p51, %p52
    %p54 = scmp.ne.s32.totalorder %s45, %s46
    %p55 = scmp.eq.s32.totalorder %s14, 0
    %p56 = por %p54, %p55
    %p57 = scmp.ne.s32.totalorder %s45, %s46
    %p58 = scmp.eq.s32.totalorder %s15, 1
    %p59 = por %p57, %p58
    %p61 = scmp.ne.s32.totalorder %s46, %s60
    %p62 = scmp.eq.s32.totalorder %s15, 0
    %p63 = por %p61, %p62
    %s65 = sadd.s32 %s64, 1
    %p68 = scmp.eq.s32.totalorder %s9, 1
    %p69 = scmp.ne.s32.totalorder %s64, %s66
    %p70 = scmp.eq.s32.totalorder %s9, 0
    %p71 = por %p69, %p70
    %p72 = scmp.ne.s32.totalorder %s64, %s66
    %p73 = scmp.eq.s32.totalorder %s14, 1
    %p74 = por %p72, %p73
    %p75 = scmp.ne.s32.totalorder %s66, %s67
    %p76 = scmp.eq.s32.totalorder %s14, 0
    %p77 = por %p75, %p76
    %p78 = scmp.ne.s32.totalorder %s66, %s67
    %p79 = scmp.eq.s32.totalorder %s15, 1
    %p80 = por %p78, %p79
    %p82 = scmp.ne.s32.totalorder %s67, %s81
    %p83 = scmp.eq.s32.totalorder %s15, 0
    %p84 = por %p82, %p83
    %s85 = ssub.s32 %s9, %s16
    %p86 = scmp.eq.s32.totalorder %s85, 0
    %s88 = sadd.s32 %s87, 1
    %s89 = scalar_select %p86, %s87, %s88
    %p92 = pneg %p86
    %p93 = scmp.eq.s32.totalorder %s9, 1
    %p94 = por %p92, %p93
    %p95 = scmp.ne.s32.totalorder %s87, %s90
    %p96 = scmp.eq.s32.totalorder %s9, 0
    %p97 = por %p95, %p96
    %p98 = scmp.ne.s32.totalorder %s87, %s90
    %p99 = scmp.eq.s32.totalorder %s14, 1
    %p100 = por %p98, %p99
    %p101 = scmp.ne.s32.totalorder %s90, %s91
    %p102 = scmp.eq.s32.totalorder %s14, 0
    %p103 = por %p101, %p102
    %p104 = scmp.ne.s32.totalorder %s90, %s91
    %p105 = scmp.eq.s32.totalorder %s15, 1
    %p106 = por %p104, %p105
    %p108 = scmp.ne.s32.totalorder %s91, %s107
    %p109 = scmp.eq.s32.totalorder %s15, 0
    %p110 = por %p108, %p109
    %p111 = scmp.le.s32.totalorder 1, %s9
    %p112 = scmp.lt.s32.totalorder %s9, 3
    %p113 = pnand %p111, %p112
    %p114 = pneg %p113
    // Predicated region
    $region9: #{unet_apply.6} parent=5 // pred_check
      _
    $region10: #{unet_apply.6} parent=5 // pred_check_branch
      %116 = sbr.rel (%p113) target = $region12
    $region11: #{unet_apply.6} parent=5 // pred_region
      %s117 = ssub.s32 %s9, 1
      // Predicated region
      $region13: #{unet_apply.6} parent=11 // pred_check
        %p118 = pneg %p56
      $region14: #{unet_apply.6} parent=11 // pred_check_branch
        %120 = sbr.rel (%p118) target = $region16
      $region15: #{unet_apply.6} parent=11 // pred_region
        _
      $region16: #{unet_apply.6} parent=11 // pred_fallthru
        _
      // Predicated region
      $region17: #{unet_apply.6} parent=11 // pred_check
        %p121 = pneg %p77
      $region18: #{unet_apply.6} parent=11 // pred_check_branch
        %123 = sbr.rel (%p121) target = $region20
      $region19: #{unet_apply.6} parent=11 // pred_region
        _
      $region20: #{unet_apply.6} parent=11 // pred_fallthru
        _
    $region12: #{unet_apply.6} parent=5 // pred_fallthru
      _
    %p124 = scmp.lt.s32.totalorder %s9, 2
    // Predicated region
    $region21: #{unet_apply.6} parent=5 // pred_check
      %p125 = pneg %p124
    $region22: #{unet_apply.6} parent=5 // pred_check_branch
      %127 = sbr.rel (%p125) target = $region24
    $region23: #{unet_apply.6} parent=5 // pred_region
      // Predicated region
      $region25: #{unet_apply.6} parent=23 // pred_check
        %p128 = pneg %p29
      $region26: #{unet_apply.6} parent=23 // pred_check_branch
        %130 = sbr.rel (%p128) target = $region28
      $region27: #{unet_apply.6} parent=23 // pred_region
        %p131 = scmp.lt.s32.totalorder %s9, 1
        %s132 = scalar_select %p131, %s9, 1
        %s133 = smul.addr %s132, 4
        %s134 = smul.addr %s133, 4
        %s135 = scalar_lea.vmem %s0, %s134
      $region28: #{unet_apply.6} parent=23 // pred_fallthru
        _
    $region24: #{unet_apply.6} parent=5 // pred_fallthru
      _
    %p136 = scmp.le.s32.totalorder 1, %s9
    %p137 = scmp.lt.s32.totalorder %s9, 3
    %p138 = pnand %p136, %p137
    %p139 = pneg %p138
    // Predicated region
    $region29: #{unet_apply.6} parent=5 // pred_check
      _
    $region30: #{unet_apply.6} parent=5 // pred_check_branch
      %141 = sbr.rel (%p138) target = $region32
    $region31: #{unet_apply.6} parent=5 // pred_region
      %s142 = ssub.s32 %s9, 1
      %p143 = scmp.lt.s32.totalorder %s14, 1
      %s144 = scalar_select %p143, %s14, 1
      %s145 = smul.addr %s144, 4
      %s146 = smul.addr %s145, 4
      %s147 = scalar_lea.vmem %s0, %s146
      %p148 = pneg %p35
      %p149 = pneg %p32
      %p150 = pneg %p56
      %p151 = pneg %p53
      %p152 = pneg %p77
      %p153 = pneg %p74
      %p154 = pneg %p103
      %p155 = pneg %p100
      %p156 = scmp.lt.s32.totalorder %s14, 1
      %s157 = scalar_select %p156, %s14, 1
      %s158 = smul.addr %s157, 2
      %s159 = smul.addr %s158, 8
      %s160 = scalar_lea.vmem %s3, %s159
      %p161 = scmp.lt.s32.totalorder %s14, 1
      %s162 = scalar_select %p161, %s14, 1
      %s163 = smul.addr %s162, 4
      %s164 = smul.addr %s163, 4
      %s165 = scalar_lea.vmem %s0, %s164
      %p166 = scmp.lt.s32.totalorder %s14, 1
      %s167 = scalar_select %p166, %s14, 1
      %s168 = smul.addr %s167, 2
      %s169 = smul.addr %s168, 8
      %s170 = scalar_lea.vmem %s3, %s169
      %vm171 = vcmask 128000
      %172 = vst.msk [vmem:[#allocation2] sm:$0x3f] %vm171, 0.0
      %s173 = scalar_lea.vmem [#allocation2], 40
      %174 = vst.msk [vmem:[%s173] sm:$0x3f] %vm171, 0.0
      %s175 = scalar_lea.vmem [#allocation2], 8
      %vm176 = vcmask 122880
      %177 = vst.msk [vmem:[%s175] sm:$0x1] %vm176, 0.0
      %178 = vst.msk [vmem:[%s175 + $0x8] sm:$0x1] %vm176, 0.0
      %179 = vst.msk [vmem:[%s175 + $0x10] sm:$0x1] %vm176, 0.0
      %180 = vst.msk [vmem:[%s175 + $0x18] sm:$0x1] %vm176, 0.0
      %181 = vst.msk [vmem:[%s175 + $0x5] sm:$0x1] %vm176, 0.0
      %182 = vst.msk [vmem:[%s175 + $0xd] sm:$0x1] %vm176, 0.0
      %183 = vst.msk [vmem:[%s175 + $0x15] sm:$0x1] %vm176, 0.0
      %184 = vst.msk [vmem:[%s175 + $0x1d] sm:$0x1] %vm176, 0.0
      %v185 = vld [vmem:[%s165] sm:$0xf]
      %v186 = vld [vmem:[%s165 + $0x4] sm:$0xf]
      %v187 = vld [vmem:[%s165 + $0x8] sm:$0xf]
      %v188 = vld [vmem:[%s165 + $0xc] sm:$0xf]
      %v189 = vmax.f32 %v185, 0.0
      %v190 = vmax.f32 %v186, 0.0
      %v191 = vmax.f32 %v187, 0.0
      %v192 = vmax.f32 %v188, 0.0
      %vm193 = vcmask 125952
      %194 = vst.msk [vmem:[%s175 + $0x1] sm:$0xf] %vm193, %v189
      %195 = vst.msk [vmem:[%s175 + $0x9] sm:$0xf] %vm193, %v190
      %196 = vst.msk [vmem:[%s175 + $0x11] sm:$0xf] %vm193, %v191
      %197 = vst.msk [vmem:[%s175 + $0x19] sm:$0xf] %vm193, %v192
      %v198 = vld [vmem:[#allocation2] sm:$0xf]
      %v199 = vld [vmem:[#allocation2 + $0x8] sm:$0xf]
      %v200 = vld [vmem:[#allocation2 + $0x10] sm:$0xf]
      %v201 = vld [vmem:[#allocation2 + $0x18] sm:$0xf]
      %202 = vst.msk [vmem:[#allocation3] sm:$0xf] %vm193, %v198
      %203 = vst.msk [vmem:[#allocation3 + $0x8] sm:$0xf] %vm193, %v199
      %204 = vst.msk [vmem:[#allocation3 + $0x10] sm:$0xf] %vm193, %v200
      %205 = vst.msk [vmem:[#allocation3 + $0x18] sm:$0xf] %vm193, %v201
      %v206 = vld [vmem:[#allocation2 + $0x1] sm:$0xf]
      %v207 = vld [vmem:[#allocation2 + $0x9] sm:$0xf]
      %v208 = vld [vmem:[#allocation2 + $0x11] sm:$0xf]
      %v209 = vld [vmem:[#allocation2 + $0x19] sm:$0xf]
      %214 = vrot.lane.b32.xlu0 %v206, 16
      %v215 = vpop.permute.xlu0 %214
      %216 = vrot.lane.b32.xlu0 %v207, 16
      %v217 = vpop.permute.xlu0 %216
      %218 = vrot.lane.b32.xlu0 %v208, 16
      %v219 = vpop.permute.xlu0 %218
      %220 = vrot.lane.b32.xlu0 %v209, 16
      %v221 = vpop.permute.xlu0 %220
      %vm226 = vcmask 257152
      %227 = vst.msk [vmem:[#allocation3] sm:$0xf] %vm226, %v215
      %228 = vst.msk [vmem:[#allocation3 + $0x8] sm:$0xf] %vm226, %v217
      %229 = vst.msk [vmem:[#allocation3 + $0x10] sm:$0xf] %vm226, %v219
      %230 = vst.msk [vmem:[#allocation3 + $0x18] sm:$0xf] %vm226, %v221
      %v231 = vld [vmem:[#allocation2 + $0x2] sm:$0xf]
      %v232 = vld [vmem:[#allocation2 + $0xa] sm:$0xf]
      %v233 = vld [vmem:[#allocation2 + $0x12] sm:$0xf]
      %v234 = vld [vmem:[#allocation2 + $0x1a] sm:$0xf]
      %239 = vrot.lane.b32.xlu0 %v231, 32
      %v240 = vpop.permute.xlu0 %239
      %241 = vrot.lane.b32.xlu0 %v232, 32
      %v242 = vpop.permute.xlu0 %241
      %243 = vrot.lane.b32.xlu0 %v233, 32
      %v244 = vpop.permute.xlu0 %243
      %245 = vrot.lane.b32.xlu0 %v234, 32
      %v246 = vpop.permute.xlu0 %245
      %vm251 = vcmask 388352
      %252 = vst.msk [vmem:[#allocation3] sm:$0xf] %vm251, %v240
      %253 = vst.msk [vmem:[#allocation3 + $0x8] sm:$0xf] %vm251, %v242
      %254 = vst.msk [vmem:[#allocation3 + $0x10] sm:$0xf] %vm251, %v244
      %255 = vst.msk [vmem:[#allocation3 + $0x18] sm:$0xf] %vm251, %v246
      %v256 = vld [vmem:[%s175] sm:$0xf]
      %v257 = vld [vmem:[%s175 + $0x8] sm:$0xf]
      %v258 = vld [vmem:[%s175 + $0x10] sm:$0xf]
      %v259 = vld [vmem:[%s175 + $0x18] sm:$0xf]
      %264 = vrot.lane.b32.xlu0 %v256, 48
      %v265 = vpop.permute.xlu0 %264
      %266 = vrot.lane.b32.xlu0 %v257, 48
      %v267 = vpop.permute.xlu0 %266
      %268 = vrot.lane.b32.xlu0 %v258, 48
      %v269 = vpop.permute.xlu0 %268
      %270 = vrot.lane.b32.xlu0 %v259, 48
      %v271 = vpop.permute.xlu0 %270
      %vm276 = vcmask 519552
      %277 = vst.msk [vmem:[#allocation3] sm:$0xf] %vm276, %v265
      %278 = vst.msk [vmem:[#allocation3 + $0x8] sm:$0xf] %vm276, %v267
      %279 = vst.msk [vmem:[#allocation3 + $0x10] sm:$0xf] %vm276, %v269
      %280 = vst.msk [vmem:[#allocation3 + $0x18] sm:$0xf] %vm276, %v271
      %v281 = vld [vmem:[%s175 + $0x1] sm:$0xf]
      %v282 = vld [vmem:[%s175 + $0x9] sm:$0xf]
      %v283 = vld [vmem:[%s175 + $0x11] sm:$0xf]
      %v284 = vld [vmem:[%s175 + $0x19] sm:$0xf]
      %289 = vrot.lane.b32.xlu0 %v281, 64
      %v290 = vpop.permute.xlu0 %289
      %291 = vrot.lane.b32.xlu0 %v282, 64
      %v292 = vpop.permute.xlu0 %291
      %293 = vrot.lane.b32.xlu0 %v283, 64
      %v294 = vpop.permute.xlu0 %293
      %295 = vrot.lane.b32.xlu0 %v284, 64
      %v296 = vpop.permute.xlu0 %295
      %vm301 = vcmask 650752
      %302 = vst.msk [vmem:[#allocation3] sm:$0xf] %vm301, %v290
      %303 = vst.msk [vmem:[#allocation3 + $0x8] sm:$0xf] %vm301, %v292
      %304 = vst.msk [vmem:[#allocation3 + $0x10] sm:$0xf] %vm301, %v294
      %305 = vst.msk [vmem:[#allocation3 + $0x18] sm:$0xf] %vm301, %v296
      %v306 = vld [vmem:[%s175 + $0x2] sm:$0xf]
      %v307 = vld [vmem:[%s175 + $0xa] sm:$0xf]
      %v308 = vld [vmem:[%s175 + $0x12] sm:$0xf]
      %v309 = vld [vmem:[%s175 + $0x1a] sm:$0xf]
      %314 = vrot.lane.b32.xlu0 %v306, 80
      %v315 = vpop.permute.xlu0 %314
      %316 = vrot.lane.b32.xlu0 %v307, 80
      %v317 = vpop.permute.xlu0 %316
      %318 = vrot.lane.b32.xlu0 %v308, 80
      %v319 = vpop.permute.xlu0 %318
      %320 = vrot.lane.b32.xlu0 %v309, 80
      %v321 = vpop.permute.xlu0 %320
      %vm326 = vcmask 781952
      %327 = vst.msk [vmem:[#allocation3] sm:$0xf] %vm326, %v315
      %328 = vst.msk [vmem:[#allocation3 + $0x8] sm:$0xf] %vm326, %v317
      %329 = vst.msk [vmem:[#allocation3 + $0x10] sm:$0xf] %vm326, %v319
      %330 = vst.msk [vmem:[#allocation3 + $0x18] sm:$0xf] %vm326, %v321
      %s331 = scalar_lea.vmem [#allocation2], 16
      %v332 = vld [vmem:[%s331] sm:$0xf]
      %v333 = vld [vmem:[%s331 + $0x8] sm:$0xf]
      %v334 = vld [vmem:[%s331 + $0x10] sm:$0xf]
      %v335 = vld [vmem:[%s331 + $0x18] sm:$0xf]
      %340 = vrot.lane.b32.xlu0 %v332, 96
      %v341 = vpop.permute.xlu0 %340
      %342 = vrot.lane.b32.xlu0 %v333, 96
      %v343 = vpop.permute.xlu0 %342
      %344 = vrot.lane.b32.xlu0 %v334, 96
      %v345 = vpop.permute.xlu0 %344
      %346 = vrot.lane.b32.xlu0 %v335, 96
      %v347 = vpop.permute.xlu0 %346
      %vm352 = vcmask 913152
      %353 = vst.msk [vmem:[#allocation3] sm:$0xf] %vm352, %v341
      %354 = vst.msk [vmem:[#allocation3 + $0x8] sm:$0xf] %vm352, %v343
      %355 = vst.msk [vmem:[#allocation3 + $0x10] sm:$0xf] %vm352, %v345
      %356 = vst.msk [vmem:[#allocation3 + $0x18] sm:$0xf] %vm352, %v347
      %v357 = vld [vmem:[%s331 + $0x1] sm:$0xf]
      %v358 = vld [vmem:[%s331 + $0x9] sm:$0xf]
      %v359 = vld [vmem:[%s331 + $0x11] sm:$0xf]
      %v360 = vld [vmem:[%s331 + $0x19] sm:$0xf]
      %365 = vrot.lane.b32.xlu0 %v357, 112
      %v366 = vpop.permute.xlu0 %365
      %367 = vrot.lane.b32.xlu0 %v358, 112
      %v368 = vpop.permute.xlu0 %367
      %369 = vrot.lane.b32.xlu0 %v359, 112
      %v370 = vpop.permute.xlu0 %369
      %371 = vrot.lane.b32.xlu0 %v360, 112
      %v372 = vpop.permute.xlu0 %371
      %vm377 = vcmask 1044352
      %378 = vst.msk [vmem:[#allocation3] sm:$0xf] %vm377, %v366
      %379 = vst.msk [vmem:[#allocation3 + $0x8] sm:$0xf] %vm377, %v368
      %380 = vst.msk [vmem:[#allocation3 + $0x10] sm:$0xf] %vm377, %v370
      %381 = vst.msk [vmem:[#allocation3 + $0x18] sm:$0xf] %vm377, %v372
      %v382 = vld [vmem:[%s331 + $0x2] sm:$0xf]
      %v383 = vld [vmem:[%s331 + $0xa] sm:$0xf]
      %v384 = vld [vmem:[%s331 + $0x12] sm:$0xf]
      %v385 = vld [vmem:[%s331 + $0x1a] sm:$0xf]
      %386 = vst.msk [vmem:[#allocation3 + $0x4] sm:$0xf] %vm193, %v382
      %387 = vst.msk [vmem:[#allocation3 + $0xc] sm:$0xf] %vm193, %v383
      %388 = vst.msk [vmem:[#allocation3 + $0x14] sm:$0xf] %vm193, %v384
      %389 = vst.msk [vmem:[#allocation3 + $0x1c] sm:$0xf] %vm193, %v385
      %v390 = vld [vmem:[#allocation3] sm:$0xff]
      %v391 = vld [vmem:[#allocation3 + $0x8] sm:$0xff]
      %v392 = vld [vmem:[#allocation3 + $0x10] sm:$0xff]
      %v393 = vld [vmem:[#allocation3 + $0x18] sm:$0xff]
      %v394 = vld [vmem:[%s1] sm:$0xff]
      %v395 = vld [vmem:[%s1 + $0x8] sm:$0xff]
      %v396 = vld [vmem:[%s1 + $0x10] sm:$0xff]
      %v397 = vld [vmem:[%s1 + $0x18] sm:$0xff]
      %v398 = vld [vmem:[%s1 + $0x20] sm:$0xff]
      %v399 = vld [vmem:[%s1 + $0x28] sm:$0xff]
      %v400 = vld [vmem:[%s1 + $0x30] sm:$0xff]
      %v401 = vld [vmem:[%s1 + $0x38] sm:$0xff]
      %v402 = vld [vmem:[%s1 + $0x40] sm:$0xff]
      %v403 = vld [vmem:[%s1 + $0x48] sm:$0xff]
      %v404 = vld [vmem:[%s1 + $0x50] sm:$0xff]
      %v405 = vld [vmem:[%s1 + $0x58] sm:$0xff]
      %v406 = vld [vmem:[%s1 + $0x60] sm:$0xff]
      %v407 = vld [vmem:[%s1 + $0x68] sm:$0xff]
      %v408 = vld [vmem:[%s1 + $0x70] sm:$0xff]
      %v409 = vld [vmem:[%s1 + $0x78] sm:$0xff]
      %v410 = vld [vmem:[%s1 + $0x80] sm:$0xff]
      %v411 = vld [vmem:[%s1 + $0x88] sm:$0xff]
      %v412 = vld [vmem:[%s2] sm:$0x1]
      %v414 = vlaneseq
      %v415 = vshrl.u32 %v414, 7
      %v416 = vsub.s32 0, %v415
      %v417 = vrot.slane %v412, %v416
      %v423 = vcombine.low %v390, %v391
      %v424 = vcombine.high %v390, %v391
      %v425 = vcombine.low %v392, %v393
      %v426 = vcombine.high %v392, %v393
      %vm429 = vcmask 130048
      %v430 = vsel %vm429, %v424, 0
      %v432 = vsel %vm429, %v426, 0
      %434 = vmatprep.subr.mxu0 0.0
      %435 = vmatpush1.msra.mxu0 %v409
      %436 = vmatprep.subr.mxu0 0.0
      %437 = vmatpush1.msra.mxu0 %v408
      %438 = vmatprep.subr.mxu0 0.0
      %439 = vmatpush1.msra.mxu0 %v407
      %440 = vmatprep.subr.mxu0 0.0
      %441 = vmatpush1.msra.mxu0 %v406
      %442 = vmatprep.subr.mxu0 0.0
      %443 = vmatpush1.msra.mxu0 %v405
      %444 = vmatprep.subr.mxu0 0.0
      %445 = vmatpush1.msra.mxu0 %v404
      %446 = vmatprep.subr.mxu0 0.0
      %447 = vmatpush1.msra.mxu0 %v403
      %448 = vmatprep.subr.mxu0 0.0
      %449 = vmatpush1.msra.mxu0 %v402
      %450 = vmatprep.subr.mxu0 0.0
      %451 = vmatpush1.msra.mxu0 %v401
      %452 = vmatprep.subr.mxu0 0.0
      %453 = vmatpush1.msra.mxu0 %v400
      %454 = vmatprep.subr.mxu0 0.0
      %455 = vmatpush1.msra.mxu0 %v399
      %456 = vmatprep.subr.mxu0 0.0
      %457 = vmatpush1.msra.mxu0 %v398
      %458 = vmatprep.subr.mxu0 0.0
      %459 = vmatpush1.msra.mxu0 %v397
      %460 = vmatprep.subr.mxu0 0.0
      %461 = vmatpush1.msra.mxu0 %v396
      %462 = vmatprep.subr.mxu0 0.0
      %463 = vmatpush1.msra.mxu0 %v395
      %464 = vmatprep.subr.mxu0 0.0
      %465 = vmatpush1.msra.mxu0 %v394
      %466 = vmatprep.subr.mxu0 0.0
      %467 = vmatpush2.msra.mxu0 0.0
      %468 = vmatprep.subr.mxu0 0.0
      %469 = vmatpush2.msra.mxu0 0.0
      %470 = vmatprep.subr.mxu0 0.0
      %471 = vmatpush2.msra.mxu0 0.0
      %472 = vmatprep.subr.mxu0 0.0
      %473 = vmatpush2.msra.mxu0 0.0
      %474 = vmatprep.subr.mxu0 0.0
      %475 = vmatpush2.msra.mxu0 0.0
      %476 = vmatprep.subr.mxu0 0.0
      %477 = vmatpush2.msra.mxu0 0.0
      %478 = vmatprep.subr.mxu0 0.0
      %479 = vmatpush2.msra.mxu0 0.0
      %480 = vmatprep.subr.mxu0 0.0
      %481 = vmatpush2.msra.mxu0 0.0
      %482 = vmatprep.subr.mxu0 0.0
      %483 = vmatpush2.msra.mxu0 0.0
      %484 = vmatprep.subr.mxu0 0.0
      %485 = vmatpush2.msra.mxu0 0.0
      %486 = vmatprep.subr.mxu0 0.0
      %487 = vmatpush2.msra.mxu0 0.0
      %488 = vmatprep.subr.mxu0 0.0
      %489 = vmatpush2.msra.mxu0 0.0
      %490 = vmatprep.subr.mxu0 0.0
      %491 = vmatpush2.msra.mxu0 0.0
      %492 = vmatprep.subr.mxu0 0.0
      %493 = vmatpush2.msra.mxu0 0.0
      %494 = vmatprep.subr.mxu0 0.0
      %495 = vmatpush2.msra.mxu0 %v411
      %496 = vmatprep.subr.mxu0 0.0
      %497 = vmatpush2.msra.mxu0 %v410
      %498 = vmatprep.mubr.f32.mxu0 %v430
      %499 = vmatmul.mubr.f32.gmra.mxu0 %v423
      %v500 = vpop.f32.mrf.mxu0
      %v501 = vadd.f32 %v417, %v500
      %v502 = vpop.f32.mrf.mxu0
      %503 = vmatprep.mubr.f32.mxu0 %v432
      %504 = vmatmul.mubr.f32.gmra.mxu0 %v425
      %v505 = vpop.f32.mrf.mxu0
      %v506 = vadd.f32 %v417, %v505
      %v507 = vpop.f32.mrf.mxu0
      %508 = vdwg.mxu0
      %vm509 = vcmask 261120
      %510 = vst.msk [vmem:[%s170] sm:$0xff] %vm509, %v501
      %511 = vst.msk [vmem:[%s170 + $0x8] sm:$0xff] %vm509, %v506
      %p512 = scmp.lt.s32.totalorder %s14, 1
      %s513 = scalar_select %p512, %s14, 1
      %s514 = smul.addr %s513, 2
      %s515 = smul.addr %s514, 8
      %s516 = scalar_lea.vmem %s3, %s515
      // Predicated region
      $region33: #{unet_apply.6} parent=31 // pred_check
        %p517 = pneg %p100
      $region34: #{unet_apply.6} parent=31 // pred_check_branch
        %519 = sbr.rel (%p517) target = $region36
      $region35: #{unet_apply.6} parent=31 // pred_region
        _
      $region36: #{unet_apply.6} parent=31 // pred_fallthru
        _
    $region32: #{unet_apply.6} parent=5 // pred_fallthru
      _
    %p520 = scmp.le.s32.totalorder 2, %s9
    // Predicated region
    $region37: #{unet_apply.6} parent=5 // pred_check
      %p521 = pneg %p520
    $region38: #{unet_apply.6} parent=5 // pred_check_branch
      %523 = sbr.rel (%p521) target = $region40
    $region39: #{unet_apply.6} parent=5 // pred_region
      %s524 = ssub.s32 %s9, 2
      // Predicated region
      $region41: #{unet_apply.6} parent=39 // pred_check
        %p525 = pneg %p106
      $region42: #{unet_apply.6} parent=39 // pred_check_branch
        %527 = sbr.rel (%p525) target = $region44
      $region43: #{unet_apply.6} parent=39 // pred_region
        %p528 = scmp.lt.s32.totalorder %s15, 1
        %s529 = scalar_select %p528, %s15, 1
        %s530 = smul.addr %s529, 2
        %s531 = smul.addr %s530, 8
        %s532 = scalar_lea.vmem %s3, %s531
      $region44: #{unet_apply.6} parent=39 // pred_fallthru
        _
    $region40: #{unet_apply.6} parent=5 // pred_fallthru
      _
  $region6: #{unet_apply.6} parent=0 // loop_footer
    %s13 = sadd.s32 1, %s9
  $region7: #{unet_apply.6} parent=0 // loop_footer_branch
    %8 = sbr.rel target = $region3
  $region8: #{unet_apply.6} parent=0 // loop_exit
    _

// kernel: unet_apply.5
$region0: #{unet_apply.5}
  #allocation0 [shape = 'u32[]', space=smem, size = 0x4, offset = 0x4, fixed_abs, tag = 'smem constant byte address 0x4 - core index']
  #allocation1 [shape = 'u32[144,128]{1,0:T(1,128)}', space=vmem, size = 0x12000, scoped, tag = 'internal scratch']
  #allocation2 [shape = 'f32[2,2,6,6,16]{4,3,2,1,0:T(8,128)}', space=vmem, size = 0x18000, scoped, tag = 'scratch operand']
  #allocation3 [shape = 'f32[4,4,256]{2,1,0:T(4,128)}', space=vmem, size = 0x4000, scoped, tag = 'scratch operand']
  %s0 = inlined_call_operand.vmem [shape: f32[2,4,2,4,16], index: 0, kind: input, shape index: {}]
  %s1 = inlined_call_operand.vmem [shape: f32[2,8], index: 1, kind: input, shape index: {}]
  %s2 = inlined_call_operand.vmem [shape: f32[256,16], index: 2, kind: input, shape index: {}]
  %s3 = inlined_call_operand.vmem [shape: f32[1,16], index: 3, kind: input, shape index: {}]
  %s4 = inlined_call_operand.vmem [shape: f32[2,16,16], index: 4, kind: output, shape index: {}]
  %s5 = sld [smem:[#allocation0]]
  $region49: #{unet_apply.5} parent=0
    _
  %s7 = ssub.s32 1, %s5
  %s8 = scalar_select 0, %s7, %s5
  loop: start=0, step=1, limit=4
  $region2: #{unet_apply.5} parent=0 // loop_pre_header
    _
  $region3: #{unet_apply.5} parent=0 // loop_header
    %s10 = sphi 0, %s14
    %p11 = scmp.ge.s32.totalorder %s10, 4
    %s20 = sphi 0, %s22
    %s23 = sphi 0, %s20
    %s24 = sphi 0, %s23
    %s40 = sphi 0, %s24
    %s44 = sphi 0, %s44
    %s46 = sphi 0, %s44
    %s47 = sphi 0, %s46
    %s61 = sphi 0, %s47
    %s65 = sphi 0, %s65
    %s67 = sphi 0, %s65
    %s68 = sphi 0, %s67
    %s82 = sphi 0, %s68
    %s86 = sphi 0, %s86
    %s88 = sphi 0, %s86
    %s89 = sphi 0, %s88
    %s103 = sphi 0, %s89
    %s109 = sphi 0, %s111
    %s112 = sphi 0, %s109
    %s113 = sphi 0, %s112
    %s129 = sphi 0, %s113
  $region4: #{unet_apply.5} parent=0 // loop_header_branch
    %13 = sbr.rel (%p11) target = $region8
  $region5: #{unet_apply.5} parent=0 // loop_body
    %s15 = ssub.s32 %s10, 1
    %s16 = ssub.s32 %s10, 2
    %s17 = sadd.s32 %s10, 1
    %s18 = ssub.s32 %s10, %s17
    %p19 = scmp.eq.s32.totalorder %s18, 0
    %s21 = sadd.s32 %s20, 1
    %s22 = scalar_select %p19, %s20, %s21
    %p25 = pneg %p19
    %p26 = scmp.eq.s32.totalorder %s10, 1
    %p27 = por %p25, %p26
    %p28 = scmp.ne.s32.totalorder %s20, %s23
    %p29 = scmp.eq.s32.totalorder %s10, 0
    %p30 = por %p28, %p29
    %p31 = scmp.ne.s32.totalorder %s20, %s23
    %p32 = scmp.eq.s32.totalorder %s15, 1
    %p33 = por %p31, %p32
    %p34 = scmp.ne.s32.totalorder %s23, %s24
    %p35 = scmp.eq.s32.totalorder %s15, 0
    %p36 = por %p34, %p35
    %p37 = scmp.ne.s32.totalorder %s23, %s24
    %p38 = scmp.eq.s32.totalorder %s16, 1
    %p39 = por %p37, %p38
    %p41 = scmp.ne.s32.totalorder %s24, %s40
    %p42 = scmp.eq.s32.totalorder %s16, 0
    %p43 = por %p41, %p42
    %s45 = sadd.s32 %s44, 1
    %p48 = scmp.eq.s32.totalorder %s10, 1
    %p49 = scmp.ne.s32.totalorder %s44, %s46
    %p50 = scmp.eq.s32.totalorder %s10, 0
    %p51 = por %p49, %p50
    %p52 = scmp.ne.s32.totalorder %s44, %s46
    %p53 = scmp.eq.s32.totalorder %s15, 1
    %p54 = por %p52, %p53
    %p55 = scmp.ne.s32.totalorder %s46, %s47
    %p56 = scmp.eq.s32.totalorder %s15, 0
    %p57 = por %p55, %p56
    %p58 = scmp.ne.s32.totalorder %s46, %s47
    %p59 = scmp.eq.s32.totalorder %s16, 1
    %p60 = por %p58, %p59
    %p62 = scmp.ne.s32.totalorder %s47, %s61
    %p63 = scmp.eq.s32.totalorder %s16, 0
    %p64 = por %p62, %p63
    %s66 = sadd.s32 %s65, 1
    %p69 = scmp.eq.s32.totalorder %s10, 1
    %p70 = scmp.ne.s32.totalorder %s65, %s67
    %p71 = scmp.eq.s32.totalorder %s10, 0
    %p72 = por %p70, %p71
    %p73 = scmp.ne.s32.totalorder %s65, %s67
    %p74 = scmp.eq.s32.totalorder %s15, 1
    %p75 = por %p73, %p74
    %p76 = scmp.ne.s32.totalorder %s67, %s68
    %p77 = scmp.eq.s32.totalorder %s15, 0
    %p78 = por %p76, %p77
    %p79 = scmp.ne.s32.totalorder %s67, %s68
    %p80 = scmp.eq.s32.totalorder %s16, 1
    %p81 = por %p79, %p80
    %p83 = scmp.ne.s32.totalorder %s68, %s82
    %p84 = scmp.eq.s32.totalorder %s16, 0
    %p85 = por %p83, %p84
    %s87 = sadd.s32 %s86, 1
    %p90 = scmp.eq.s32.totalorder %s10, 1
    %p91 = scmp.ne.s32.totalorder %s86, %s88
    %p92 = scmp.eq.s32.totalorder %s10, 0
    %p93 = por %p91, %p92
    %p94 = scmp.ne.s32.totalorder %s86, %s88
    %p95 = scmp.eq.s32.totalorder %s15, 1
    %p96 = por %p94, %p95
    %p97 = scmp.ne.s32.totalorder %s88, %s89
    %p98 = scmp.eq.s32.totalorder %s15, 0
    %p99 = por %p97, %p98
    %p100 = scmp.ne.s32.totalorder %s88, %s89
    %p101 = scmp.eq.s32.totalorder %s16, 1
    %p102 = por %p100, %p101
    %p104 = scmp.ne.s32.totalorder %s89, %s103
    %p105 = scmp.eq.s32.totalorder %s16, 0
    %p106 = por %p104, %p105
    %s107 = ssub.s32 %s10, %s17
    %p108 = scmp.eq.s32.totalorder %s107, 0
    %s110 = sadd.s32 %s109, 1
    %s111 = scalar_select %p108, %s109, %s110
    %p114 = pneg %p108
    %p115 = scmp.eq.s32.totalorder %s10, 1
    %p116 = por %p114, %p115
    %p117 = scmp.ne.s32.totalorder %s109, %s112
    %p118 = scmp.eq.s32.totalorder %s10, 0
    %p119 = por %p117, %p118
    %p120 = scmp.ne.s32.totalorder %s109, %s112
    %p121 = scmp.eq.s32.totalorder %s15, 1
    %p122 = por %p120, %p121
    %p123 = scmp.ne.s32.totalorder %s112, %s113
    %p124 = scmp.eq.s32.totalorder %s15, 0
    %p125 = por %p123, %p124
    %p126 = scmp.ne.s32.totalorder %s112, %s113
    %p127 = scmp.eq.s32.totalorder %s16, 1
    %p128 = por %p126, %p127
    %p130 = scmp.ne.s32.totalorder %s113, %s129
    %p131 = scmp.eq.s32.totalorder %s16, 0
    %p132 = por %p130, %p131
    %p133 = scmp.le.s32.totalorder 1, %s10
    %p134 = scmp.lt.s32.totalorder %s10, 3
    %p135 = pnand %p133, %p134
    %p136 = pneg %p135
    // Predicated region
    $region9: #{unet_apply.5} parent=5 // pred_check
      _
    $region10: #{unet_apply.5} parent=5 // pred_check_branch
      %138 = sbr.rel (%p135) target = $region12
    $region11: #{unet_apply.5} parent=5 // pred_region
      %s139 = ssub.s32 %s10, 1
      // Predicated region
      $region13: #{unet_apply.5} parent=11 // pred_check
        %p140 = pneg %p57
      $region14: #{unet_apply.5} parent=11 // pred_check_branch
        %142 = sbr.rel (%p140) target = $region16
      $region15: #{unet_apply.5} parent=11 // pred_region
        _
      $region16: #{unet_apply.5} parent=11 // pred_fallthru
        _
      // Predicated region
      $region17: #{unet_apply.5} parent=11 // pred_check
        %p143 = pneg %p78
      $region18: #{unet_apply.5} parent=11 // pred_check_branch
        %145 = sbr.rel (%p143) target = $region20
      $region19: #{unet_apply.5} parent=11 // pred_region
        _
      $region20: #{unet_apply.5} parent=11 // pred_fallthru
        _
      // Predicated region
      $region21: #{unet_apply.5} parent=11 // pred_check
        %p146 = pneg %p99
      $region22: #{unet_apply.5} parent=11 // pred_check_branch
        %148 = sbr.rel (%p146) target = $region24
      $region23: #{unet_apply.5} parent=11 // pred_region
        _
      $region24: #{unet_apply.5} parent=11 // pred_fallthru
        _
    $region12: #{unet_apply.5} parent=5 // pred_fallthru
      _
    %p149 = scmp.lt.s32.totalorder %s10, 2
    // Predicated region
    $region25: #{unet_apply.5} parent=5 // pred_check
      %p150 = pneg %p149
    $region26: #{unet_apply.5} parent=5 // pred_check_branch
      %152 = sbr.rel (%p150) target = $region28
    $region27: #{unet_apply.5} parent=5 // pred_region
      // Predicated region
      $region29: #{unet_apply.5} parent=27 // pred_check
        %p153 = pneg %p30
      $region30: #{unet_apply.5} parent=27 // pred_check_branch
        %155 = sbr.rel (%p153) target = $region32
      $region31: #{unet_apply.5} parent=27 // pred_region
        %p156 = scmp.lt.s32.totalorder %s10, 1
        %s157 = scalar_select %p156, %s10, 1
        %s158 = smul.addr %s157, 8
        %s159 = smul.addr %s158, 4
        %s160 = scalar_lea.vmem %s0, %s159
      $region32: #{unet_apply.5} parent=27 // pred_fallthru
        _
    $region28: #{unet_apply.5} parent=5 // pred_fallthru
      _
    %p161 = scmp.le.s32.totalorder 1, %s10
    %p162 = scmp.lt.s32.totalorder %s10, 3
    %p163 = pnand %p161, %p162
    %p164 = pneg %p163
    // Predicated region
    $region33: #{unet_apply.5} parent=5 // pred_check
      _
    $region34: #{unet_apply.5} parent=5 // pred_check_branch
      %166 = sbr.rel (%p163) target = $region36
    $region35: #{unet_apply.5} parent=5 // pred_region
      %s167 = ssub.s32 %s10, 1
      %p168 = scmp.lt.s32.totalorder %s15, 1
      %s169 = scalar_select %p168, %s15, 1
      %s170 = smul.addr %s169, 8
      %s171 = smul.addr %s170, 4
      %s172 = scalar_lea.vmem %s0, %s171
      %p173 = pneg %p36
      %p174 = pneg %p33
      %p175 = pneg %p57
      %p176 = pneg %p54
      %p177 = pneg %p78
      %p178 = pneg %p75
      %p179 = pneg %p99
      %p180 = pneg %p96
      %p181 = pneg %p125
      %p182 = pneg %p122
      %p183 = scmp.lt.s32.totalorder %s15, 1
      %s184 = scalar_select %p183, %s15, 1
      %s185 = smul.addr %s184, 2
      %s186 = smul.addr %s185, 8
      %s187 = scalar_lea.vmem %s4, %s186
      %p188 = scmp.lt.s32.totalorder %s15, 1
      %s189 = scalar_select %p188, %s15, 1
      %s190 = smul.addr %s189, 8
      %s191 = smul.addr %s190, 4
      %s192 = scalar_lea.vmem %s0, %s191
      %p193 = scmp.lt.s32.totalorder %s15, 1
      %s194 = scalar_select %p193, %s15, 1
      %s195 = smul.addr %s194, 2
      %s196 = smul.addr %s195, 8
      %s197 = scalar_lea.vmem %s4, %s196
      %vm198 = vcmask 128000
      %199 = vst.msk [vmem:[#allocation2] sm:$0x3f] %vm198, 0.0
      %s200 = scalar_lea.vmem [#allocation2], 40
      %201 = vst.msk [vmem:[%s200] sm:$0x3f] %vm198, 0.0
      %s202 = scalar_lea.vmem [#allocation2], 8
      %vm203 = vcmask 122880
      %204 = vst.msk [vmem:[%s202] sm:$0x1] %vm203, 0.0
      %205 = vst.msk [vmem:[%s202 + $0x8] sm:$0x1] %vm203, 0.0
      %206 = vst.msk [vmem:[%s202 + $0x10] sm:$0x1] %vm203, 0.0
      %207 = vst.msk [vmem:[%s202 + $0x18] sm:$0x1] %vm203, 0.0
      %208 = vst.msk [vmem:[%s202 + $0x5] sm:$0x1] %vm203, 0.0
      %209 = vst.msk [vmem:[%s202 + $0xd] sm:$0x1] %vm203, 0.0
      %210 = vst.msk [vmem:[%s202 + $0x15] sm:$0x1] %vm203, 0.0
      %211 = vst.msk [vmem:[%s202 + $0x1d] sm:$0x1] %vm203, 0.0
      %s212 = scalar_lea.vmem [#allocation2], 48
      %213 = vst.msk [vmem:[%s212] sm:$0x3f] %vm198, 0.0
      %s214 = scalar_lea.vmem [#allocation2], 88
      %215 = vst.msk [vmem:[%s214] sm:$0x3f] %vm198, 0.0
      %s216 = scalar_lea.vmem [#allocation2], 56
      %217 = vst.msk [vmem:[%s216] sm:$0x1] %vm203, 0.0
      %218 = vst.msk [vmem:[%s216 + $0x8] sm:$0x1] %vm203, 0.0
      %219 = vst.msk [vmem:[%s216 + $0x10] sm:$0x1] %vm203, 0.0
      %220 = vst.msk [vmem:[%s216 + $0x18] sm:$0x1] %vm203, 0.0
      %221 = vst.msk [vmem:[%s216 + $0x5] sm:$0x1] %vm203, 0.0
      %222 = vst.msk [vmem:[%s216 + $0xd] sm:$0x1] %vm203, 0.0
      %223 = vst.msk [vmem:[%s216 + $0x15] sm:$0x1] %vm203, 0.0
      %224 = vst.msk [vmem:[%s216 + $0x1d] sm:$0x1] %vm203, 0.0
      %s225 = scalar_lea.vmem [#allocation2], 96
      %226 = vst.msk [vmem:[%s225] sm:$0x3f] %vm198, 0.0
      %s227 = scalar_lea.vmem [#allocation2], 136
      %228 = vst.msk [vmem:[%s227] sm:$0x3f] %vm198, 0.0
      %s229 = scalar_lea.vmem [#allocation2], 104
      %230 = vst.msk [vmem:[%s229] sm:$0x1] %vm203, 0.0
      %231 = vst.msk [vmem:[%s229 + $0x8] sm:$0x1] %vm203, 0.0
      %232 = vst.msk [vmem:[%s229 + $0x10] sm:$0x1] %vm203, 0.0
      %233 = vst.msk [vmem:[%s229 + $0x18] sm:$0x1] %vm203, 0.0
      %234 = vst.msk [vmem:[%s229 + $0x5] sm:$0x1] %vm203, 0.0
      %235 = vst.msk [vmem:[%s229 + $0xd] sm:$0x1] %vm203, 0.0
      %236 = vst.msk [vmem:[%s229 + $0x15] sm:$0x1] %vm203, 0.0
      %237 = vst.msk [vmem:[%s229 + $0x1d] sm:$0x1] %vm203, 0.0
      %s238 = scalar_lea.vmem [#allocation2], 144
      %239 = vst.msk [vmem:[%s238] sm:$0x3f] %vm198, 0.0
      %s240 = scalar_lea.vmem [#allocation2], 184
      %241 = vst.msk [vmem:[%s240] sm:$0x3f] %vm198, 0.0
      %s242 = scalar_lea.vmem [#allocation2], 152
      %243 = vst.msk [vmem:[%s242] sm:$0x1] %vm203, 0.0
      %244 = vst.msk [vmem:[%s242 + $0x8] sm:$0x1] %vm203, 0.0
      %245 = vst.msk [vmem:[%s242 + $0x10] sm:$0x1] %vm203, 0.0
      %246 = vst.msk [vmem:[%s242 + $0x18] sm:$0x1] %vm203, 0.0
      %247 = vst.msk [vmem:[%s242 + $0x5] sm:$0x1] %vm203, 0.0
      %248 = vst.msk [vmem:[%s242 + $0xd] sm:$0x1] %vm203, 0.0
      %249 = vst.msk [vmem:[%s242 + $0x15] sm:$0x1] %vm203, 0.0
      %250 = vst.msk [vmem:[%s242 + $0x1d] sm:$0x1] %vm203, 0.0
      %s251 = scalar_lea.vmem %s1, %s15
      %v252 = vld [vmem:[%s251] sm:$0x1]
      %vm253 = vcmp.ge.f32.partialorder %v252, 0.0
      %v254 = vmul.f32 %v252, 0.2
      %v255 = vsel %vm253, %v252, %v254
      %v256 = vld [vmem:[%s192] sm:$0xf]
      %v257 = vld [vmem:[%s192 + $0x8] sm:$0xf]
      %v258 = vld [vmem:[%s192 + $0x10] sm:$0xf]
      %v259 = vld [vmem:[%s192 + $0x18] sm:$0xf]
      %vm260 = vcmp.ge.f32.partialorder %v256, 0.0
      %vm261 = vcmp.ge.f32.partialorder %v257, 0.0
      %vm262 = vcmp.ge.f32.partialorder %v258, 0.0
      %vm263 = vcmp.ge.f32.partialorder %v259, 0.0
      %v264 = vmul.f32 %v256, 0.2
      %v265 = vmul.f32 %v257, 0.2
      %v266 = vmul.f32 %v258, 0.2
      %v267 = vmul.f32 %v259, 0.2
      %v268 = vsel %vm260, %v256, %v264
      %v269 = vsel %vm261, %v257, %v265
      %v270 = vsel %vm262, %v258, %v266
      %v271 = vsel %vm263, %v259, %v267
      %vm272 = vcmask 60416
      %273 = vst.msk [vmem:[%s202 + $0x1] sm:$0xf] %vm272, %v268
      %274 = vst.msk [vmem:[%s202 + $0x9] sm:$0xf] %vm272, %v269
      %275 = vst.msk [vmem:[%s202 + $0x11] sm:$0xf] %vm272, %v270
      %276 = vst.msk [vmem:[%s202 + $0x19] sm:$0xf] %vm272, %v271
      %v277 = vlaneseq
      %v278 = vshrl.u32 %v277, 7
      %v279 = vsub.s32 0, %v278
      %v280 = vrot.slane %v255, %v279
      %282 = vrot.lane.b32.xlu0 %v280, 8
      %v283 = vpop.permute.xlu0 %282
      %vm285 = vcmask 126016
      %286 = vst.msk [vmem:[%s202 + $0x1] sm:$0xf] %vm285, %v283
      %287 = vst.msk [vmem:[%s202 + $0x9] sm:$0xf] %vm285, %v283
      %288 = vst.msk [vmem:[%s202 + $0x11] sm:$0xf] %vm285, %v283
      %289 = vst.msk [vmem:[%s202 + $0x19] sm:$0xf] %vm285, %v283
      %v290 = vld [vmem:[%s192] sm:$0xf]
      %v291 = vld [vmem:[%s192 + $0x8] sm:$0xf]
      %v292 = vld [vmem:[%s192 + $0x10] sm:$0xf]
      %v293 = vld [vmem:[%s192 + $0x18] sm:$0xf]
      %vm294 = vcmp.ge.f32.partialorder %v290, 0.0
      %vm295 = vcmp.ge.f32.partialorder %v291, 0.0
      %vm296 = vcmp.ge.f32.partialorder %v292, 0.0
      %vm297 = vcmp.ge.f32.partialorder %v293, 0.0
      %v298 = vmul.f32 %v290, 0.2
      %v299 = vmul.f32 %v291, 0.2
      %v300 = vmul.f32 %v292, 0.2
      %v301 = vmul.f32 %v293, 0.2
      %v302 = vsel %vm294, %v290, %v298
      %v303 = vsel %vm295, %v291, %v299
      %v304 = vsel %vm296, %v292, %v300
      %v305 = vsel %vm297, %v293, %v301
      %310 = vrot.lane.b32.xlu0 %v302, 120
      %v311 = vpop.permute.xlu0 %310
      %312 = vrot.lane.b32.xlu0 %v303, 120
      %v313 = vpop.permute.xlu0 %312
      %314 = vrot.lane.b32.xlu0 %v304, 120
      %v315 = vpop.permute.xlu0 %314
      %316 = vrot.lane.b32.xlu0 %v305, 120
      %v317 = vpop.permute.xlu0 %316
      %322 = vst.msk [vmem:[%s216 + $0x1] sm:$0xf] %vm272, %v311
      %323 = vst.msk [vmem:[%s216 + $0x9] sm:$0xf] %vm272, %v313
      %324 = vst.msk [vmem:[%s216 + $0x11] sm:$0xf] %vm272, %v315
      %325 = vst.msk [vmem:[%s216 + $0x19] sm:$0xf] %vm272, %v317
      %326 = vst.msk [vmem:[%s216 + $0x1] sm:$0xf] %vm285, %v283
      %327 = vst.msk [vmem:[%s216 + $0x9] sm:$0xf] %vm285, %v283
      %328 = vst.msk [vmem:[%s216 + $0x11] sm:$0xf] %vm285, %v283
      %329 = vst.msk [vmem:[%s216 + $0x19] sm:$0xf] %vm285, %v283
      %s330 = scalar_lea.vmem %s192, 4
      %v331 = vld [vmem:[%s330] sm:$0xf]
      %v332 = vld [vmem:[%s330 + $0x8] sm:$0xf]
      %v333 = vld [vmem:[%s330 + $0x10] sm:$0xf]
      %v334 = vld [vmem:[%s330 + $0x18] sm:$0xf]
      %vm335 = vcmp.ge.f32.partialorder %v331, 0.0
      %vm336 = vcmp.ge.f32.partialorder %v332, 0.0
      %vm337 = vcmp.ge.f32.partialorder %v333, 0.0
      %vm338 = vcmp.ge.f32.partialorder %v334, 0.0
      %v339 = vmul.f32 %v331, 0.2
      %v340 = vmul.f32 %v332, 0.2
      %v341 = vmul.f32 %v333, 0.2
      %v342 = vmul.f32 %v334, 0.2
      %v343 = vsel %vm335, %v331, %v339
      %v344 = vsel %vm336, %v332, %v340
      %v345 = vsel %vm337, %v333, %v341
      %v346 = vsel %vm338, %v334, %v342
      %347 = vst.msk [vmem:[%s229 + $0x1] sm:$0xf] %vm272, %v343
      %348 = vst.msk [vmem:[%s229 + $0x9] sm:$0xf] %vm272, %v344
      %349 = vst.msk [vmem:[%s229 + $0x11] sm:$0xf] %vm272, %v345
      %350 = vst.msk [vmem:[%s229 + $0x19] sm:$0xf] %vm272, %v346
      %351 = vst.msk [vmem:[%s229 + $0x1] sm:$0xf] %vm285, %v283
      %352 = vst.msk [vmem:[%s229 + $0x9] sm:$0xf] %vm285, %v283
      %353 = vst.msk [vmem:[%s229 + $0x11] sm:$0xf] %vm285, %v283
      %354 = vst.msk [vmem:[%s229 + $0x19] sm:$0xf] %vm285, %v283
      %v355 = vld [vmem:[%s330] sm:$0xf]
      %v356 = vld [vmem:[%s330 + $0x8] sm:$0xf]
      %v357 = vld [vmem:[%s330 + $0x10] sm:$0xf]
      %v358 = vld [vmem:[%s330 + $0x18] sm:$0xf]
      %vm359 = vcmp.ge.f32.partialorder %v355, 0.0
      %vm360 = vcmp.ge.f32.partialorder %v356, 0.0
      %vm361 = vcmp.ge.f32.partialorder %v357, 0.0
      %vm362 = vcmp.ge.f32.partialorder %v358, 0.0
      %v363 = vmul.f32 %v355, 0.2
      %v364 = vmul.f32 %v356, 0.2
      %v365 = vmul.f32 %v357, 0.2
      %v366 = vmul.f32 %v358, 0.2
      %v367 = vsel %vm359, %v355, %v363
      %v368 = vsel %vm360, %v356, %v364
      %v369 = vsel %vm361, %v357, %v365
      %v370 = vsel %vm362, %v358, %v366
      %375 = vrot.lane.b32.xlu0 %v367, 120
      %v376 = vpop.permute.xlu0 %375
      %377 = vrot.lane.b32.xlu0 %v368, 120
      %v378 = vpop.permute.xlu0 %377
      %379 = vrot.lane.b32.xlu0 %v369, 120
      %v380 = vpop.permute.xlu0 %379
      %381 = vrot.lane.b32.xlu0 %v370, 120
      %v382 = vpop.permute.xlu0 %381
      %387 = vst.msk [vmem:[%s242 + $0x1] sm:$0xf] %vm272, %v376
      %388 = vst.msk [vmem:[%s242 + $0x9] sm:$0xf] %vm272, %v378
      %389 = vst.msk [vmem:[%s242 + $0x11] sm:$0xf] %vm272, %v380
      %390 = vst.msk [vmem:[%s242 + $0x19] sm:$0xf] %vm272, %v382
      %391 = vst.msk [vmem:[%s242 + $0x1] sm:$0xf] %vm285, %v283
      %392 = vst.msk [vmem:[%s242 + $0x9] sm:$0xf] %vm285, %v283
      %393 = vst.msk [vmem:[%s242 + $0x11] sm:$0xf] %vm285, %v283
      %394 = vst.msk [vmem:[%s242 + $0x19] sm:$0xf] %vm285, %v283
      %v395 = vld [vmem:[%s238] sm:$0xf]
      %v396 = vld [vmem:[%s238 + $0x8] sm:$0xf]
      %v397 = vld [vmem:[%s238 + $0x10] sm:$0xf]
      %v398 = vld [vmem:[%s238 + $0x18] sm:$0xf]
      %vm399 = vcmask 125952
      %400 = vst.msk [vmem:[#allocation3] sm:$0xf] %vm399, %v395
      %401 = vst.msk [vmem:[#allocation3 + $0x8] sm:$0xf] %vm399, %v396
      %402 = vst.msk [vmem:[#allocation3 + $0x10] sm:$0xf] %vm399, %v397
      %403 = vst.msk [vmem:[#allocation3 + $0x18] sm:$0xf] %vm399, %v398
      %v404 = vld [vmem:[%s225 + $0x1] sm:$0xf]
      %v405 = vld [vmem:[%s225 + $0x9] sm:$0xf]
      %v406 = vld [vmem:[%s225 + $0x11] sm:$0xf]
      %v407 = vld [vmem:[%s225 + $0x19] sm:$0xf]
      %412 = vrot.lane.b32.xlu0 %v404, 16
      %v413 = vpop.permute.xlu0 %412
      %414 = vrot.lane.b32.xlu0 %v405, 16
      %v415 = vpop.permute.xlu0 %414
      %416 = vrot.lane.b32.xlu0 %v406, 16
      %v417 = vpop.permute.xlu0 %416
      %418 = vrot.lane.b32.xlu0 %v407, 16
      %v419 = vpop.permute.xlu0 %418
      %vm424 = vcmask 257152
      %425 = vst.msk [vmem:[#allocation3] sm:$0xf] %vm424, %v413
      %426 = vst.msk [vmem:[#allocation3 + $0x8] sm:$0xf] %vm424, %v415
      %427 = vst.msk [vmem:[#allocation3 + $0x10] sm:$0xf] %vm424, %v417
      %428 = vst.msk [vmem:[#allocation3 + $0x18] sm:$0xf] %vm424, %v419
      %v429 = vld [vmem:[%s238 + $0x1] sm:$0xf]
      %v430 = vld [vmem:[%s238 + $0x9] sm:$0xf]
      %v431 = vld [vmem:[%s238 + $0x11] sm:$0xf]
      %v432 = vld [vmem:[%s238 + $0x19] sm:$0xf]
      %437 = vrot.lane.b32.xlu0 %v429, 32
      %v438 = vpop.permute.xlu0 %437
      %439 = vrot.lane.b32.xlu0 %v430, 32
      %v440 = vpop.permute.xlu0 %439
      %441 = vrot.lane.b32.xlu0 %v431, 32
      %v442 = vpop.permute.xlu0 %441
      %443 = vrot.lane.b32.xlu0 %v432, 32
      %v444 = vpop.permute.xlu0 %443
      %vm449 = vcmask 388352
      %450 = vst.msk [vmem:[#allocation3] sm:$0xf] %vm449, %v438
      %451 = vst.msk [vmem:[#allocation3 + $0x8] sm:$0xf] %vm449, %v440
      %452 = vst.msk [vmem:[#allocation3 + $0x10] sm:$0xf] %vm449, %v442
      %453 = vst.msk [vmem:[#allocation3 + $0x18] sm:$0xf] %vm449, %v444
      %v454 = vld [vmem:[%s225 + $0x2] sm:$0xf]
      %v455 = vld [vmem:[%s225 + $0xa] sm:$0xf]
      %v456 = vld [vmem:[%s225 + $0x12] sm:$0xf]
      %v457 = vld [vmem:[%s225 + $0x1a] sm:$0xf]
      %462 = vrot.lane.b32.xlu0 %v454, 48
      %v463 = vpop.permute.xlu0 %462
      %464 = vrot.lane.b32.xlu0 %v455, 48
      %v465 = vpop.permute.xlu0 %464
      %466 = vrot.lane.b32.xlu0 %v456, 48
      %v467 = vpop.permute.xlu0 %466
      %468 = vrot.lane.b32.xlu0 %v457, 48
      %v469 = vpop.permute.xlu0 %468
      %vm474 = vcmask 519552
      %475 = vst.msk [vmem:[#allocation3] sm:$0xf] %vm474, %v463
      %476 = vst.msk [vmem:[#allocation3 + $0x8] sm:$0xf] %vm474, %v465
      %477 = vst.msk [vmem:[#allocation3 + $0x10] sm:$0xf] %vm474, %v467
      %478 = vst.msk [vmem:[#allocation3 + $0x18] sm:$0xf] %vm474, %v469
      %v479 = vld [vmem:[%s216] sm:$0xf]
      %v480 = vld [vmem:[%s216 + $0x8] sm:$0xf]
      %v481 = vld [vmem:[%s216 + $0x10] sm:$0xf]
      %v482 = vld [vmem:[%s216 + $0x18] sm:$0xf]
      %487 = vrot.lane.b32.xlu0 %v479, 64
      %v488 = vpop.permute.xlu0 %487
      %489 = vrot.lane.b32.xlu0 %v480, 64
      %v490 = vpop.permute.xlu0 %489
      %491 = vrot.lane.b32.xlu0 %v481, 64
      %v492 = vpop.permute.xlu0 %491
      %493 = vrot.lane.b32.xlu0 %v482, 64
      %v494 = vpop.permute.xlu0 %493
      %vm499 = vcmask 650752
      %500 = vst.msk [vmem:[#allocation3] sm:$0xf] %vm499, %v488
      %501 = vst.msk [vmem:[#allocation3 + $0x8] sm:$0xf] %vm499, %v490
      %502 = vst.msk [vmem:[#allocation3 + $0x10] sm:$0xf] %vm499, %v492
      %503 = vst.msk [vmem:[#allocation3 + $0x18] sm:$0xf] %vm499, %v494
      %v504 = vld [vmem:[%s202 + $0x1] sm:$0xf]
      %v505 = vld [vmem:[%s202 + $0x9] sm:$0xf]
      %v506 = vld [vmem:[%s202 + $0x11] sm:$0xf]
      %v507 = vld [vmem:[%s202 + $0x19] sm:$0xf]
      %512 = vrot.lane.b32.xlu0 %v504, 80
      %v513 = vpop.permute.xlu0 %512
      %514 = vrot.lane.b32.xlu0 %v505, 80
      %v515 = vpop.permute.xlu0 %514
      %516 = vrot.lane.b32.xlu0 %v506, 80
      %v517 = vpop.permute.xlu0 %516
      %518 = vrot.lane.b32.xlu0 %v507, 80
      %v519 = vpop.permute.xlu0 %518
      %vm524 = vcmask 781952
      %525 = vst.msk [vmem:[#allocation3] sm:$0xf] %vm524, %v513
      %526 = vst.msk [vmem:[#allocation3 + $0x8] sm:$0xf] %vm524, %v515
      %527 = vst.msk [vmem:[#allocation3 + $0x10] sm:$0xf] %vm524, %v517
      %528 = vst.msk [vmem:[#allocation3 + $0x18] sm:$0xf] %vm524, %v519
      %v529 = vld [vmem:[%s216 + $0x1] sm:$0xf]
      %v530 = vld [vmem:[%s216 + $0x9] sm:$0xf]
      %v531 = vld [vmem:[%s216 + $0x11] sm:$0xf]
      %v532 = vld [vmem:[%s216 + $0x19] sm:$0xf]
      %537 = vrot.lane.b32.xlu0 %v529, 96
      %v538 = vpop.permute.xlu0 %537
      %539 = vrot.lane.b32.xlu0 %v530, 96
      %v540 = vpop.permute.xlu0 %539
      %541 = vrot.lane.b32.xlu0 %v531, 96
      %v542 = vpop.permute.xlu0 %541
      %543 = vrot.lane.b32.xlu0 %v532, 96
      %v544 = vpop.permute.xlu0 %543
      %vm549 = vcmask 913152
      %550 = vst.msk [vmem:[#allocation3] sm:$0xf] %vm549, %v538
      %551 = vst.msk [vmem:[#allocation3 + $0x8] sm:$0xf] %vm549, %v540
      %552 = vst.msk [vmem:[#allocation3 + $0x10] sm:$0xf] %vm549, %v542
      %553 = vst.msk [vmem:[#allocation3 + $0x18] sm:$0xf] %vm549, %v544
      %v554 = vld [vmem:[%s202 + $0x2] sm:$0xf]
      %v555 = vld [vmem:[%s202 + $0xa] sm:$0xf]
      %v556 = vld [vmem:[%s202 + $0x12] sm:$0xf]
      %v557 = vld [vmem:[%s202 + $0x1a] sm:$0xf]
      %562 = vrot.lane.b32.xlu0 %v554, 112
      %v563 = vpop.permute.xlu0 %562
      %564 = vrot.lane.b32.xlu0 %v555, 112
      %v565 = vpop.permute.xlu0 %564
      %566 = vrot.lane.b32.xlu0 %v556, 112
      %v567 = vpop.permute.xlu0 %566
      %568 = vrot.lane.b32.xlu0 %v557, 112
      %v569 = vpop.permute.xlu0 %568
      %vm574 = vcmask 1044352
      %575 = vst.msk [vmem:[#allocation3] sm:$0xf] %vm574, %v563
      %576 = vst.msk [vmem:[#allocation3 + $0x8] sm:$0xf] %vm574, %v565
      %577 = vst.msk [vmem:[#allocation3 + $0x10] sm:$0xf] %vm574, %v567
      %578 = vst.msk [vmem:[#allocation3 + $0x18] sm:$0xf] %vm574, %v569
      %v579 = vld [vmem:[%s242] sm:$0xf]
      %v580 = vld [vmem:[%s242 + $0x8] sm:$0xf]
      %v581 = vld [vmem:[%s242 + $0x10] sm:$0xf]
      %v582 = vld [vmem:[%s242 + $0x18] sm:$0xf]
      %583 = vst.msk [vmem:[#allocation3 + $0x4] sm:$0xf] %vm399, %v579
      %584 = vst.msk [vmem:[#allocation3 + $0xc] sm:$0xf] %vm399, %v580
      %585 = vst.msk [vmem:[#allocation3 + $0x14] sm:$0xf] %vm399, %v581
      %586 = vst.msk [vmem:[#allocation3 + $0x1c] sm:$0xf] %vm399, %v582
      %v587 = vld [vmem:[%s229 + $0x1] sm:$0xf]
      %v588 = vld [vmem:[%s229 + $0x9] sm:$0xf]
      %v589 = vld [vmem:[%s229 + $0x11] sm:$0xf]
      %v590 = vld [vmem:[%s229 + $0x19] sm:$0xf]
      %595 = vrot.lane.b32.xlu0 %v587, 16
      %v596 = vpop.permute.xlu0 %595
      %597 = vrot.lane.b32.xlu0 %v588, 16
      %v598 = vpop.permute.xlu0 %597
      %599 = vrot.lane.b32.xlu0 %v589, 16
      %v600 = vpop.permute.xlu0 %599
      %601 = vrot.lane.b32.xlu0 %v590, 16
      %v602 = vpop.permute.xlu0 %601
      %607 = vst.msk [vmem:[#allocation3 + $0x4] sm:$0xf] %vm424, %v596
      %608 = vst.msk [vmem:[#allocation3 + $0xc] sm:$0xf] %vm424, %v598
      %609 = vst.msk [vmem:[#allocation3 + $0x14] sm:$0xf] %vm424, %v600
      %610 = vst.msk [vmem:[#allocation3 + $0x1c] sm:$0xf] %vm424, %v602
      %v611 = vld [vmem:[%s242 + $0x1] sm:$0xf]
      %v612 = vld [vmem:[%s242 + $0x9] sm:$0xf]
      %v613 = vld [vmem:[%s242 + $0x11] sm:$0xf]
      %v614 = vld [vmem:[%s242 + $0x19] sm:$0xf]
      %619 = vrot.lane.b32.xlu0 %v611, 32
      %v620 = vpop.permute.xlu0 %619
      %621 = vrot.lane.b32.xlu0 %v612, 32
      %v622 = vpop.permute.xlu0 %621
      %623 = vrot.lane.b32.xlu0 %v613, 32
      %v624 = vpop.permute.xlu0 %623
      %625 = vrot.lane.b32.xlu0 %v614, 32
      %v626 = vpop.permute.xlu0 %625
      %631 = vst.msk [vmem:[#allocation3 + $0x4] sm:$0xf] %vm449, %v620
      %632 = vst.msk [vmem:[#allocation3 + $0xc] sm:$0xf] %vm449, %v622
      %633 = vst.msk [vmem:[#allocation3 + $0x14] sm:$0xf] %vm449, %v624
      %634 = vst.msk [vmem:[#allocation3 + $0x1c] sm:$0xf] %vm449, %v626
      %v635 = vld [vmem:[%s229 + $0x2] sm:$0xf]
      %v636 = vld [vmem:[%s229 + $0xa] sm:$0xf]
      %v637 = vld [vmem:[%s229 + $0x12] sm:$0xf]
      %v638 = vld [vmem:[%s229 + $0x1a] sm:$0xf]
      %643 = vrot.lane.b32.xlu0 %v635, 48
      %v644 = vpop.permute.xlu0 %643
      %645 = vrot.lane.b32.xlu0 %v636, 48
      %v646 = vpop.permute.xlu0 %645
      %647 = vrot.lane.b32.xlu0 %v637, 48
      %v648 = vpop.permute.xlu0 %647
      %649 = vrot.lane.b32.xlu0 %v638, 48
      %v650 = vpop.permute.xlu0 %649
      %655 = vst.msk [vmem:[#allocation3 + $0x4] sm:$0xf] %vm474, %v644
      %656 = vst.msk [vmem:[#allocation3 + $0xc] sm:$0xf] %vm474, %v646
      %657 = vst.msk [vmem:[#allocation3 + $0x14] sm:$0xf] %vm474, %v648
      %658 = vst.msk [vmem:[#allocation3 + $0x1c] sm:$0xf] %vm474, %v650
      %s659 = scalar_lea.vmem [#allocation2], 64
      %v660 = vld [vmem:[%s659] sm:$0xf]
      %v661 = vld [vmem:[%s659 + $0x8] sm:$0xf]
      %v662 = vld [vmem:[%s659 + $0x10] sm:$0xf]
      %v663 = vld [vmem:[%s659 + $0x18] sm:$0xf]
      %668 = vrot.lane.b32.xlu0 %v660, 64
      %v669 = vpop.permute.xlu0 %668
      %670 = vrot.lane.b32.xlu0 %v661, 64
      %v671 = vpop.permute.xlu0 %670
      %672 = vrot.lane.b32.xlu0 %v662, 64
      %v673 = vpop.permute.xlu0 %672
      %674 = vrot.lane.b32.xlu0 %v663, 64
      %v675 = vpop.permute.xlu0 %674
      %680 = vst.msk [vmem:[#allocation3 + $0x4] sm:$0xf] %vm499, %v669
      %681 = vst.msk [vmem:[#allocation3 + $0xc] sm:$0xf] %vm499, %v671
      %682 = vst.msk [vmem:[#allocation3 + $0x14] sm:$0xf] %vm499, %v673
      %683 = vst.msk [vmem:[#allocation3 + $0x1c] sm:$0xf] %vm499, %v675
      %s684 = scalar_lea.vmem [#allocation2], 16
      %v685 = vld [vmem:[%s684 + $0x1] sm:$0xf]
      %v686 = vld [vmem:[%s684 + $0x9] sm:$0xf]
      %v687 = vld [vmem:[%s684 + $0x11] sm:$0xf]
      %v688 = vld [vmem:[%s684 + $0x19] sm:$0xf]
      %693 = vrot.lane.b32.xlu0 %v685, 80
      %v694 = vpop.permute.xlu0 %693
      %695 = vrot.lane.b32.xlu0 %v686, 80
      %v696 = vpop.permute.xlu0 %695
      %697 = vrot.lane.b32.xlu0 %v687, 80
      %v698 = vpop.permute.xlu0 %697
      %699 = vrot.lane.b32.xlu0 %v688, 80
      %v700 = vpop.permute.xlu0 %699
      %705 = vst.msk [vmem:[#allocation3 + $0x4] sm:$0xf] %vm524, %v694
      %706 = vst.msk [vmem:[#allocation3 + $0xc] sm:$0xf] %vm524, %v696
      %707 = vst.msk [vmem:[#allocation3 + $0x14] sm:$0xf] %vm524, %v698
      %708 = vst.msk [vmem:[#allocation3 + $0x1c] sm:$0xf] %vm524, %v700
      %v709 = vld [vmem:[%s659 + $0x1] sm:$0xf]
      %v710 = vld [vmem:[%s659 + $0x9] sm:$0xf]
      %v711 = vld [vmem:[%s659 + $0x11] sm:$0xf]
      %v712 = vld [vmem:[%s659 + $0x19] sm:$0xf]
      %717 = vrot.lane.b32.xlu0 %v709, 96
      %v718 = vpop.permute.xlu0 %717
      %719 = vrot.lane.b32.xlu0 %v710, 96
      %v720 = vpop.permute.xlu0 %719
      %721 = vrot.lane.b32.xlu0 %v711, 96
      %v722 = vpop.permute.xlu0 %721
      %723 = vrot.lane.b32.xlu0 %v712, 96
      %v724 = vpop.permute.xlu0 %723
      %729 = vst.msk [vmem:[#allocation3 + $0x4] sm:$0xf] %vm549, %v718
      %730 = vst.msk [vmem:[#allocation3 + $0xc] sm:$0xf] %vm549, %v720
      %731 = vst.msk [vmem:[#allocation3 + $0x14] sm:$0xf] %vm549, %v722
      %732 = vst.msk [vmem:[#allocation3 + $0x1c] sm:$0xf] %vm549, %v724
      %v733 = vld [vmem:[%s684 + $0x2] sm:$0xf]
      %v734 = vld [vmem:[%s684 + $0xa] sm:$0xf]
      %v735 = vld [vmem:[%s684 + $0x12] sm:$0xf]
      %v736 = vld [vmem:[%s684 + $0x1a] sm:$0xf]
      %741 = vrot.lane.b32.xlu0 %v733, 112
      %v742 = vpop.permute.xlu0 %741
      %743 = vrot.lane.b32.xlu0 %v734, 112
      %v744 = vpop.permute.xlu0 %743
      %745 = vrot.lane.b32.xlu0 %v735, 112
      %v746 = vpop.permute.xlu0 %745
      %747 = vrot.lane.b32.xlu0 %v736, 112
      %v748 = vpop.permute.xlu0 %747
      %753 = vst.msk [vmem:[#allocation3 + $0x4] sm:$0xf] %vm574, %v742
      %754 = vst.msk [vmem:[#allocation3 + $0xc] sm:$0xf] %vm574, %v744
      %755 = vst.msk [vmem:[#allocation3 + $0x14] sm:$0xf] %vm574, %v746
      %756 = vst.msk [vmem:[#allocation3 + $0x1c] sm:$0xf] %vm574, %v748
      %v757 = vld [vmem:[#allocation3] sm:$0xff]
      %v758 = vld [vmem:[#allocation3 + $0x8] sm:$0xff]
      %v759 = vld [vmem:[#allocation3 + $0x10] sm:$0xff]
      %v760 = vld [vmem:[#allocation3 + $0x18] sm:$0xff]
      %v761 = vld [vmem:[%s2] sm:$0xff]
      %v762 = vld [vmem:[%s2 + $0x8] sm:$0xff]
      %v763 = vld [vmem:[%s2 + $0x10] sm:$0xff]
      %v764 = vld [vmem:[%s2 + $0x18] sm:$0xff]
      %v765 = vld [vmem:[%s2 + $0x20] sm:$0xff]
      %v766 = vld [vmem:[%s2 + $0x28] sm:$0xff]
      %v767 = vld [vmem:[%s2 + $0x30] sm:$0xff]
      %v768 = vld [vmem:[%s2 + $0x38] sm:$0xff]
      %v769 = vld [vmem:[%s2 + $0x40] sm:$0xff]
      %v770 = vld [vmem:[%s2 + $0x48] sm:$0xff]
      %v771 = vld [vmem:[%s2 + $0x50] sm:$0xff]
      %v772 = vld [vmem:[%s2 + $0x58] sm:$0xff]
      %v773 = vld [vmem:[%s2 + $0x60] sm:$0xff]
      %v774 = vld [vmem:[%s2 + $0x68] sm:$0xff]
      %v775 = vld [vmem:[%s2 + $0x70] sm:$0xff]
      %v776 = vld [vmem:[%s2 + $0x78] sm:$0xff]
      %v777 = vld [vmem:[%s2 + $0x80] sm:$0xff]
      %v778 = vld [vmem:[%s2 + $0x88] sm:$0xff]
      %v779 = vld [vmem:[%s2 + $0x90] sm:$0xff]
      %v780 = vld [vmem:[%s2 + $0x98] sm:$0xff]
      %v781 = vld [vmem:[%s2 + $0xa0] sm:$0xff]
      %v782 = vld [vmem:[%s2 + $0xa8] sm:$0xff]
      %v783 = vld [vmem:[%s2 + $0xb0] sm:$0xff]
      %v784 = vld [vmem:[%s2 + $0xb8] sm:$0xff]
      %v785 = vld [vmem:[%s2 + $0xc0] sm:$0xff]
      %v786 = vld [vmem:[%s2 + $0xc8] sm:$0xff]
      %v787 = vld [vmem:[%s2 + $0xd0] sm:$0xff]
      %v788 = vld [vmem:[%s2 + $0xd8] sm:$0xff]
      %v789 = vld [vmem:[%s2 + $0xe0] sm:$0xff]
      %v790 = vld [vmem:[%s2 + $0xe8] sm:$0xff]
      %v791 = vld [vmem:[%s2 + $0xf0] sm:$0xff]
      %v792 = vld [vmem:[%s2 + $0xf8] sm:$0xff]
      %v793 = vld [vmem:[%s3] sm:$0x1]
      %v795 = vlaneseq
      %v796 = vshrl.u32 %v795, 7
      %v797 = vsub.s32 0, %v796
      %v798 = vrot.slane %v793, %v797
      %v804 = vcombine.low %v757, %v758
      %v805 = vcombine.high %v757, %v758
      %v806 = vcombine.low %v759, %v760
      %v807 = vcombine.high %v759, %v760
      %812 = vmatprep.subr.mxu0 0.0
      %813 = vmatpush1.msra.mxu0 %v776
      %814 = vmatprep.subr.mxu0 0.0
      %815 = vmatpush1.msra.mxu0 %v775
      %816 = vmatprep.subr.mxu0 0.0
      %817 = vmatpush1.msra.mxu0 %v774
      %818 = vmatprep.subr.mxu0 0.0
      %819 = vmatpush1.msra.mxu0 %v773
      %820 = vmatprep.subr.mxu0 0.0
      %821 = vmatpush1.msra.mxu0 %v772
      %822 = vmatprep.subr.mxu0 0.0
      %823 = vmatpush1.msra.mxu0 %v771
      %824 = vmatprep.subr.mxu0 0.0
      %825 = vmatpush1.msra.mxu0 %v770
      %826 = vmatprep.subr.mxu0 0.0
      %827 = vmatpush1.msra.mxu0 %v769
      %828 = vmatprep.subr.mxu0 0.0
      %829 = vmatpush1.msra.mxu0 %v768
      %830 = vmatprep.subr.mxu0 0.0
      %831 = vmatpush1.msra.mxu0 %v767
      %832 = vmatprep.subr.mxu0 0.0
      %833 = vmatpush1.msra.mxu0 %v766
      %834 = vmatprep.subr.mxu0 0.0
      %835 = vmatpush1.msra.mxu0 %v765
      %836 = vmatprep.subr.mxu0 0.0
      %837 = vmatpush1.msra.mxu0 %v764
      %838 = vmatprep.subr.mxu0 0.0
      %839 = vmatpush1.msra.mxu0 %v763
      %840 = vmatprep.subr.mxu0 0.0
      %841 = vmatpush1.msra.mxu0 %v762
      %842 = vmatprep.subr.mxu0 0.0
      %843 = vmatpush1.msra.mxu0 %v761
      %844 = vmatprep.subr.mxu0 0.0
      %845 = vmatpush2.msra.mxu0 %v792
      %846 = vmatprep.subr.mxu0 0.0
      %847 = vmatpush2.msra.mxu0 %v791
      %848 = vmatprep.subr.mxu0 0.0
      %849 = vmatpush2.msra.mxu0 %v790
      %850 = vmatprep.subr.mxu0 0.0
      %851 = vmatpush2.msra.mxu0 %v789
      %852 = vmatprep.subr.mxu0 0.0
      %853 = vmatpush2.msra.mxu0 %v788
      %854 = vmatprep.subr.mxu0 0.0
      %855 = vmatpush2.msra.mxu0 %v787
      %856 = vmatprep.subr.mxu0 0.0
      %857 = vmatpush2.msra.mxu0 %v786
      %858 = vmatprep.subr.mxu0 0.0
      %859 = vmatpush2.msra.mxu0 %v785
      %860 = vmatprep.subr.mxu0 0.0
      %861 = vmatpush2.msra.mxu0 %v784
      %862 = vmatprep.subr.mxu0 0.0
      %863 = vmatpush2.msra.mxu0 %v783
      %864 = vmatprep.subr.mxu0 0.0
      %865 = vmatpush2.msra.mxu0 %v782
      %866 = vmatprep.subr.mxu0 0.0
      %867 = vmatpush2.msra.mxu0 %v781
      %868 = vmatprep.subr.mxu0 0.0
      %869 = vmatpush2.msra.mxu0 %v780
      %870 = vmatprep.subr.mxu0 0.0
      %871 = vmatpush2.msra.mxu0 %v779
      %872 = vmatprep.subr.mxu0 0.0
      %873 = vmatpush2.msra.mxu0 %v778
      %874 = vmatprep.subr.mxu0 0.0
      %875 = vmatpush2.msra.mxu0 %v777
      %876 = vmatprep.mubr.f32.mxu0 %v805
      %877 = vmatmul.mubr.f32.gmra.mxu0 %v804
      %v878 = vpop.f32.mrf.mxu0
      %v879 = vadd.f32 %v798, %v878
      %v880 = vpop.f32.mrf.mxu0
      %881 = vmatprep.mubr.f32.mxu0 %v807
      %882 = vmatmul.mubr.f32.gmra.mxu0 %v806
      %v883 = vpop.f32.mrf.mxu0
      %v884 = vadd.f32 %v798, %v883
      %v885 = vpop.f32.mrf.mxu0
      %886 = vdwg.mxu0
      %vm887 = vcmask 130048
      %888 = vst.msk [vmem:[%s197] sm:$0xff] %vm887, %v879
      %889 = vst.msk [vmem:[%s197 + $0x8] sm:$0xff] %vm887, %v884
      %p890 = scmp.lt.s32.totalorder %s15, 1
      %s891 = scalar_select %p890, %s15, 1
      %s892 = smul.addr %s891, 2
      %s893 = smul.addr %s892, 8
      %s894 = scalar_lea.vmem %s4, %s893
      // Predicated region
      $region37: #{unet_apply.5} parent=35 // pred_check
        %p895 = pneg %p122
      $region38: #{unet_apply.5} parent=35 // pred_check_branch
        %897 = sbr.rel (%p895) target = $region40
      $region39: #{unet_apply.5} parent=35 // pred_region
        _
      $region40: #{unet_apply.5} parent=35 // pred_fallthru
        _
    $region36: #{unet_apply.5} parent=5 // pred_fallthru
      _
    %p898 = scmp.le.s32.totalorder 2, %s10
    // Predicated region
    $region41: #{unet_apply.5} parent=5 // pred_check
      %p899 = pneg %p898
    $region42: #{unet_apply.5} parent=5 // pred_check_branch
      %901 = sbr.rel (%p899) target = $region44
    $region43: #{unet_apply.5} parent=5 // pred_region
      %s902 = ssub.s32 %s10, 2
      // Predicated region
      $region45: #{unet_apply.5} parent=43 // pred_check
        %p903 = pneg %p128
      $region46: #{unet_apply.5} parent=43 // pred_check_branch
        %905 = sbr.rel (%p903) target = $region48
      $region47: #{unet_apply.5} parent=43 // pred_region
        %p906 = scmp.lt.s32.totalorder %s16, 1
        %s907 = scalar_select %p906, %s16, 1
        %s908 = smul.addr %s907, 2
        %s909 = smul.addr %s908, 8
        %s910 = scalar_lea.vmem %s4, %s909
      $region48: #{unet_apply.5} parent=43 // pred_fallthru
        _
    $region44: #{unet_apply.5} parent=5 // pred_fallthru
      _
  $region6: #{unet_apply.5} parent=0 // loop_footer
    %s14 = sadd.s32 1, %s10
  $region7: #{unet_apply.5} parent=0 // loop_footer_branch
    %9 = sbr.rel target = $region3
  $region8: #{unet_apply.5} parent=0 // loop_exit
    _

// kernel: unet_apply.4
$region0: #{unet_apply.4}
  #allocation0 [shape = 'u32[]', space=smem, size = 0x4, offset = 0x4, fixed_abs, tag = 'smem constant byte address 0x4 - core index']
  #allocation1 [shape = 'u32[144,128]{1,0:T(1,128)}', space=vmem, size = 0x12000, scoped, tag = 'internal scratch']
  #allocation2 [shape = 'f32[2,2,10,10,12]{4,3,2,1,0:T(8,128)}', space=vmem, size = 0x50000, scoped, tag = 'scratch operand']
  #allocation3 [shape = 'f32[8,8,192]{2,1,0:T(8,128)}', space=vmem, size = 0x10000, scoped, tag = 'scratch operand']
  %s0 = inlined_call_operand.vmem [shape: f32[2,8,2,8,8], index: 0, kind: input, shape index: {}]
  %s1 = inlined_call_operand.vmem [shape: f32[2,8], index: 1, kind: input, shape index: {}]
  %s2 = inlined_call_operand.vmem [shape: f32[192,8], index: 2, kind: input, shape index: {}]
  %s3 = inlined_call_operand.vmem [shape: f32[1,8], index: 3, kind: input, shape index: {}]
  %s4 = inlined_call_operand.vmem [shape: f32[2,64,8], index: 4, kind: output, shape index: {}]
  %s5 = sld [smem:[#allocation0]]
  $region49: #{unet_apply.4} parent=0
    _
  %s7 = ssub.s32 1, %s5
  %s8 = scalar_select 0, %s7, %s5
  loop: start=0, step=1, limit=4
  $region2: #{unet_apply.4} parent=0 // loop_pre_header
    _
  $region3: #{unet_apply.4} parent=0 // loop_header
    %s10 = sphi 0, %s14
    %p11 = scmp.ge.s32.totalorder %s10, 4
    %s20 = sphi 0, %s22
    %s23 = sphi 0, %s20
    %s24 = sphi 0, %s23
    %s40 = sphi 0, %s24
    %s44 = sphi 0, %s44
    %s46 = sphi 0, %s44
    %s47 = sphi 0, %s46
    %s61 = sphi 0, %s47
    %s65 = sphi 0, %s65
    %s67 = sphi 0, %s65
    %s68 = sphi 0, %s67
    %s82 = sphi 0, %s68
    %s86 = sphi 0, %s86
    %s88 = sphi 0, %s86
    %s89 = sphi 0, %s88
    %s103 = sphi 0, %s89
    %s109 = sphi 0, %s111
    %s112 = sphi 0, %s109
    %s113 = sphi 0, %s112
    %s129 = sphi 0, %s113
  $region4: #{unet_apply.4} parent=0 // loop_header_branch
    %13 = sbr.rel (%p11) target = $region8
  $region5: #{unet_apply.4} parent=0 // loop_body
    %s15 = ssub.s32 %s10, 1
    %s16 = ssub.s32 %s10, 2
    %s17 = sadd.s32 %s10, 1
    %s18 = ssub.s32 %s10, %s17
    %p19 = scmp.eq.s32.totalorder %s18, 0
    %s21 = sadd.s32 %s20, 1
    %s22 = scalar_select %p19, %s20, %s21
    %p25 = pneg %p19
    %p26 = scmp.eq.s32.totalorder %s10, 1
    %p27 = por %p25, %p26
    %p28 = scmp.ne.s32.totalorder %s20, %s23
    %p29 = scmp.eq.s32.totalorder %s10, 0
    %p30 = por %p28, %p29
    %p31 = scmp.ne.s32.totalorder %s20, %s23
    %p32 = scmp.eq.s32.totalorder %s15, 1
    %p33 = por %p31, %p32
    %p34 = scmp.ne.s32.totalorder %s23, %s24
    %p35 = scmp.eq.s32.totalorder %s15, 0
    %p36 = por %p34, %p35
    %p37 = scmp.ne.s32.totalorder %s23, %s24
    %p38 = scmp.eq.s32.totalorder %s16, 1
    %p39 = por %p37, %p38
    %p41 = scmp.ne.s32.totalorder %s24, %s40
    %p42 = scmp.eq.s32.totalorder %s16, 0
    %p43 = por %p41, %p42
    %s45 = sadd.s32 %s44, 1
    %p48 = scmp.eq.s32.totalorder %s10, 1
    %p49 = scmp.ne.s32.totalorder %s44, %s46
    %p50 = scmp.eq.s32.totalorder %s10, 0
    %p51 = por %p49, %p50
    %p52 = scmp.ne.s32.totalorder %s44, %s46
    %p53 = scmp.eq.s32.totalorder %s15, 1
    %p54 = por %p52, %p53
    %p55 = scmp.ne.s32.totalorder %s46, %s47
    %p56 = scmp.eq.s32.totalorder %s15, 0
    %p57 = por %p55, %p56
    %p58 = scmp.ne.s32.totalorder %s46, %s47
    %p59 = scmp.eq.s32.totalorder %s16, 1
    %p60 = por %p58, %p59
    %p62 = scmp.ne.s32.totalorder %s47, %s61
    %p63 = scmp.eq.s32.totalorder %s16, 0
    %p64 = por %p62, %p63
    %s66 = sadd.s32 %s65, 1
    %p69 = scmp.eq.s32.totalorder %s10, 1
    %p70 = scmp.ne.s32.totalorder %s65, %s67
    %p71 = scmp.eq.s32.totalorder %s10, 0
    %p72 = por %p70, %p71
    %p73 = scmp.ne.s32.totalorder %s65, %s67
    %p74 = scmp.eq.s32.totalorder %s15, 1
    %p75 = por %p73, %p74
    %p76 = scmp.ne.s32.totalorder %s67, %s68
    %p77 = scmp.eq.s32.totalorder %s15, 0
    %p78 = por %p76, %p77
    %p79 = scmp.ne.s32.totalorder %s67, %s68
    %p80 = scmp.eq.s32.totalorder %s16, 1
    %p81 = por %p79, %p80
    %p83 = scmp.ne.s32.totalorder %s68, %s82
    %p84 = scmp.eq.s32.totalorder %s16, 0
    %p85 = por %p83, %p84
    %s87 = sadd.s32 %s86, 1
    %p90 = scmp.eq.s32.totalorder %s10, 1
    %p91 = scmp.ne.s32.totalorder %s86, %s88
    %p92 = scmp.eq.s32.totalorder %s10, 0
    %p93 = por %p91, %p92
    %p94 = scmp.ne.s32.totalorder %s86, %s88
    %p95 = scmp.eq.s32.totalorder %s15, 1
    %p96 = por %p94, %p95
    %p97 = scmp.ne.s32.totalorder %s88, %s89
    %p98 = scmp.eq.s32.totalorder %s15, 0
    %p99 = por %p97, %p98
    %p100 = scmp.ne.s32.totalorder %s88, %s89
    %p101 = scmp.eq.s32.totalorder %s16, 1
    %p102 = por %p100, %p101
    %p104 = scmp.ne.s32.totalorder %s89, %s103
    %p105 = scmp.eq.s32.totalorder %s16, 0
    %p106 = por %p104, %p105
    %s107 = ssub.s32 %s10, %s17
    %p108 = scmp.eq.s32.totalorder %s107, 0
    %s110 = sadd.s32 %s109, 1
    %s111 = scalar_select %p108, %s109, %s110
    %p114 = pneg %p108
    %p115 = scmp.eq.s32.totalorder %s10, 1
    %p116 = por %p114, %p115
    %p117 = scmp.ne.s32.totalorder %s109, %s112
    %p118 = scmp.eq.s32.totalorder %s10, 0
    %p119 = por %p117, %p118
    %p120 = scmp.ne.s32.totalorder %s109, %s112
    %p121 = scmp.eq.s32.totalorder %s15, 1
    %p122 = por %p120, %p121
    %p123 = scmp.ne.s32.totalorder %s112, %s113
    %p124 = scmp.eq.s32.totalorder %s15, 0
    %p125 = por %p123, %p124
    %p126 = scmp.ne.s32.totalorder %s112, %s113
    %p127 = scmp.eq.s32.totalorder %s16, 1
    %p128 = por %p126, %p127
    %p130 = scmp.ne.s32.totalorder %s113, %s129
    %p131 = scmp.eq.s32.totalorder %s16, 0
    %p132 = por %p130, %p131
    %p133 = scmp.le.s32.totalorder 1, %s10
    %p134 = scmp.lt.s32.totalorder %s10, 3
    %p135 = pnand %p133, %p134
    %p136 = pneg %p135
    // Predicated region
    $region9: #{unet_apply.4} parent=5 // pred_check
      _
    $region10: #{unet_apply.4} parent=5 // pred_check_branch
      %138 = sbr.rel (%p135) target = $region12
    $region11: #{unet_apply.4} parent=5 // pred_region
      %s139 = ssub.s32 %s10, 1
      // Predicated region
      $region13: #{unet_apply.4} parent=11 // pred_check
        %p140 = pneg %p57
      $region14: #{unet_apply.4} parent=11 // pred_check_branch
        %142 = sbr.rel (%p140) target = $region16
      $region15: #{unet_apply.4} parent=11 // pred_region
        _
      $region16: #{unet_apply.4} parent=11 // pred_fallthru
        _
      // Predicated region
      $region17: #{unet_apply.4} parent=11 // pred_check
        %p143 = pneg %p78
      $region18: #{unet_apply.4} parent=11 // pred_check_branch
        %145 = sbr.rel (%p143) target = $region20
      $region19: #{unet_apply.4} parent=11 // pred_region
        _
      $region20: #{unet_apply.4} parent=11 // pred_fallthru
        _
      // Predicated region
      $region21: #{unet_apply.4} parent=11 // pred_check
        %p146 = pneg %p99
      $region22: #{unet_apply.4} parent=11 // pred_check_branch
        %148 = sbr.rel (%p146) target = $region24
      $region23: #{unet_apply.4} parent=11 // pred_region
        _
      $region24: #{unet_apply.4} parent=11 // pred_fallthru
        _
    $region12: #{unet_apply.4} parent=5 // pred_fallthru
      _
    %p149 = scmp.lt.s32.totalorder %s10, 2
    // Predicated region
    $region25: #{unet_apply.4} parent=5 // pred_check
      %p150 = pneg %p149
    $region26: #{unet_apply.4} parent=5 // pred_check_branch
      %152 = sbr.rel (%p150) target = $region28
    $region27: #{unet_apply.4} parent=5 // pred_region
      // Predicated region
      $region29: #{unet_apply.4} parent=27 // pred_check
        %p153 = pneg %p30
      $region30: #{unet_apply.4} parent=27 // pred_check_branch
        %155 = sbr.rel (%p153) target = $region32
      $region31: #{unet_apply.4} parent=27 // pred_region
        %p156 = scmp.lt.s32.totalorder %s10, 1
        %s157 = scalar_select %p156, %s10, 1
        %s158 = smul.addr %s157, 16
        %s159 = smul.addr %s158, 8
        %s160 = scalar_lea.vmem %s0, %s159
      $region32: #{unet_apply.4} parent=27 // pred_fallthru
        _
    $region28: #{unet_apply.4} parent=5 // pred_fallthru
      _
    %p161 = scmp.le.s32.totalorder 1, %s10
    %p162 = scmp.lt.s32.totalorder %s10, 3
    %p163 = pnand %p161, %p162
    %p164 = pneg %p163
    // Predicated region
    $region33: #{unet_apply.4} parent=5 // pred_check
      _
    $region34: #{unet_apply.4} parent=5 // pred_check_branch
      %166 = sbr.rel (%p163) target = $region36
    $region35: #{unet_apply.4} parent=5 // pred_region
      %s167 = ssub.s32 %s10, 1
      %p168 = scmp.lt.s32.totalorder %s15, 1
      %s169 = scalar_select %p168, %s15, 1
      %s170 = smul.addr %s169, 16
      %s171 = smul.addr %s170, 8
      %s172 = scalar_lea.vmem %s0, %s171
      %p173 = pneg %p36
      %p174 = pneg %p33
      %p175 = pneg %p57
      %p176 = pneg %p54
      %p177 = pneg %p78
      %p178 = pneg %p75
      %p179 = pneg %p99
      %p180 = pneg %p96
      %p181 = pneg %p125
      %p182 = pneg %p122
      %p183 = scmp.lt.s32.totalorder %s15, 1
      %s184 = scalar_select %p183, %s15, 1
      %s185 = smul.addr %s184, 8
      %s186 = smul.addr %s185, 8
      %s187 = scalar_lea.vmem %s4, %s186
      %p188 = scmp.lt.s32.totalorder %s15, 1
      %s189 = scalar_select %p188, %s15, 1
      %s190 = smul.addr %s189, 16
      %s191 = smul.addr %s190, 8
      %s192 = scalar_lea.vmem %s0, %s191
      %p193 = scmp.lt.s32.totalorder %s15, 1
      %s194 = scalar_select %p193, %s15, 1
      %s195 = smul.addr %s194, 8
      %s196 = smul.addr %s195, 8
      %s197 = scalar_lea.vmem %s4, %s196
      %vm198 = vcmask 97280
      %199 = vst.msk [vmem:[#allocation2] sm:$0xff] %vm198, 0.0
      %vm200 = vcmask 91136
      %201 = vst.msk [vmem:[#allocation2 + $0x8] sm:$0x3] %vm200, 0.0
      %s202 = scalar_lea.vmem [#allocation2], 144
      %203 = vst.msk [vmem:[%s202] sm:$0xff] %vm198, 0.0
      %204 = vst.msk [vmem:[%s202 + $0x8] sm:$0x3] %vm200, 0.0
      %s205 = scalar_lea.vmem [#allocation2], 16
      %vm206 = vcmask 90112
      %207 = vst.msk [vmem:[%s205] sm:$0x1] %vm206, 0.0
      %208 = vst.msk [vmem:[%s205 + $0x10] sm:$0x1] %vm206, 0.0
      %209 = vst.msk [vmem:[%s205 + $0x20] sm:$0x1] %vm206, 0.0
      %210 = vst.msk [vmem:[%s205 + $0x30] sm:$0x1] %vm206, 0.0
      %211 = vst.msk [vmem:[%s205 + $0x40] sm:$0x1] %vm206, 0.0
      %212 = vst.msk [vmem:[%s205 + $0x50] sm:$0x1] %vm206, 0.0
      %213 = vst.msk [vmem:[%s205 + $0x60] sm:$0x1] %vm206, 0.0
      %214 = vst.msk [vmem:[%s205 + $0x70] sm:$0x1] %vm206, 0.0
      %215 = vst.msk [vmem:[%s205 + $0x9] sm:$0x1] %vm206, 0.0
      %216 = vst.msk [vmem:[%s205 + $0x19] sm:$0x1] %vm206, 0.0
      %217 = vst.msk [vmem:[%s205 + $0x29] sm:$0x1] %vm206, 0.0
      %218 = vst.msk [vmem:[%s205 + $0x39] sm:$0x1] %vm206, 0.0
      %219 = vst.msk [vmem:[%s205 + $0x49] sm:$0x1] %vm206, 0.0
      %220 = vst.msk [vmem:[%s205 + $0x59] sm:$0x1] %vm206, 0.0
      %221 = vst.msk [vmem:[%s205 + $0x69] sm:$0x1] %vm206, 0.0
      %222 = vst.msk [vmem:[%s205 + $0x79] sm:$0x1] %vm206, 0.0
      %s223 = scalar_lea.vmem [#allocation2], 160
      %224 = vst.msk [vmem:[%s223] sm:$0xff] %vm198, 0.0
      %225 = vst.msk [vmem:[%s223 + $0x8] sm:$0x3] %vm200, 0.0
      %s226 = scalar_lea.vmem [#allocation2], 304
      %227 = vst.msk [vmem:[%s226] sm:$0xff] %vm198, 0.0
      %228 = vst.msk [vmem:[%s226 + $0x8] sm:$0x3] %vm200, 0.0
      %s229 = scalar_lea.vmem [#allocation2], 176
      %230 = vst.msk [vmem:[%s229] sm:$0x1] %vm206, 0.0
      %231 = vst.msk [vmem:[%s229 + $0x10] sm:$0x1] %vm206, 0.0
      %232 = vst.msk [vmem:[%s229 + $0x20] sm:$0x1] %vm206, 0.0
      %233 = vst.msk [vmem:[%s229 + $0x30] sm:$0x1] %vm206, 0.0
      %234 = vst.msk [vmem:[%s229 + $0x40] sm:$0x1] %vm206, 0.0
      %235 = vst.msk [vmem:[%s229 + $0x50] sm:$0x1] %vm206, 0.0
      %236 = vst.msk [vmem:[%s229 + $0x60] sm:$0x1] %vm206, 0.0
      %237 = vst.msk [vmem:[%s229 + $0x70] sm:$0x1] %vm206, 0.0
      %238 = vst.msk [vmem:[%s229 + $0x9] sm:$0x1] %vm206, 0.0
      %239 = vst.msk [vmem:[%s229 + $0x19] sm:$0x1] %vm206, 0.0
      %240 = vst.msk [vmem:[%s229 + $0x29] sm:$0x1] %vm206, 0.0
      %241 = vst.msk [vmem:[%s229 + $0x39] sm:$0x1] %vm206, 0.0
      %242 = vst.msk [vmem:[%s229 + $0x49] sm:$0x1] %vm206, 0.0
      %243 = vst.msk [vmem:[%s229 + $0x59] sm:$0x1] %vm206, 0.0
      %244 = vst.msk [vmem:[%s229 + $0x69] sm:$0x1] %vm206, 0.0
      %245 = vst.msk [vmem:[%s229 + $0x79] sm:$0x1] %vm206, 0.0
      %s246 = scalar_lea.vmem [#allocation2], 320
      %247 = vst.msk [vmem:[%s246] sm:$0xff] %vm198, 0.0
      %248 = vst.msk [vmem:[%s246 + $0x8] sm:$0x3] %vm200, 0.0
      %s249 = scalar_lea.vmem [#allocation2], 464
      %250 = vst.msk [vmem:[%s249] sm:$0xff] %vm198, 0.0
      %251 = vst.msk [vmem:[%s249 + $0x8] sm:$0x3] %vm200, 0.0
      %s252 = scalar_lea.vmem [#allocation2], 336
      %253 = vst.msk [vmem:[%s252] sm:$0x1] %vm206, 0.0
      %254 = vst.msk [vmem:[%s252 + $0x10] sm:$0x1] %vm206, 0.0
      %255 = vst.msk [vmem:[%s252 + $0x20] sm:$0x1] %vm206, 0.0
      %256 = vst.msk [vmem:[%s252 + $0x30] sm:$0x1] %vm206, 0.0
      %257 = vst.msk [vmem:[%s252 + $0x40] sm:$0x1] %vm206, 0.0
      %258 = vst.msk [vmem:[%s252 + $0x50] sm:$0x1] %vm206, 0.0
      %259 = vst.msk [vmem:[%s252 + $0x60] sm:$0x1] %vm206, 0.0
      %260 = vst.msk [vmem:[%s252 + $0x70] sm:$0x1] %vm206, 0.0
      %261 = vst.msk [vmem:[%s252 + $0x9] sm:$0x1] %vm206, 0.0
      %262 = vst.msk [vmem:[%s252 + $0x19] sm:$0x1] %vm206, 0.0
      %263 = vst.msk [vmem:[%s252 + $0x29] sm:$0x1] %vm206, 0.0
      %264 = vst.msk [vmem:[%s252 + $0x39] sm:$0x1] %vm206, 0.0
      %265 = vst.msk [vmem:[%s252 + $0x49] sm:$0x1] %vm206, 0.0
      %266 = vst.msk [vmem:[%s252 + $0x59] sm:$0x1] %vm206, 0.0
      %267 = vst.msk [vmem:[%s252 + $0x69] sm:$0x1] %vm206, 0.0
      %268 = vst.msk [vmem:[%s252 + $0x79] sm:$0x1] %vm206, 0.0
      %s269 = scalar_lea.vmem [#allocation2], 480
      %270 = vst.msk [vmem:[%s269] sm:$0xff] %vm198, 0.0
      %271 = vst.msk [vmem:[%s269 + $0x8] sm:$0x3] %vm200, 0.0
      %s272 = scalar_lea.vmem [#allocation2], 624
      %273 = vst.msk [vmem:[%s272] sm:$0xff] %vm198, 0.0
      %274 = vst.msk [vmem:[%s272 + $0x8] sm:$0x3] %vm200, 0.0
      %s275 = scalar_lea.vmem [#allocation2], 496
      %276 = vst.msk [vmem:[%s275] sm:$0x1] %vm206, 0.0
      %277 = vst.msk [vmem:[%s275 + $0x10] sm:$0x1] %vm206, 0.0
      %278 = vst.msk [vmem:[%s275 + $0x20] sm:$0x1] %vm206, 0.0
      %279 = vst.msk [vmem:[%s275 + $0x30] sm:$0x1] %vm206, 0.0
      %280 = vst.msk [vmem:[%s275 + $0x40] sm:$0x1] %vm206, 0.0
      %281 = vst.msk [vmem:[%s275 + $0x50] sm:$0x1] %vm206, 0.0
      %282 = vst.msk [vmem:[%s275 + $0x60] sm:$0x1] %vm206, 0.0
      %283 = vst.msk [vmem:[%s275 + $0x70] sm:$0x1] %vm206, 0.0
      %284 = vst.msk [vmem:[%s275 + $0x9] sm:$0x1] %vm206, 0.0
      %285 = vst.msk [vmem:[%s275 + $0x19] sm:$0x1] %vm206, 0.0
      %286 = vst.msk [vmem:[%s275 + $0x29] sm:$0x1] %vm206, 0.0
      %287 = vst.msk [vmem:[%s275 + $0x39] sm:$0x1] %vm206, 0.0
      %288 = vst.msk [vmem:[%s275 + $0x49] sm:$0x1] %vm206, 0.0
      %289 = vst.msk [vmem:[%s275 + $0x59] sm:$0x1] %vm206, 0.0
      %290 = vst.msk [vmem:[%s275 + $0x69] sm:$0x1] %vm206, 0.0
      %291 = vst.msk [vmem:[%s275 + $0x79] sm:$0x1] %vm206, 0.0
      %s292 = scalar_lea.vmem %s1, %s15
      %v293 = vld [vmem:[%s292] sm:$0x1]
      %v294 = vld [vmem:[%s192] sm:$0xff]
      %v295 = vld [vmem:[%s192 + $0x10] sm:$0xff]
      %v296 = vld [vmem:[%s192 + $0x20] sm:$0xff]
      %v297 = vld [vmem:[%s192 + $0x30] sm:$0xff]
      %v298 = vld [vmem:[%s192 + $0x40] sm:$0xff]
      %v299 = vld [vmem:[%s192 + $0x50] sm:$0xff]
      %v300 = vld [vmem:[%s192 + $0x60] sm:$0xff]
      %v301 = vld [vmem:[%s192 + $0x70] sm:$0xff]
      %vm302 = vcmask 31744
      %303 = vst.msk [vmem:[%s205 + $0x1] sm:$0xff] %vm302, %v294
      %304 = vst.msk [vmem:[%s205 + $0x11] sm:$0xff] %vm302, %v295
      %305 = vst.msk [vmem:[%s205 + $0x21] sm:$0xff] %vm302, %v296
      %306 = vst.msk [vmem:[%s205 + $0x31] sm:$0xff] %vm302, %v297
      %307 = vst.msk [vmem:[%s205 + $0x41] sm:$0xff] %vm302, %v298
      %308 = vst.msk [vmem:[%s205 + $0x51] sm:$0xff] %vm302, %v299
      %309 = vst.msk [vmem:[%s205 + $0x61] sm:$0xff] %vm302, %v300
      %310 = vst.msk [vmem:[%s205 + $0x71] sm:$0xff] %vm302, %v301
      %v311 = vlaneseq
      %v312 = vshrl.u32 %v311, 7
      %v313 = vsub.s32 0, %v312
      %v314 = vrot.slane %v293, %v313
      %316 = vrot.lane.b32.xlu0 %v314, 4
      %v317 = vpop.permute.xlu0 %316
      %vm319 = vcmask 97312
      %320 = vst.msk [vmem:[%s205 + $0x1] sm:$0xff] %vm319, %v317
      %321 = vst.msk [vmem:[%s205 + $0x11] sm:$0xff] %vm319, %v317
      %322 = vst.msk [vmem:[%s205 + $0x21] sm:$0xff] %vm319, %v317
      %323 = vst.msk [vmem:[%s205 + $0x31] sm:$0xff] %vm319, %v317
      %324 = vst.msk [vmem:[%s205 + $0x41] sm:$0xff] %vm319, %v317
      %325 = vst.msk [vmem:[%s205 + $0x51] sm:$0xff] %vm319, %v317
      %326 = vst.msk [vmem:[%s205 + $0x61] sm:$0xff] %vm319, %v317
      %327 = vst.msk [vmem:[%s205 + $0x71] sm:$0xff] %vm319, %v317
      %v328 = vld [vmem:[%s192] sm:$0xff]
      %v329 = vld [vmem:[%s192 + $0x10] sm:$0xff]
      %v330 = vld [vmem:[%s192 + $0x20] sm:$0xff]
      %v331 = vld [vmem:[%s192 + $0x30] sm:$0xff]
      %v332 = vld [vmem:[%s192 + $0x40] sm:$0xff]
      %v333 = vld [vmem:[%s192 + $0x50] sm:$0xff]
      %v334 = vld [vmem:[%s192 + $0x60] sm:$0xff]
      %v335 = vld [vmem:[%s192 + $0x70] sm:$0xff]
      %344 = vrot.lane.b32.xlu0 %v328, 124
      %v345 = vpop.permute.xlu0 %344
      %346 = vrot.lane.b32.xlu0 %v329, 124
      %v347 = vpop.permute.xlu0 %346
      %348 = vrot.lane.b32.xlu0 %v330, 124
      %v349 = vpop.permute.xlu0 %348
      %350 = vrot.lane.b32.xlu0 %v331, 124
      %v351 = vpop.permute.xlu0 %350
      %352 = vrot.lane.b32.xlu0 %v332, 124
      %v353 = vpop.permute.xlu0 %352
      %354 = vrot.lane.b32.xlu0 %v333, 124
      %v355 = vpop.permute.xlu0 %354
      %356 = vrot.lane.b32.xlu0 %v334, 124
      %v357 = vpop.permute.xlu0 %356
      %358 = vrot.lane.b32.xlu0 %v335, 124
      %v359 = vpop.permute.xlu0 %358
      %368 = vst.msk [vmem:[%s229 + $0x1] sm:$0xff] %vm302, %v345
      %369 = vst.msk [vmem:[%s229 + $0x11] sm:$0xff] %vm302, %v347
      %370 = vst.msk [vmem:[%s229 + $0x21] sm:$0xff] %vm302, %v349
      %371 = vst.msk [vmem:[%s229 + $0x31] sm:$0xff] %vm302, %v351
      %372 = vst.msk [vmem:[%s229 + $0x41] sm:$0xff] %vm302, %v353
      %373 = vst.msk [vmem:[%s229 + $0x51] sm:$0xff] %vm302, %v355
      %374 = vst.msk [vmem:[%s229 + $0x61] sm:$0xff] %vm302, %v357
      %375 = vst.msk [vmem:[%s229 + $0x71] sm:$0xff] %vm302, %v359
      %376 = vst.msk [vmem:[%s229 + $0x1] sm:$0xff] %vm319, %v317
      %377 = vst.msk [vmem:[%s229 + $0x11] sm:$0xff] %vm319, %v317
      %378 = vst.msk [vmem:[%s229 + $0x21] sm:$0xff] %vm319, %v317
      %379 = vst.msk [vmem:[%s229 + $0x31] sm:$0xff] %vm319, %v317
      %380 = vst.msk [vmem:[%s229 + $0x41] sm:$0xff] %vm319, %v317
      %381 = vst.msk [vmem:[%s229 + $0x51] sm:$0xff] %vm319, %v317
      %382 = vst.msk [vmem:[%s229 + $0x61] sm:$0xff] %vm319, %v317
      %383 = vst.msk [vmem:[%s229 + $0x71] sm:$0xff] %vm319, %v317
      %s384 = scalar_lea.vmem %s192, 8
      %v385 = vld [vmem:[%s384] sm:$0xff]
      %v386 = vld [vmem:[%s384 + $0x10] sm:$0xff]
      %v387 = vld [vmem:[%s384 + $0x20] sm:$0xff]
      %v388 = vld [vmem:[%s384 + $0x30] sm:$0xff]
      %v389 = vld [vmem:[%s384 + $0x40] sm:$0xff]
      %v390 = vld [vmem:[%s384 + $0x50] sm:$0xff]
      %v391 = vld [vmem:[%s384 + $0x60] sm:$0xff]
      %v392 = vld [vmem:[%s384 + $0x70] sm:$0xff]
      %393 = vst.msk [vmem:[%s252 + $0x1] sm:$0xff] %vm302, %v385
      %394 = vst.msk [vmem:[%s252 + $0x11] sm:$0xff] %vm302, %v386
      %395 = vst.msk [vmem:[%s252 + $0x21] sm:$0xff] %vm302, %v387
      %396 = vst.msk [vmem:[%s252 + $0x31] sm:$0xff] %vm302, %v388
      %397 = vst.msk [vmem:[%s252 + $0x41] sm:$0xff] %vm302, %v389
      %398 = vst.msk [vmem:[%s252 + $0x51] sm:$0xff] %vm302, %v390
      %399 = vst.msk [vmem:[%s252 + $0x61] sm:$0xff] %vm302, %v391
      %400 = vst.msk [vmem:[%s252 + $0x71] sm:$0xff] %vm302, %v392
      %401 = vst.msk [vmem:[%s252 + $0x1] sm:$0xff] %vm319, %v317
      %402 = vst.msk [vmem:[%s252 + $0x11] sm:$0xff] %vm319, %v317
      %403 = vst.msk [vmem:[%s252 + $0x21] sm:$0xff] %vm319, %v317
      %404 = vst.msk [vmem:[%s252 + $0x31] sm:$0xff] %vm319, %v317
      %405 = vst.msk [vmem:[%s252 + $0x41] sm:$0xff] %vm319, %v317
      %406 = vst.msk [vmem:[%s252 + $0x51] sm:$0xff] %vm319, %v317
      %407 = vst.msk [vmem:[%s252 + $0x61] sm:$0xff] %vm319, %v317
      %408 = vst.msk [vmem:[%s252 + $0x71] sm:$0xff] %vm319, %v317
      %v409 = vld [vmem:[%s384] sm:$0xff]
      %v410 = vld [vmem:[%s384 + $0x10] sm:$0xff]
      %v411 = vld [vmem:[%s384 + $0x20] sm:$0xff]
      %v412 = vld [vmem:[%s384 + $0x30] sm:$0xff]
      %v413 = vld [vmem:[%s384 + $0x40] sm:$0xff]
      %v414 = vld [vmem:[%s384 + $0x50] sm:$0xff]
      %v415 = vld [vmem:[%s384 + $0x60] sm:$0xff]
      %v416 = vld [vmem:[%s384 + $0x70] sm:$0xff]
      %425 = vrot.lane.b32.xlu0 %v409, 124
      %v426 = vpop.permute.xlu0 %425
      %427 = vrot.lane.b32.xlu0 %v410, 124
      %v428 = vpop.permute.xlu0 %427
      %429 = vrot.lane.b32.xlu0 %v411, 124
      %v430 = vpop.permute.xlu0 %429
      %431 = vrot.lane.b32.xlu0 %v412, 124
      %v432 = vpop.permute.xlu0 %431
      %433 = vrot.lane.b32.xlu0 %v413, 124
      %v434 = vpop.permute.xlu0 %433
      %435 = vrot.lane.b32.xlu0 %v414, 124
      %v436 = vpop.permute.xlu0 %435
      %437 = vrot.lane.b32.xlu0 %v415, 124
      %v438 = vpop.permute.xlu0 %437
      %439 = vrot.lane.b32.xlu0 %v416, 124
      %v440 = vpop.permute.xlu0 %439
      %449 = vst.msk [vmem:[%s275 + $0x1] sm:$0xff] %vm302, %v426
      %450 = vst.msk [vmem:[%s275 + $0x11] sm:$0xff] %vm302, %v428
      %451 = vst.msk [vmem:[%s275 + $0x21] sm:$0xff] %vm302, %v430
      %452 = vst.msk [vmem:[%s275 + $0x31] sm:$0xff] %vm302, %v432
      %453 = vst.msk [vmem:[%s275 + $0x41] sm:$0xff] %vm302, %v434
      %454 = vst.msk [vmem:[%s275 + $0x51] sm:$0xff] %vm302, %v436
      %455 = vst.msk [vmem:[%s275 + $0x61] sm:$0xff] %vm302, %v438
      %456 = vst.msk [vmem:[%s275 + $0x71] sm:$0xff] %vm302, %v440
      %457 = vst.msk [vmem:[%s275 + $0x1] sm:$0xff] %vm319, %v317
      %458 = vst.msk [vmem:[%s275 + $0x11] sm:$0xff] %vm319, %v317
      %459 = vst.msk [vmem:[%s275 + $0x21] sm:$0xff] %vm319, %v317
      %460 = vst.msk [vmem:[%s275 + $0x31] sm:$0xff] %vm319, %v317
      %461 = vst.msk [vmem:[%s275 + $0x41] sm:$0xff] %vm319, %v317
      %462 = vst.msk [vmem:[%s275 + $0x51] sm:$0xff] %vm319, %v317
      %463 = vst.msk [vmem:[%s275 + $0x61] sm:$0xff] %vm319, %v317
      %464 = vst.msk [vmem:[%s275 + $0x71] sm:$0xff] %vm319, %v317
      %v465 = vld [vmem:[%s269] sm:$0xff]
      %v466 = vld [vmem:[%s269 + $0x10] sm:$0xff]
      %v467 = vld [vmem:[%s269 + $0x20] sm:$0xff]
      %v468 = vld [vmem:[%s269 + $0x30] sm:$0xff]
      %v469 = vld [vmem:[%s269 + $0x40] sm:$0xff]
      %v470 = vld [vmem:[%s269 + $0x50] sm:$0xff]
      %v471 = vld [vmem:[%s269 + $0x60] sm:$0xff]
      %v472 = vld [vmem:[%s269 + $0x70] sm:$0xff]
      %473 = vst.msk [vmem:[#allocation3] sm:$0xff] %vm198, %v465
      %474 = vst.msk [vmem:[#allocation3 + $0x10] sm:$0xff] %vm198, %v466
      %475 = vst.msk [vmem:[#allocation3 + $0x20] sm:$0xff] %vm198, %v467
      %476 = vst.msk [vmem:[#allocation3 + $0x30] sm:$0xff] %vm198, %v468
      %477 = vst.msk [vmem:[#allocation3 + $0x40] sm:$0xff] %vm198, %v469
      %478 = vst.msk [vmem:[#allocation3 + $0x50] sm:$0xff] %vm198, %v470
      %479 = vst.msk [vmem:[#allocation3 + $0x60] sm:$0xff] %vm198, %v471
      %480 = vst.msk [vmem:[#allocation3 + $0x70] sm:$0xff] %vm198, %v472
      %v481 = vld [vmem:[%s246 + $0x1] sm:$0xff]
      %v482 = vld [vmem:[%s246 + $0x11] sm:$0xff]
      %v483 = vld [vmem:[%s246 + $0x21] sm:$0xff]
      %v484 = vld [vmem:[%s246 + $0x31] sm:$0xff]
      %v485 = vld [vmem:[%s246 + $0x41] sm:$0xff]
      %v486 = vld [vmem:[%s246 + $0x51] sm:$0xff]
      %v487 = vld [vmem:[%s246 + $0x61] sm:$0xff]
      %v488 = vld [vmem:[%s246 + $0x71] sm:$0xff]
      %497 = vrot.lane.b32.xlu0 %v481, 12
      %v498 = vpop.permute.xlu0 %497
      %499 = vrot.lane.b32.xlu0 %v482, 12
      %v500 = vpop.permute.xlu0 %499
      %501 = vrot.lane.b32.xlu0 %v483, 12
      %v502 = vpop.permute.xlu0 %501
      %503 = vrot.lane.b32.xlu0 %v484, 12
      %v504 = vpop.permute.xlu0 %503
      %505 = vrot.lane.b32.xlu0 %v485, 12
      %v506 = vpop.permute.xlu0 %505
      %507 = vrot.lane.b32.xlu0 %v486, 12
      %v508 = vpop.permute.xlu0 %507
      %509 = vrot.lane.b32.xlu0 %v487, 12
      %v510 = vpop.permute.xlu0 %509
      %511 = vrot.lane.b32.xlu0 %v488, 12
      %v512 = vpop.permute.xlu0 %511
      %vm521 = vcmask 195680
      %522 = vst.msk [vmem:[#allocation3] sm:$0xff] %vm521, %v498
      %523 = vst.msk [vmem:[#allocation3 + $0x10] sm:$0xff] %vm521, %v500
      %524 = vst.msk [vmem:[#allocation3 + $0x20] sm:$0xff] %vm521, %v502
      %525 = vst.msk [vmem:[#allocation3 + $0x30] sm:$0xff] %vm521, %v504
      %526 = vst.msk [vmem:[#allocation3 + $0x40] sm:$0xff] %vm521, %v506
      %527 = vst.msk [vmem:[#allocation3 + $0x50] sm:$0xff] %vm521, %v508
      %528 = vst.msk [vmem:[#allocation3 + $0x60] sm:$0xff] %vm521, %v510
      %529 = vst.msk [vmem:[#allocation3 + $0x70] sm:$0xff] %vm521, %v512
      %v530 = vld [vmem:[%s269 + $0x1] sm:$0xff]
      %v531 = vld [vmem:[%s269 + $0x11] sm:$0xff]
      %v532 = vld [vmem:[%s269 + $0x21] sm:$0xff]
      %v533 = vld [vmem:[%s269 + $0x31] sm:$0xff]
      %v534 = vld [vmem:[%s269 + $0x41] sm:$0xff]
      %v535 = vld [vmem:[%s269 + $0x51] sm:$0xff]
      %v536 = vld [vmem:[%s269 + $0x61] sm:$0xff]
      %v537 = vld [vmem:[%s269 + $0x71] sm:$0xff]
      %546 = vrot.lane.b32.xlu0 %v530, 24
      %v547 = vpop.permute.xlu0 %546
      %548 = vrot.lane.b32.xlu0 %v531, 24
      %v549 = vpop.permute.xlu0 %548
      %550 = vrot.lane.b32.xlu0 %v532, 24
      %v551 = vpop.permute.xlu0 %550
      %552 = vrot.lane.b32.xlu0 %v533, 24
      %v553 = vpop.permute.xlu0 %552
      %554 = vrot.lane.b32.xlu0 %v534, 24
      %v555 = vpop.permute.xlu0 %554
      %556 = vrot.lane.b32.xlu0 %v535, 24
      %v557 = vpop.permute.xlu0 %556
      %558 = vrot.lane.b32.xlu0 %v536, 24
      %v559 = vpop.permute.xlu0 %558
      %560 = vrot.lane.b32.xlu0 %v537, 24
      %v561 = vpop.permute.xlu0 %560
      %vm570 = vcmask 294080
      %571 = vst.msk [vmem:[#allocation3] sm:$0xff] %vm570, %v547
      %572 = vst.msk [vmem:[#allocation3 + $0x10] sm:$0xff] %vm570, %v549
      %573 = vst.msk [vmem:[#allocation3 + $0x20] sm:$0xff] %vm570, %v551
      %574 = vst.msk [vmem:[#allocation3 + $0x30] sm:$0xff] %vm570, %v553
      %575 = vst.msk [vmem:[#allocation3 + $0x40] sm:$0xff] %vm570, %v555
      %576 = vst.msk [vmem:[#allocation3 + $0x50] sm:$0xff] %vm570, %v557
      %577 = vst.msk [vmem:[#allocation3 + $0x60] sm:$0xff] %vm570, %v559
      %578 = vst.msk [vmem:[#allocation3 + $0x70] sm:$0xff] %vm570, %v561
      %v579 = vld [vmem:[%s246 + $0x2] sm:$0xff]
      %v580 = vld [vmem:[%s246 + $0x12] sm:$0xff]
      %v581 = vld [vmem:[%s246 + $0x22] sm:$0xff]
      %v582 = vld [vmem:[%s246 + $0x32] sm:$0xff]
      %v583 = vld [vmem:[%s246 + $0x42] sm:$0xff]
      %v584 = vld [vmem:[%s246 + $0x52] sm:$0xff]
      %v585 = vld [vmem:[%s246 + $0x62] sm:$0xff]
      %v586 = vld [vmem:[%s246 + $0x72] sm:$0xff]
      %595 = vrot.lane.b32.xlu0 %v579, 36
      %v596 = vpop.permute.xlu0 %595
      %597 = vrot.lane.b32.xlu0 %v580, 36
      %v598 = vpop.permute.xlu0 %597
      %599 = vrot.lane.b32.xlu0 %v581, 36
      %v600 = vpop.permute.xlu0 %599
      %601 = vrot.lane.b32.xlu0 %v582, 36
      %v602 = vpop.permute.xlu0 %601
      %603 = vrot.lane.b32.xlu0 %v583, 36
      %v604 = vpop.permute.xlu0 %603
      %605 = vrot.lane.b32.xlu0 %v584, 36
      %v606 = vpop.permute.xlu0 %605
      %607 = vrot.lane.b32.xlu0 %v585, 36
      %v608 = vpop.permute.xlu0 %607
      %609 = vrot.lane.b32.xlu0 %v586, 36
      %v610 = vpop.permute.xlu0 %609
      %vm619 = vcmask 392480
      %620 = vst.msk [vmem:[#allocation3] sm:$0xff] %vm619, %v596
      %621 = vst.msk [vmem:[#allocation3 + $0x10] sm:$0xff] %vm619, %v598
      %622 = vst.msk [vmem:[#allocation3 + $0x20] sm:$0xff] %vm619, %v600
      %623 = vst.msk [vmem:[#allocation3 + $0x30] sm:$0xff] %vm619, %v602
      %624 = vst.msk [vmem:[#allocation3 + $0x40] sm:$0xff] %vm619, %v604
      %625 = vst.msk [vmem:[#allocation3 + $0x50] sm:$0xff] %vm619, %v606
      %626 = vst.msk [vmem:[#allocation3 + $0x60] sm:$0xff] %vm619, %v608
      %627 = vst.msk [vmem:[#allocation3 + $0x70] sm:$0xff] %vm619, %v610
      %v628 = vld [vmem:[%s229] sm:$0xff]
      %v629 = vld [vmem:[%s229 + $0x10] sm:$0xff]
      %v630 = vld [vmem:[%s229 + $0x20] sm:$0xff]
      %v631 = vld [vmem:[%s229 + $0x30] sm:$0xff]
      %v632 = vld [vmem:[%s229 + $0x40] sm:$0xff]
      %v633 = vld [vmem:[%s229 + $0x50] sm:$0xff]
      %v634 = vld [vmem:[%s229 + $0x60] sm:$0xff]
      %v635 = vld [vmem:[%s229 + $0x70] sm:$0xff]
      %644 = vrot.lane.b32.xlu0 %v628, 48
      %v645 = vpop.permute.xlu0 %644
      %646 = vrot.lane.b32.xlu0 %v629, 48
      %v647 = vpop.permute.xlu0 %646
      %648 = vrot.lane.b32.xlu0 %v630, 48
      %v649 = vpop.permute.xlu0 %648
      %650 = vrot.lane.b32.xlu0 %v631, 48
      %v651 = vpop.permute.xlu0 %650
      %652 = vrot.lane.b32.xlu0 %v632, 48
      %v653 = vpop.permute.xlu0 %652
      %654 = vrot.lane.b32.xlu0 %v633, 48
      %v655 = vpop.permute.xlu0 %654
      %656 = vrot.lane.b32.xlu0 %v634, 48
      %v657 = vpop.permute.xlu0 %656
      %658 = vrot.lane.b32.xlu0 %v635, 48
      %v659 = vpop.permute.xlu0 %658
      %vm668 = vcmask 490880
      %669 = vst.msk [vmem:[#allocation3] sm:$0xff] %vm668, %v645
      %670 = vst.msk [vmem:[#allocation3 + $0x10] sm:$0xff] %vm668, %v647
      %671 = vst.msk [vmem:[#allocation3 + $0x20] sm:$0xff] %vm668, %v649
      %672 = vst.msk [vmem:[#allocation3 + $0x30] sm:$0xff] %vm668, %v651
      %673 = vst.msk [vmem:[#allocation3 + $0x40] sm:$0xff] %vm668, %v653
      %674 = vst.msk [vmem:[#allocation3 + $0x50] sm:$0xff] %vm668, %v655
      %675 = vst.msk [vmem:[#allocation3 + $0x60] sm:$0xff] %vm668, %v657
      %676 = vst.msk [vmem:[#allocation3 + $0x70] sm:$0xff] %vm668, %v659
      %v677 = vld [vmem:[%s205 + $0x1] sm:$0xff]
      %v678 = vld [vmem:[%s205 + $0x11] sm:$0xff]
      %v679 = vld [vmem:[%s205 + $0x21] sm:$0xff]
      %v680 = vld [vmem:[%s205 + $0x31] sm:$0xff]
      %v681 = vld [vmem:[%s205 + $0x41] sm:$0xff]
      %v682 = vld [vmem:[%s205 + $0x51] sm:$0xff]
      %v683 = vld [vmem:[%s205 + $0x61] sm:$0xff]
      %v684 = vld [vmem:[%s205 + $0x71] sm:$0xff]
      %693 = vrot.lane.b32.xlu0 %v677, 60
      %v694 = vpop.permute.xlu0 %693
      %695 = vrot.lane.b32.xlu0 %v678, 60
      %v696 = vpop.permute.xlu0 %695
      %697 = vrot.lane.b32.xlu0 %v679, 60
      %v698 = vpop.permute.xlu0 %697
      %699 = vrot.lane.b32.xlu0 %v680, 60
      %v700 = vpop.permute.xlu0 %699
      %701 = vrot.lane.b32.xlu0 %v681, 60
      %v702 = vpop.permute.xlu0 %701
      %703 = vrot.lane.b32.xlu0 %v682, 60
      %v704 = vpop.permute.xlu0 %703
      %705 = vrot.lane.b32.xlu0 %v683, 60
      %v706 = vpop.permute.xlu0 %705
      %707 = vrot.lane.b32.xlu0 %v684, 60
      %v708 = vpop.permute.xlu0 %707
      %vm717 = vcmask 589280
      %718 = vst.msk [vmem:[#allocation3] sm:$0xff] %vm717, %v694
      %719 = vst.msk [vmem:[#allocation3 + $0x10] sm:$0xff] %vm717, %v696
      %720 = vst.msk [vmem:[#allocation3 + $0x20] sm:$0xff] %vm717, %v698
      %721 = vst.msk [vmem:[#allocation3 + $0x30] sm:$0xff] %vm717, %v700
      %722 = vst.msk [vmem:[#allocation3 + $0x40] sm:$0xff] %vm717, %v702
      %723 = vst.msk [vmem:[#allocation3 + $0x50] sm:$0xff] %vm717, %v704
      %724 = vst.msk [vmem:[#allocation3 + $0x60] sm:$0xff] %vm717, %v706
      %725 = vst.msk [vmem:[#allocation3 + $0x70] sm:$0xff] %vm717, %v708
      %v726 = vld [vmem:[%s229 + $0x1] sm:$0xff]
      %v727 = vld [vmem:[%s229 + $0x11] sm:$0xff]
      %v728 = vld [vmem:[%s229 + $0x21] sm:$0xff]
      %v729 = vld [vmem:[%s229 + $0x31] sm:$0xff]
      %v730 = vld [vmem:[%s229 + $0x41] sm:$0xff]
      %v731 = vld [vmem:[%s229 + $0x51] sm:$0xff]
      %v732 = vld [vmem:[%s229 + $0x61] sm:$0xff]
      %v733 = vld [vmem:[%s229 + $0x71] sm:$0xff]
      %742 = vrot.lane.b32.xlu0 %v726, 72
      %v743 = vpop.permute.xlu0 %742
      %744 = vrot.lane.b32.xlu0 %v727, 72
      %v745 = vpop.permute.xlu0 %744
      %746 = vrot.lane.b32.xlu0 %v728, 72
      %v747 = vpop.permute.xlu0 %746
      %748 = vrot.lane.b32.xlu0 %v729, 72
      %v749 = vpop.permute.xlu0 %748
      %750 = vrot.lane.b32.xlu0 %v730, 72
      %v751 = vpop.permute.xlu0 %750
      %752 = vrot.lane.b32.xlu0 %v731, 72
      %v753 = vpop.permute.xlu0 %752
      %754 = vrot.lane.b32.xlu0 %v732, 72
      %v755 = vpop.permute.xlu0 %754
      %756 = vrot.lane.b32.xlu0 %v733, 72
      %v757 = vpop.permute.xlu0 %756
      %vm766 = vcmask 687680
      %767 = vst.msk [vmem:[#allocation3] sm:$0xff] %vm766, %v743
      %768 = vst.msk [vmem:[#allocation3 + $0x10] sm:$0xff] %vm766, %v745
      %769 = vst.msk [vmem:[#allocation3 + $0x20] sm:$0xff] %vm766, %v747
      %770 = vst.msk [vmem:[#allocation3 + $0x30] sm:$0xff] %vm766, %v749
      %771 = vst.msk [vmem:[#allocation3 + $0x40] sm:$0xff] %vm766, %v751
      %772 = vst.msk [vmem:[#allocation3 + $0x50] sm:$0xff] %vm766, %v753
      %773 = vst.msk [vmem:[#allocation3 + $0x60] sm:$0xff] %vm766, %v755
      %774 = vst.msk [vmem:[#allocation3 + $0x70] sm:$0xff] %vm766, %v757
      %v775 = vld [vmem:[%s205 + $0x2] sm:$0xff]
      %v776 = vld [vmem:[%s205 + $0x12] sm:$0xff]
      %v777 = vld [vmem:[%s205 + $0x22] sm:$0xff]
      %v778 = vld [vmem:[%s205 + $0x32] sm:$0xff]
      %v779 = vld [vmem:[%s205 + $0x42] sm:$0xff]
      %v780 = vld [vmem:[%s205 + $0x52] sm:$0xff]
      %v781 = vld [vmem:[%s205 + $0x62] sm:$0xff]
      %v782 = vld [vmem:[%s205 + $0x72] sm:$0xff]
      %791 = vrot.lane.b32.xlu0 %v775, 84
      %v792 = vpop.permute.xlu0 %791
      %793 = vrot.lane.b32.xlu0 %v776, 84
      %v794 = vpop.permute.xlu0 %793
      %795 = vrot.lane.b32.xlu0 %v777, 84
      %v796 = vpop.permute.xlu0 %795
      %797 = vrot.lane.b32.xlu0 %v778, 84
      %v798 = vpop.permute.xlu0 %797
      %799 = vrot.lane.b32.xlu0 %v779, 84
      %v800 = vpop.permute.xlu0 %799
      %801 = vrot.lane.b32.xlu0 %v780, 84
      %v802 = vpop.permute.xlu0 %801
      %803 = vrot.lane.b32.xlu0 %v781, 84
      %v804 = vpop.permute.xlu0 %803
      %805 = vrot.lane.b32.xlu0 %v782, 84
      %v806 = vpop.permute.xlu0 %805
      %vm815 = vcmask 786080
      %816 = vst.msk [vmem:[#allocation3] sm:$0xff] %vm815, %v792
      %817 = vst.msk [vmem:[#allocation3 + $0x10] sm:$0xff] %vm815, %v794
      %818 = vst.msk [vmem:[#allocation3 + $0x20] sm:$0xff] %vm815, %v796
      %819 = vst.msk [vmem:[#allocation3 + $0x30] sm:$0xff] %vm815, %v798
      %820 = vst.msk [vmem:[#allocation3 + $0x40] sm:$0xff] %vm815, %v800
      %821 = vst.msk [vmem:[#allocation3 + $0x50] sm:$0xff] %vm815, %v802
      %822 = vst.msk [vmem:[#allocation3 + $0x60] sm:$0xff] %vm815, %v804
      %823 = vst.msk [vmem:[#allocation3 + $0x70] sm:$0xff] %vm815, %v806
      %v824 = vld [vmem:[%s275] sm:$0xff]
      %v825 = vld [vmem:[%s275 + $0x10] sm:$0xff]
      %v826 = vld [vmem:[%s275 + $0x20] sm:$0xff]
      %v827 = vld [vmem:[%s275 + $0x30] sm:$0xff]
      %v828 = vld [vmem:[%s275 + $0x40] sm:$0xff]
      %v829 = vld [vmem:[%s275 + $0x50] sm:$0xff]
      %v830 = vld [vmem:[%s275 + $0x60] sm:$0xff]
      %v831 = vld [vmem:[%s275 + $0x70] sm:$0xff]
      %840 = vrot.lane.b32.xlu0 %v824, 96
      %v841 = vpop.permute.xlu0 %840
      %842 = vrot.lane.b32.xlu0 %v825, 96
      %v843 = vpop.permute.xlu0 %842
      %844 = vrot.lane.b32.xlu0 %v826, 96
      %v845 = vpop.permute.xlu0 %844
      %846 = vrot.lane.b32.xlu0 %v827, 96
      %v847 = vpop.permute.xlu0 %846
      %848 = vrot.lane.b32.xlu0 %v828, 96
      %v849 = vpop.permute.xlu0 %848
      %850 = vrot.lane.b32.xlu0 %v829, 96
      %v851 = vpop.permute.xlu0 %850
      %852 = vrot.lane.b32.xlu0 %v830, 96
      %v853 = vpop.permute.xlu0 %852
      %854 = vrot.lane.b32.xlu0 %v831, 96
      %v855 = vpop.permute.xlu0 %854
      %vm864 = vcmask 884480
      %865 = vst.msk [vmem:[#allocation3] sm:$0xff] %vm864, %v841
      %866 = vst.msk [vmem:[#allocation3 + $0x10] sm:$0xff] %vm864, %v843
      %867 = vst.msk [vmem:[#allocation3 + $0x20] sm:$0xff] %vm864, %v845
      %868 = vst.msk [vmem:[#allocation3 + $0x30] sm:$0xff] %vm864, %v847
      %869 = vst.msk [vmem:[#allocation3 + $0x40] sm:$0xff] %vm864, %v849
      %870 = vst.msk [vmem:[#allocation3 + $0x50] sm:$0xff] %vm864, %v851
      %871 = vst.msk [vmem:[#allocation3 + $0x60] sm:$0xff] %vm864, %v853
      %872 = vst.msk [vmem:[#allocation3 + $0x70] sm:$0xff] %vm864, %v855
      %v873 = vld [vmem:[%s252 + $0x1] sm:$0xff]
      %v874 = vld [vmem:[%s252 + $0x11] sm:$0xff]
      %v875 = vld [vmem:[%s252 + $0x21] sm:$0xff]
      %v876 = vld [vmem:[%s252 + $0x31] sm:$0xff]
      %v877 = vld [vmem:[%s252 + $0x41] sm:$0xff]
      %v878 = vld [vmem:[%s252 + $0x51] sm:$0xff]
      %v879 = vld [vmem:[%s252 + $0x61] sm:$0xff]
      %v880 = vld [vmem:[%s252 + $0x71] sm:$0xff]
      %889 = vrot.lane.b32.xlu0 %v873, 108
      %v890 = vpop.permute.xlu0 %889
      %891 = vrot.lane.b32.xlu0 %v874, 108
      %v892 = vpop.permute.xlu0 %891
      %893 = vrot.lane.b32.xlu0 %v875, 108
      %v894 = vpop.permute.xlu0 %893
      %895 = vrot.lane.b32.xlu0 %v876, 108
      %v896 = vpop.permute.xlu0 %895
      %897 = vrot.lane.b32.xlu0 %v877, 108
      %v898 = vpop.permute.xlu0 %897
      %899 = vrot.lane.b32.xlu0 %v878, 108
      %v900 = vpop.permute.xlu0 %899
      %901 = vrot.lane.b32.xlu0 %v879, 108
      %v902 = vpop.permute.xlu0 %901
      %903 = vrot.lane.b32.xlu0 %v880, 108
      %v904 = vpop.permute.xlu0 %903
      %vm913 = vcmask 982880
      %914 = vst.msk [vmem:[#allocation3] sm:$0xff] %vm913, %v890
      %915 = vst.msk [vmem:[#allocation3 + $0x10] sm:$0xff] %vm913, %v892
      %916 = vst.msk [vmem:[#allocation3 + $0x20] sm:$0xff] %vm913, %v894
      %917 = vst.msk [vmem:[#allocation3 + $0x30] sm:$0xff] %vm913, %v896
      %918 = vst.msk [vmem:[#allocation3 + $0x40] sm:$0xff] %vm913, %v898
      %919 = vst.msk [vmem:[#allocation3 + $0x50] sm:$0xff] %vm913, %v900
      %920 = vst.msk [vmem:[#allocation3 + $0x60] sm:$0xff] %vm913, %v902
      %921 = vst.msk [vmem:[#allocation3 + $0x70] sm:$0xff] %vm913, %v904
      %v922 = vld [vmem:[%s275 + $0x1] sm:$0xff]
      %v923 = vld [vmem:[%s275 + $0x11] sm:$0xff]
      %v924 = vld [vmem:[%s275 + $0x21] sm:$0xff]
      %v925 = vld [vmem:[%s275 + $0x31] sm:$0xff]
      %v926 = vld [vmem:[%s275 + $0x41] sm:$0xff]
      %v927 = vld [vmem:[%s275 + $0x51] sm:$0xff]
      %v928 = vld [vmem:[%s275 + $0x61] sm:$0xff]
      %v929 = vld [vmem:[%s275 + $0x71] sm:$0xff]
      %938 = vrot.lane.b32.xlu0 %v922, 120
      %v939 = vpop.permute.xlu0 %938
      %940 = vrot.lane.b32.xlu0 %v923, 120
      %v941 = vpop.permute.xlu0 %940
      %942 = vrot.lane.b32.xlu0 %v924, 120
      %v943 = vpop.permute.xlu0 %942
      %944 = vrot.lane.b32.xlu0 %v925, 120
      %v945 = vpop.permute.xlu0 %944
      %946 = vrot.lane.b32.xlu0 %v926, 120
      %v947 = vpop.permute.xlu0 %946
      %948 = vrot.lane.b32.xlu0 %v927, 120
      %v949 = vpop.permute.xlu0 %948
      %950 = vrot.lane.b32.xlu0 %v928, 120
      %v951 = vpop.permute.xlu0 %950
      %952 = vrot.lane.b32.xlu0 %v929, 120
      %v953 = vpop.permute.xlu0 %952
      %vm962 = vcmask 1048512
      %963 = vst.msk [vmem:[#allocation3] sm:$0xff] %vm962, %v939
      %964 = vst.msk [vmem:[#allocation3 + $0x8] sm:$0xff] %vm302, %v939
      %965 = vst.msk [vmem:[#allocation3 + $0x10] sm:$0xff] %vm962, %v941
      %966 = vst.msk [vmem:[#allocation3 + $0x18] sm:$0xff] %vm302, %v941
      %967 = vst.msk [vmem:[#allocation3 + $0x20] sm:$0xff] %vm962, %v943
      %968 = vst.msk [vmem:[#allocation3 + $0x28] sm:$0xff] %vm302, %v943
      %969 = vst.msk [vmem:[#allocation3 + $0x30] sm:$0xff] %vm962, %v945
      %970 = vst.msk [vmem:[#allocation3 + $0x38] sm:$0xff] %vm302, %v945
      %971 = vst.msk [vmem:[#allocation3 + $0x40] sm:$0xff] %vm962, %v947
      %972 = vst.msk [vmem:[#allocation3 + $0x48] sm:$0xff] %vm302, %v947
      %973 = vst.msk [vmem:[#allocation3 + $0x50] sm:$0xff] %vm962, %v949
      %974 = vst.msk [vmem:[#allocation3 + $0x58] sm:$0xff] %vm302, %v949
      %975 = vst.msk [vmem:[#allocation3 + $0x60] sm:$0xff] %vm962, %v951
      %976 = vst.msk [vmem:[#allocation3 + $0x68] sm:$0xff] %vm302, %v951
      %977 = vst.msk [vmem:[#allocation3 + $0x70] sm:$0xff] %vm962, %v953
      %978 = vst.msk [vmem:[#allocation3 + $0x78] sm:$0xff] %vm302, %v953
      %v979 = vld [vmem:[%s252 + $0x2] sm:$0xff]
      %v980 = vld [vmem:[%s252 + $0x12] sm:$0xff]
      %v981 = vld [vmem:[%s252 + $0x22] sm:$0xff]
      %v982 = vld [vmem:[%s252 + $0x32] sm:$0xff]
      %v983 = vld [vmem:[%s252 + $0x42] sm:$0xff]
      %v984 = vld [vmem:[%s252 + $0x52] sm:$0xff]
      %v985 = vld [vmem:[%s252 + $0x62] sm:$0xff]
      %v986 = vld [vmem:[%s252 + $0x72] sm:$0xff]
      %995 = vrot.lane.b32.xlu0 %v979, 4
      %v996 = vpop.permute.xlu0 %995
      %997 = vrot.lane.b32.xlu0 %v980, 4
      %v998 = vpop.permute.xlu0 %997
      %999 = vrot.lane.b32.xlu0 %v981, 4
      %v1000 = vpop.permute.xlu0 %999
      %1001 = vrot.lane.b32.xlu0 %v982, 4
      %v1002 = vpop.permute.xlu0 %1001
      %1003 = vrot.lane.b32.xlu0 %v983, 4
      %v1004 = vpop.permute.xlu0 %1003
      %1005 = vrot.lane.b32.xlu0 %v984, 4
      %v1006 = vpop.permute.xlu0 %1005
      %1007 = vrot.lane.b32.xlu0 %v985, 4
      %v1008 = vpop.permute.xlu0 %1007
      %1009 = vrot.lane.b32.xlu0 %v986, 4
      %v1010 = vpop.permute.xlu0 %1009
      %vm1019 = vcmask 130080
      %1020 = vst.msk [vmem:[#allocation3 + $0x8] sm:$0xff] %vm1019, %v996
      %1021 = vst.msk [vmem:[#allocation3 + $0x18] sm:$0xff] %vm1019, %v998
      %1022 = vst.msk [vmem:[#allocation3 + $0x28] sm:$0xff] %vm1019, %v1000
      %1023 = vst.msk [vmem:[#allocation3 + $0x38] sm:$0xff] %vm1019, %v1002
      %1024 = vst.msk [vmem:[#allocation3 + $0x48] sm:$0xff] %vm1019, %v1004
      %1025 = vst.msk [vmem:[#allocation3 + $0x58] sm:$0xff] %vm1019, %v1006
      %1026 = vst.msk [vmem:[#allocation3 + $0x68] sm:$0xff] %vm1019, %v1008
      %1027 = vst.msk [vmem:[#allocation3 + $0x78] sm:$0xff] %vm1019, %v1010
      %s1028 = scalar_lea.vmem [#allocation2], 192
      %v1029 = vld [vmem:[%s1028] sm:$0xff]
      %v1030 = vld [vmem:[%s1028 + $0x10] sm:$0xff]
      %v1031 = vld [vmem:[%s1028 + $0x20] sm:$0xff]
      %v1032 = vld [vmem:[%s1028 + $0x30] sm:$0xff]
      %v1033 = vld [vmem:[%s1028 + $0x40] sm:$0xff]
      %v1034 = vld [vmem:[%s1028 + $0x50] sm:$0xff]
      %v1035 = vld [vmem:[%s1028 + $0x60] sm:$0xff]
      %v1036 = vld [vmem:[%s1028 + $0x70] sm:$0xff]
      %1045 = vrot.lane.b32.xlu0 %v1029, 16
      %v1046 = vpop.permute.xlu0 %1045
      %1047 = vrot.lane.b32.xlu0 %v1030, 16
      %v1048 = vpop.permute.xlu0 %1047
      %1049 = vrot.lane.b32.xlu0 %v1031, 16
      %v1050 = vpop.permute.xlu0 %1049
      %1051 = vrot.lane.b32.xlu0 %v1032, 16
      %v1052 = vpop.permute.xlu0 %1051
      %1053 = vrot.lane.b32.xlu0 %v1033, 16
      %v1054 = vpop.permute.xlu0 %1053
      %1055 = vrot.lane.b32.xlu0 %v1034, 16
      %v1056 = vpop.permute.xlu0 %1055
      %1057 = vrot.lane.b32.xlu0 %v1035, 16
      %v1058 = vpop.permute.xlu0 %1057
      %1059 = vrot.lane.b32.xlu0 %v1036, 16
      %v1060 = vpop.permute.xlu0 %1059
      %vm1069 = vcmask 228480
      %1070 = vst.msk [vmem:[#allocation3 + $0x8] sm:$0xff] %vm1069, %v1046
      %1071 = vst.msk [vmem:[#allocation3 + $0x18] sm:$0xff] %vm1069, %v1048
      %1072 = vst.msk [vmem:[#allocation3 + $0x28] sm:$0xff] %vm1069, %v1050
      %1073 = vst.msk [vmem:[#allocation3 + $0x38] sm:$0xff] %vm1069, %v1052
      %1074 = vst.msk [vmem:[#allocation3 + $0x48] sm:$0xff] %vm1069, %v1054
      %1075 = vst.msk [vmem:[#allocation3 + $0x58] sm:$0xff] %vm1069, %v1056
      %1076 = vst.msk [vmem:[#allocation3 + $0x68] sm:$0xff] %vm1069, %v1058
      %1077 = vst.msk [vmem:[#allocation3 + $0x78] sm:$0xff] %vm1069, %v1060
      %s1078 = scalar_lea.vmem [#allocation2], 32
      %v1079 = vld [vmem:[%s1078 + $0x1] sm:$0xff]
      %v1080 = vld [vmem:[%s1078 + $0x11] sm:$0xff]
      %v1081 = vld [vmem:[%s1078 + $0x21] sm:$0xff]
      %v1082 = vld [vmem:[%s1078 + $0x31] sm:$0xff]
      %v1083 = vld [vmem:[%s1078 + $0x41] sm:$0xff]
      %v1084 = vld [vmem:[%s1078 + $0x51] sm:$0xff]
      %v1085 = vld [vmem:[%s1078 + $0x61] sm:$0xff]
      %v1086 = vld [vmem:[%s1078 + $0x71] sm:$0xff]
      %1095 = vrot.lane.b32.xlu0 %v1079, 28
      %v1096 = vpop.permute.xlu0 %1095
      %1097 = vrot.lane.b32.xlu0 %v1080, 28
      %v1098 = vpop.permute.xlu0 %1097
      %1099 = vrot.lane.b32.xlu0 %v1081, 28
      %v1100 = vpop.permute.xlu0 %1099
      %1101 = vrot.lane.b32.xlu0 %v1082, 28
      %v1102 = vpop.permute.xlu0 %1101
      %1103 = vrot.lane.b32.xlu0 %v1083, 28
      %v1104 = vpop.permute.xlu0 %1103
      %1105 = vrot.lane.b32.xlu0 %v1084, 28
      %v1106 = vpop.permute.xlu0 %1105
      %1107 = vrot.lane.b32.xlu0 %v1085, 28
      %v1108 = vpop.permute.xlu0 %1107
      %1109 = vrot.lane.b32.xlu0 %v1086, 28
      %v1110 = vpop.permute.xlu0 %1109
      %vm1119 = vcmask 326880
      %1120 = vst.msk [vmem:[#allocation3 + $0x8] sm:$0xff] %vm1119, %v1096
      %1121 = vst.msk [vmem:[#allocation3 + $0x18] sm:$0xff] %vm1119, %v1098
      %1122 = vst.msk [vmem:[#allocation3 + $0x28] sm:$0xff] %vm1119, %v1100
      %1123 = vst.msk [vmem:[#allocation3 + $0x38] sm:$0xff] %vm1119, %v1102
      %1124 = vst.msk [vmem:[#allocation3 + $0x48] sm:$0xff] %vm1119, %v1104
      %1125 = vst.msk [vmem:[#allocation3 + $0x58] sm:$0xff] %vm1119, %v1106
      %1126 = vst.msk [vmem:[#allocation3 + $0x68] sm:$0xff] %vm1119, %v1108
      %1127 = vst.msk [vmem:[#allocation3 + $0x78] sm:$0xff] %vm1119, %v1110
      %v1128 = vld [vmem:[%s1028 + $0x1] sm:$0xff]
      %v1129 = vld [vmem:[%s1028 + $0x11] sm:$0xff]
      %v1130 = vld [vmem:[%s1028 + $0x21] sm:$0xff]
      %v1131 = vld [vmem:[%s1028 + $0x31] sm:$0xff]
      %v1132 = vld [vmem:[%s1028 + $0x41] sm:$0xff]
      %v1133 = vld [vmem:[%s1028 + $0x51] sm:$0xff]
      %v1134 = vld [vmem:[%s1028 + $0x61] sm:$0xff]
      %v1135 = vld [vmem:[%s1028 + $0x71] sm:$0xff]
      %1144 = vrot.lane.b32.xlu0 %v1128, 40
      %v1145 = vpop.permute.xlu0 %1144
      %1146 = vrot.lane.b32.xlu0 %v1129, 40
      %v1147 = vpop.permute.xlu0 %1146
      %1148 = vrot.lane.b32.xlu0 %v1130, 40
      %v1149 = vpop.permute.xlu0 %1148
      %1150 = vrot.lane.b32.xlu0 %v1131, 40
      %v1151 = vpop.permute.xlu0 %1150
      %1152 = vrot.lane.b32.xlu0 %v1132, 40
      %v1153 = vpop.permute.xlu0 %1152
      %1154 = vrot.lane.b32.xlu0 %v1133, 40
      %v1155 = vpop.permute.xlu0 %1154
      %1156 = vrot.lane.b32.xlu0 %v1134, 40
      %v1157 = vpop.permute.xlu0 %1156
      %1158 = vrot.lane.b32.xlu0 %v1135, 40
      %v1159 = vpop.permute.xlu0 %1158
      %vm1168 = vcmask 425280
      %1169 = vst.msk [vmem:[#allocation3 + $0x8] sm:$0xff] %vm1168, %v1145
      %1170 = vst.msk [vmem:[#allocation3 + $0x18] sm:$0xff] %vm1168, %v1147
      %1171 = vst.msk [vmem:[#allocation3 + $0x28] sm:$0xff] %vm1168, %v1149
      %1172 = vst.msk [vmem:[#allocation3 + $0x38] sm:$0xff] %vm1168, %v1151
      %1173 = vst.msk [vmem:[#allocation3 + $0x48] sm:$0xff] %vm1168, %v1153
      %1174 = vst.msk [vmem:[#allocation3 + $0x58] sm:$0xff] %vm1168, %v1155
      %1175 = vst.msk [vmem:[#allocation3 + $0x68] sm:$0xff] %vm1168, %v1157
      %1176 = vst.msk [vmem:[#allocation3 + $0x78] sm:$0xff] %vm1168, %v1159
      %v1177 = vld [vmem:[%s1078 + $0x2] sm:$0xff]
      %v1178 = vld [vmem:[%s1078 + $0x12] sm:$0xff]
      %v1179 = vld [vmem:[%s1078 + $0x22] sm:$0xff]
      %v1180 = vld [vmem:[%s1078 + $0x32] sm:$0xff]
      %v1181 = vld [vmem:[%s1078 + $0x42] sm:$0xff]
      %v1182 = vld [vmem:[%s1078 + $0x52] sm:$0xff]
      %v1183 = vld [vmem:[%s1078 + $0x62] sm:$0xff]
      %v1184 = vld [vmem:[%s1078 + $0x72] sm:$0xff]
      %1193 = vrot.lane.b32.xlu0 %v1177, 52
      %v1194 = vpop.permute.xlu0 %1193
      %1195 = vrot.lane.b32.xlu0 %v1178, 52
      %v1196 = vpop.permute.xlu0 %1195
      %1197 = vrot.lane.b32.xlu0 %v1179, 52
      %v1198 = vpop.permute.xlu0 %1197
      %1199 = vrot.lane.b32.xlu0 %v1180, 52
      %v1200 = vpop.permute.xlu0 %1199
      %1201 = vrot.lane.b32.xlu0 %v1181, 52
      %v1202 = vpop.permute.xlu0 %1201
      %1203 = vrot.lane.b32.xlu0 %v1182, 52
      %v1204 = vpop.permute.xlu0 %1203
      %1205 = vrot.lane.b32.xlu0 %v1183, 52
      %v1206 = vpop.permute.xlu0 %1205
      %1207 = vrot.lane.b32.xlu0 %v1184, 52
      %v1208 = vpop.permute.xlu0 %1207
      %vm1217 = vcmask 523680
      %1218 = vst.msk [vmem:[#allocation3 + $0x8] sm:$0xff] %vm1217, %v1194
      %1219 = vst.msk [vmem:[#allocation3 + $0x18] sm:$0xff] %vm1217, %v1196
      %1220 = vst.msk [vmem:[#allocation3 + $0x28] sm:$0xff] %vm1217, %v1198
      %1221 = vst.msk [vmem:[#allocation3 + $0x38] sm:$0xff] %vm1217, %v1200
      %1222 = vst.msk [vmem:[#allocation3 + $0x48] sm:$0xff] %vm1217, %v1202
      %1223 = vst.msk [vmem:[#allocation3 + $0x58] sm:$0xff] %vm1217, %v1204
      %1224 = vst.msk [vmem:[#allocation3 + $0x68] sm:$0xff] %vm1217, %v1206
      %1225 = vst.msk [vmem:[#allocation3 + $0x78] sm:$0xff] %vm1217, %v1208
      %v1226 = vld [vmem:[#allocation3] sm:$0xff]
      %v1227 = vld [vmem:[#allocation3 + $0x8] sm:$0xff]
      %v1228 = vld [vmem:[#allocation3 + $0x10] sm:$0xff]
      %v1229 = vld [vmem:[#allocation3 + $0x18] sm:$0xff]
      %v1230 = vld [vmem:[#allocation3 + $0x20] sm:$0xff]
      %v1231 = vld [vmem:[#allocation3 + $0x28] sm:$0xff]
      %v1232 = vld [vmem:[#allocation3 + $0x30] sm:$0xff]
      %v1233 = vld [vmem:[#allocation3 + $0x38] sm:$0xff]
      %v1234 = vld [vmem:[#allocation3 + $0x40] sm:$0xff]
      %v1235 = vld [vmem:[#allocation3 + $0x48] sm:$0xff]
      %v1236 = vld [vmem:[#allocation3 + $0x50] sm:$0xff]
      %v1237 = vld [vmem:[#allocation3 + $0x58] sm:$0xff]
      %v1238 = vld [vmem:[#allocation3 + $0x60] sm:$0xff]
      %v1239 = vld [vmem:[#allocation3 + $0x68] sm:$0xff]
      %v1240 = vld [vmem:[#allocation3 + $0x70] sm:$0xff]
      %v1241 = vld [vmem:[#allocation3 + $0x78] sm:$0xff]
      %v1242 = vld [vmem:[%s2] sm:$0xff]
      %v1243 = vld [vmem:[%s2 + $0x8] sm:$0xff]
      %v1244 = vld [vmem:[%s2 + $0x10] sm:$0xff]
      %v1245 = vld [vmem:[%s2 + $0x18] sm:$0xff]
      %v1246 = vld [vmem:[%s2 + $0x20] sm:$0xff]
      %v1247 = vld [vmem:[%s2 + $0x28] sm:$0xff]
      %v1248 = vld [vmem:[%s2 + $0x30] sm:$0xff]
      %v1249 = vld [vmem:[%s2 + $0x38] sm:$0xff]
      %v1250 = vld [vmem:[%s2 + $0x40] sm:$0xff]
      %v1251 = vld [vmem:[%s2 + $0x48] sm:$0xff]
      %v1252 = vld [vmem:[%s2 + $0x50] sm:$0xff]
      %v1253 = vld [vmem:[%s2 + $0x58] sm:$0xff]
      %v1254 = vld [vmem:[%s2 + $0x60] sm:$0xff]
      %v1255 = vld [vmem:[%s2 + $0x68] sm:$0xff]
      %v1256 = vld [vmem:[%s2 + $0x70] sm:$0xff]
      %v1257 = vld [vmem:[%s2 + $0x78] sm:$0xff]
      %v1258 = vld [vmem:[%s2 + $0x80] sm:$0xff]
      %v1259 = vld [vmem:[%s2 + $0x88] sm:$0xff]
      %v1260 = vld [vmem:[%s2 + $0x90] sm:$0xff]
      %v1261 = vld [vmem:[%s2 + $0x98] sm:$0xff]
      %v1262 = vld [vmem:[%s2 + $0xa0] sm:$0xff]
      %v1263 = vld [vmem:[%s2 + $0xa8] sm:$0xff]
      %v1264 = vld [vmem:[%s2 + $0xb0] sm:$0xff]
      %v1265 = vld [vmem:[%s2 + $0xb8] sm:$0xff]
      %v1266 = vld [vmem:[%s3] sm:$0x1]
      %v1268 = vlaneseq
      %v1269 = vshrl.u32 %v1268, 7
      %v1270 = vsub.s32 0, %v1269
      %v1271 = vrot.slane %v1266, %v1270
      %vm1273 = vcmask 523264
      %v1275 = vsel %vm1273, %v1227, 0
      %v1278 = vsel %vm1273, %v1229, 0
      %v1281 = vsel %vm1273, %v1231, 0
      %v1284 = vsel %vm1273, %v1233, 0
      %v1287 = vsel %vm1273, %v1235, 0
      %v1290 = vsel %vm1273, %v1237, 0
      %v1293 = vsel %vm1273, %v1239, 0
      %v1296 = vsel %vm1273, %v1241, 0
      %1298 = vmatprep.subr.mxu0 0.0
      %1299 = vmatpush1.msra.mxu0 %v1257
      %1300 = vmatprep.subr.mxu0 0.0
      %1301 = vmatpush1.msra.mxu0 %v1256
      %1302 = vmatprep.subr.mxu0 0.0
      %1303 = vmatpush1.msra.mxu0 %v1255
      %1304 = vmatprep.subr.mxu0 0.0
      %1305 = vmatpush1.msra.mxu0 %v1254
      %1306 = vmatprep.subr.mxu0 0.0
      %1307 = vmatpush1.msra.mxu0 %v1253
      %1308 = vmatprep.subr.mxu0 0.0
      %1309 = vmatpush1.msra.mxu0 %v1252
      %1310 = vmatprep.subr.mxu0 0.0
      %1311 = vmatpush1.msra.mxu0 %v1251
      %1312 = vmatprep.subr.mxu0 0.0
      %1313 = vmatpush1.msra.mxu0 %v1250
      %1314 = vmatprep.subr.mxu0 0.0
      %1315 = vmatpush1.msra.mxu0 %v1249
      %1316 = vmatprep.subr.mxu0 0.0
      %1317 = vmatpush1.msra.mxu0 %v1248
      %1318 = vmatprep.subr.mxu0 0.0
      %1319 = vmatpush1.msra.mxu0 %v1247
      %1320 = vmatprep.subr.mxu0 0.0
      %1321 = vmatpush1.msra.mxu0 %v1246
      %1322 = vmatprep.subr.mxu0 0.0
      %1323 = vmatpush1.msra.mxu0 %v1245
      %1324 = vmatprep.subr.mxu0 0.0
      %1325 = vmatpush1.msra.mxu0 %v1244
      %1326 = vmatprep.subr.mxu0 0.0
      %1327 = vmatpush1.msra.mxu0 %v1243
      %1328 = vmatprep.subr.mxu0 0.0
      %1329 = vmatpush1.msra.mxu0 %v1242
      %1330 = vmatprep.subr.mxu0 0.0
      %1331 = vmatpush2.msra.mxu0 0.0
      %1332 = vmatprep.subr.mxu0 0.0
      %1333 = vmatpush2.msra.mxu0 0.0
      %1334 = vmatprep.subr.mxu0 0.0
      %1335 = vmatpush2.msra.mxu0 0.0
      %1336 = vmatprep.subr.mxu0 0.0
      %1337 = vmatpush2.msra.mxu0 0.0
      %1338 = vmatprep.subr.mxu0 0.0
      %1339 = vmatpush2.msra.mxu0 0.0
      %1340 = vmatprep.subr.mxu0 0.0
      %1341 = vmatpush2.msra.mxu0 0.0
      %1342 = vmatprep.subr.mxu0 0.0
      %1343 = vmatpush2.msra.mxu0 0.0
      %1344 = vmatprep.subr.mxu0 0.0
      %1345 = vmatpush2.msra.mxu0 0.0
      %1346 = vmatprep.subr.mxu0 0.0
      %1347 = vmatpush2.msra.mxu0 %v1265
      %1348 = vmatprep.subr.mxu0 0.0
      %1349 = vmatpush2.msra.mxu0 %v1264
      %1350 = vmatprep.subr.mxu0 0.0
      %1351 = vmatpush2.msra.mxu0 %v1263
      %1352 = vmatprep.subr.mxu0 0.0
      %1353 = vmatpush2.msra.mxu0 %v1262
      %1354 = vmatprep.subr.mxu0 0.0
      %1355 = vmatpush2.msra.mxu0 %v1261
      %1356 = vmatprep.subr.mxu0 0.0
      %1357 = vmatpush2.msra.mxu0 %v1260
      %1358 = vmatprep.subr.mxu0 0.0
      %1359 = vmatpush2.msra.mxu0 %v1259
      %1360 = vmatprep.subr.mxu0 0.0
      %1361 = vmatpush2.msra.mxu0 %v1258
      %1362 = vmatprep.mubr.f32.mxu0 %v1275
      %1363 = vmatmul.mubr.f32.gmra.mxu0 %v1226
      %v1364 = vpop.f32.mrf.mxu0
      %v1365 = vadd.f32 %v1271, %v1364
      %v1366 = vpop.f32.mrf.mxu0
      %1367 = vmatprep.mubr.f32.mxu0 %v1278
      %1368 = vmatmul.mubr.f32.gmra.mxu0 %v1228
      %v1369 = vpop.f32.mrf.mxu0
      %v1370 = vadd.f32 %v1271, %v1369
      %v1371 = vpop.f32.mrf.mxu0
      %1372 = vmatprep.mubr.f32.mxu0 %v1281
      %1373 = vmatmul.mubr.f32.gmra.mxu0 %v1230
      %v1374 = vpop.f32.mrf.mxu0
      %v1375 = vadd.f32 %v1271, %v1374
      %v1376 = vpop.f32.mrf.mxu0
      %1377 = vmatprep.mubr.f32.mxu0 %v1284
      %1378 = vmatmul.mubr.f32.gmra.mxu0 %v1232
      %v1379 = vpop.f32.mrf.mxu0
      %v1380 = vadd.f32 %v1271, %v1379
      %v1381 = vpop.f32.mrf.mxu0
      %1382 = vmatprep.mubr.f32.mxu0 %v1287
      %1383 = vmatmul.mubr.f32.gmra.mxu0 %v1234
      %v1384 = vpop.f32.mrf.mxu0
      %v1385 = vadd.f32 %v1271, %v1384
      %v1386 = vpop.f32.mrf.mxu0
      %1387 = vmatprep.mubr.f32.mxu0 %v1290
      %1388 = vmatmul.mubr.f32.gmra.mxu0 %v1236
      %v1389 = vpop.f32.mrf.mxu0
      %v1390 = vadd.f32 %v1271, %v1389
      %v1391 = vpop.f32.mrf.mxu0
      %1392 = vmatprep.mubr.f32.mxu0 %v1293
      %1393 = vmatmul.mubr.f32.gmra.mxu0 %v1238
      %v1394 = vpop.f32.mrf.mxu0
      %v1395 = vadd.f32 %v1271, %v1394
      %v1396 = vpop.f32.mrf.mxu0
      %1397 = vmatprep.mubr.f32.mxu0 %v1296
      %1398 = vmatmul.mubr.f32.gmra.mxu0 %v1240
      %v1399 = vpop.f32.mrf.mxu0
      %v1400 = vadd.f32 %v1271, %v1399
      %v1401 = vpop.f32.mrf.mxu0
      %1402 = vdwg.mxu0
      %vm1403 = vcmask 64512
      %1404 = vst.msk [vmem:[%s197] sm:$0xff] %vm1403, %v1365
      %1405 = vst.msk [vmem:[%s197 + $0x8] sm:$0xff] %vm1403, %v1370
      %1406 = vst.msk [vmem:[%s197 + $0x10] sm:$0xff] %vm1403, %v1375
      %1407 = vst.msk [vmem:[%s197 + $0x18] sm:$0xff] %vm1403, %v1380
      %1408 = vst.msk [vmem:[%s197 + $0x20] sm:$0xff] %vm1403, %v1385
      %1409 = vst.msk [vmem:[%s197 + $0x28] sm:$0xff] %vm1403, %v1390
      %1410 = vst.msk [vmem:[%s197 + $0x30] sm:$0xff] %vm1403, %v1395
      %1411 = vst.msk [vmem:[%s197 + $0x38] sm:$0xff] %vm1403, %v1400
      %p1412 = scmp.lt.s32.totalorder %s15, 1
      %s1413 = scalar_select %p1412, %s15, 1
      %s1414 = smul.addr %s1413, 8
      %s1415 = smul.addr %s1414, 8
      %s1416 = scalar_lea.vmem %s4, %s1415
      // Predicated region
      $region37: #{unet_apply.4} parent=35 // pred_check
        %p1417 = pneg %p122
      $region38: #{unet_apply.4} parent=35 // pred_check_branch
        %1419 = sbr.rel (%p1417) target = $region40
      $region39: #{unet_apply.4} parent=35 // pred_region
        _
      $region40: #{unet_apply.4} parent=35 // pred_fallthru
        _
    $region36: #{unet_apply.4} parent=5 // pred_fallthru
      _
    %p1420 = scmp.le.s32.totalorder 2, %s10
    // Predicated region
    $region41: #{unet_apply.4} parent=5 // pred_check
      %p1421 = pneg %p1420
    $region42: #{unet_apply.4} parent=5 // pred_check_branch
      %1423 = sbr.rel (%p1421) target = $region44
    $region43: #{unet_apply.4} parent=5 // pred_region
      %s1424 = ssub.s32 %s10, 2
      // Predicated region
      $region45: #{unet_apply.4} parent=43 // pred_check
        %p1425 = pneg %p128
      $region46: #{unet_apply.4} parent=43 // pred_check_branch
        %1427 = sbr.rel (%p1425) target = $region48
      $region47: #{unet_apply.4} parent=43 // pred_region
        %p1428 = scmp.lt.s32.totalorder %s16, 1
        %s1429 = scalar_select %p1428, %s16, 1
        %s1430 = smul.addr %s1429, 8
        %s1431 = smul.addr %s1430, 8
        %s1432 = scalar_lea.vmem %s4, %s1431
      $region48: #{unet_apply.4} parent=43 // pred_fallthru
        _
    $region44: #{unet_apply.4} parent=5 // pred_fallthru
      _
  $region6: #{unet_apply.4} parent=0 // loop_footer
    %s14 = sadd.s32 1, %s10
  $region7: #{unet_apply.4} parent=0 // loop_footer_branch
    %9 = sbr.rel target = $region3
  $region8: #{unet_apply.4} parent=0 // loop_exit
    _

// kernel: unet_apply.7
$region0: #{unet_apply.7}
  #allocation0 [shape = 'u32[]', space=smem, size = 0x4, offset = 0x4, fixed_abs, tag = 'smem constant byte address 0x4 - core index']
  #allocation1 [shape = 'u32[144,128]{1,0:T(1,128)}', space=vmem, size = 0x12000, scoped, tag = 'internal scratch']
  #allocation2 [shape = 'f32[10,10,16]{2,1,0:T(8,128)}', space=vmem, size = 0x14000, scoped, tag = 'scratch operand']
  #allocation3 [shape = 'f32[8,8,144]{2,1,0:T(8,128)}', space=vmem, size = 0x10000, scoped, tag = 'scratch operand']
  %s0 = inlined_call_operand.vmem [shape: f32[2,8,8,8], index: 0, kind: input, shape index: {}]
  %s1 = inlined_call_operand.vmem [shape: f32[2,8,8,8], index: 1, kind: input, shape index: {}]
  %s2 = inlined_call_operand.vmem [shape: f32[144,12], index: 2, kind: input, shape index: {}]
  %s3 = inlined_call_operand.vmem [shape: f32[1,12], index: 3, kind: input, shape index: {}]
  %s4 = inlined_call_operand.vmem [shape: f32[2,64,12], index: 4, kind: output, shape index: {}]
  %s5 = sld [smem:[#allocation0]]
  $region49: #{unet_apply.7} parent=0
    _
  %s7 = ssub.s32 1, %s5
  %s8 = scalar_select 0, %s7, %s5
  loop: start=0, step=1, limit=4
  $region2: #{unet_apply.7} parent=0 // loop_pre_header
    _
  $region3: #{unet_apply.7} parent=0 // loop_header
    %s10 = sphi 0, %s14
    %p11 = scmp.ge.s32.totalorder %s10, 4
    %s20 = sphi 0, %s22
    %s23 = sphi 0, %s20
    %s24 = sphi 0, %s23
    %s40 = sphi 0, %s24
    %s46 = sphi 0, %s48
    %s49 = sphi 0, %s46
    %s50 = sphi 0, %s49
    %s66 = sphi 0, %s50
    %s70 = sphi 0, %s70
    %s72 = sphi 0, %s70
    %s73 = sphi 0, %s72
    %s87 = sphi 0, %s73
    %s91 = sphi 0, %s91
    %s93 = sphi 0, %s91
    %s94 = sphi 0, %s93
    %s108 = sphi 0, %s94
    %s114 = sphi 0, %s116
    %s117 = sphi 0, %s114
    %s118 = sphi 0, %s117
    %s134 = sphi 0, %s118
  $region4: #{unet_apply.7} parent=0 // loop_header_branch
    %13 = sbr.rel (%p11) target = $region8
  $region5: #{unet_apply.7} parent=0 // loop_body
    %s15 = ssub.s32 %s10, 1
    %s16 = ssub.s32 %s10, 2
    %s17 = sadd.s32 %s10, 1
    %s18 = ssub.s32 %s10, %s17
    %p19 = scmp.eq.s32.totalorder %s18, 0
    %s21 = sadd.s32 %s20, 1
    %s22 = scalar_select %p19, %s20, %s21
    %p25 = pneg %p19
    %p26 = scmp.eq.s32.totalorder %s10, 1
    %p27 = por %p25, %p26
    %p28 = scmp.ne.s32.totalorder %s20, %s23
    %p29 = scmp.eq.s32.totalorder %s10, 0
    %p30 = por %p28, %p29
    %p31 = scmp.ne.s32.totalorder %s20, %s23
    %p32 = scmp.eq.s32.totalorder %s15, 1
    %p33 = por %p31, %p32
    %p34 = scmp.ne.s32.totalorder %s23, %s24
    %p35 = scmp.eq.s32.totalorder %s15, 0
    %p36 = por %p34, %p35
    %p37 = scmp.ne.s32.totalorder %s23, %s24
    %p38 = scmp.eq.s32.totalorder %s16, 1
    %p39 = por %p37, %p38
    %p41 = scmp.ne.s32.totalorder %s24, %s40
    %p42 = scmp.eq.s32.totalorder %s16, 0
    %p43 = por %p41, %p42
    %s44 = ssub.s32 %s10, %s17
    %p45 = scmp.eq.s32.totalorder %s44, 0
    %s47 = sadd.s32 %s46, 1
    %s48 = scalar_select %p45, %s46, %s47
    %p51 = pneg %p45
    %p52 = scmp.eq.s32.totalorder %s10, 1
    %p53 = por %p51, %p52
    %p54 = scmp.ne.s32.totalorder %s46, %s49
    %p55 = scmp.eq.s32.totalorder %s10, 0
    %p56 = por %p54, %p55
    %p57 = scmp.ne.s32.totalorder %s46, %s49
    %p58 = scmp.eq.s32.totalorder %s15, 1
    %p59 = por %p57, %p58
    %p60 = scmp.ne.s32.totalorder %s49, %s50
    %p61 = scmp.eq.s32.totalorder %s15, 0
    %p62 = por %p60, %p61
    %p63 = scmp.ne.s32.totalorder %s49, %s50
    %p64 = scmp.eq.s32.totalorder %s16, 1
    %p65 = por %p63, %p64
    %p67 = scmp.ne.s32.totalorder %s50, %s66
    %p68 = scmp.eq.s32.totalorder %s16, 0
    %p69 = por %p67, %p68
    %s71 = sadd.s32 %s70, 1
    %p74 = scmp.eq.s32.totalorder %s10, 1
    %p75 = scmp.ne.s32.totalorder %s70, %s72
    %p76 = scmp.eq.s32.totalorder %s10, 0
    %p77 = por %p75, %p76
    %p78 = scmp.ne.s32.totalorder %s70, %s72
    %p79 = scmp.eq.s32.totalorder %s15, 1
    %p80 = por %p78, %p79
    %p81 = scmp.ne.s32.totalorder %s72, %s73
    %p82 = scmp.eq.s32.totalorder %s15, 0
    %p83 = por %p81, %p82
    %p84 = scmp.ne.s32.totalorder %s72, %s73
    %p85 = scmp.eq.s32.totalorder %s16, 1
    %p86 = por %p84, %p85
    %p88 = scmp.ne.s32.totalorder %s73, %s87
    %p89 = scmp.eq.s32.totalorder %s16, 0
    %p90 = por %p88, %p89
    %s92 = sadd.s32 %s91, 1
    %p95 = scmp.eq.s32.totalorder %s10, 1
    %p96 = scmp.ne.s32.totalorder %s91, %s93
    %p97 = scmp.eq.s32.totalorder %s10, 0
    %p98 = por %p96, %p97
    %p99 = scmp.ne.s32.totalorder %s91, %s93
    %p100 = scmp.eq.s32.totalorder %s15, 1
    %p101 = por %p99, %p100
    %p102 = scmp.ne.s32.totalorder %s93, %s94
    %p103 = scmp.eq.s32.totalorder %s15, 0
    %p104 = por %p102, %p103
    %p105 = scmp.ne.s32.totalorder %s93, %s94
    %p106 = scmp.eq.s32.totalorder %s16, 1
    %p107 = por %p105, %p106
    %p109 = scmp.ne.s32.totalorder %s94, %s108
    %p110 = scmp.eq.s32.totalorder %s16, 0
    %p111 = por %p109, %p110
    %s112 = ssub.s32 %s10, %s17
    %p113 = scmp.eq.s32.totalorder %s112, 0
    %s115 = sadd.s32 %s114, 1
    %s116 = scalar_select %p113, %s114, %s115
    %p119 = pneg %p113
    %p120 = scmp.eq.s32.totalorder %s10, 1
    %p121 = por %p119, %p120
    %p122 = scmp.ne.s32.totalorder %s114, %s117
    %p123 = scmp.eq.s32.totalorder %s10, 0
    %p124 = por %p122, %p123
    %p125 = scmp.ne.s32.totalorder %s114, %s117
    %p126 = scmp.eq.s32.totalorder %s15, 1
    %p127 = por %p125, %p126
    %p128 = scmp.ne.s32.totalorder %s117, %s118
    %p129 = scmp.eq.s32.totalorder %s15, 0
    %p130 = por %p128, %p129
    %p131 = scmp.ne.s32.totalorder %s117, %s118
    %p132 = scmp.eq.s32.totalorder %s16, 1
    %p133 = por %p131, %p132
    %p135 = scmp.ne.s32.totalorder %s118, %s134
    %p136 = scmp.eq.s32.totalorder %s16, 0
    %p137 = por %p135, %p136
    %p138 = scmp.le.s32.totalorder 1, %s10
    %p139 = scmp.lt.s32.totalorder %s10, 3
    %p140 = pnand %p138, %p139
    %p141 = pneg %p140
    // Predicated region
    $region9: #{unet_apply.7} parent=5 // pred_check
      _
    $region10: #{unet_apply.7} parent=5 // pred_check_branch
      %143 = sbr.rel (%p140) target = $region12
    $region11: #{unet_apply.7} parent=5 // pred_region
      %s144 = ssub.s32 %s10, 1
      // Predicated region
      $region13: #{unet_apply.7} parent=11 // pred_check
        %p145 = pneg %p83
      $region14: #{unet_apply.7} parent=11 // pred_check_branch
        %147 = sbr.rel (%p145) target = $region16
      $region15: #{unet_apply.7} parent=11 // pred_region
        _
      $region16: #{unet_apply.7} parent=11 // pred_fallthru
        _
      // Predicated region
      $region17: #{unet_apply.7} parent=11 // pred_check
        %p148 = pneg %p104
      $region18: #{unet_apply.7} parent=11 // pred_check_branch
        %150 = sbr.rel (%p148) target = $region20
      $region19: #{unet_apply.7} parent=11 // pred_region
        _
      $region20: #{unet_apply.7} parent=11 // pred_fallthru
        _
    $region12: #{unet_apply.7} parent=5 // pred_fallthru
      _
    %p151 = scmp.lt.s32.totalorder %s10, 2
    // Predicated region
    $region21: #{unet_apply.7} parent=5 // pred_check
      %p152 = pneg %p151
    $region22: #{unet_apply.7} parent=5 // pred_check_branch
      %154 = sbr.rel (%p152) target = $region24
    $region23: #{unet_apply.7} parent=5 // pred_region
      // Predicated region
      $region25: #{unet_apply.7} parent=23 // pred_check
        %p155 = pneg %p30
      $region26: #{unet_apply.7} parent=23 // pred_check_branch
        %157 = sbr.rel (%p155) target = $region28
      $region27: #{unet_apply.7} parent=23 // pred_region
        %p158 = scmp.lt.s32.totalorder %s10, 1
        %s159 = scalar_select %p158, %s10, 1
        %s160 = smul.addr %s159, 8
        %s161 = smul.addr %s160, 8
        %s162 = scalar_lea.vmem %s0, %s161
      $region28: #{unet_apply.7} parent=23 // pred_fallthru
        _
      // Predicated region
      $region29: #{unet_apply.7} parent=23 // pred_check
        %p163 = pneg %p56
      $region30: #{unet_apply.7} parent=23 // pred_check_branch
        %165 = sbr.rel (%p163) target = $region32
      $region31: #{unet_apply.7} parent=23 // pred_region
        %p166 = scmp.lt.s32.totalorder %s10, 1
        %s167 = scalar_select %p166, %s10, 1
        %s168 = smul.addr %s167, 8
        %s169 = smul.addr %s168, 8
        %s170 = scalar_lea.vmem %s1, %s169
      $region32: #{unet_apply.7} parent=23 // pred_fallthru
        _
    $region24: #{unet_apply.7} parent=5 // pred_fallthru
      _
    %p171 = scmp.le.s32.totalorder 1, %s10
    %p172 = scmp.lt.s32.totalorder %s10, 3
    %p173 = pnand %p171, %p172
    %p174 = pneg %p173
    // Predicated region
    $region33: #{unet_apply.7} parent=5 // pred_check
      _
    $region34: #{unet_apply.7} parent=5 // pred_check_branch
      %176 = sbr.rel (%p173) target = $region36
    $region35: #{unet_apply.7} parent=5 // pred_region
      %s177 = ssub.s32 %s10, 1
      %p178 = scmp.lt.s32.totalorder %s15, 1
      %s179 = scalar_select %p178, %s15, 1
      %s180 = smul.addr %s179, 8
      %s181 = smul.addr %s180, 8
      %s182 = scalar_lea.vmem %s0, %s181
      %p183 = pneg %p36
      %p184 = pneg %p33
      %p185 = scmp.lt.s32.totalorder %s15, 1
      %s186 = scalar_select %p185, %s15, 1
      %s187 = smul.addr %s186, 8
      %s188 = smul.addr %s187, 8
      %s189 = scalar_lea.vmem %s1, %s188
      %p190 = pneg %p62
      %p191 = pneg %p59
      %p192 = pneg %p83
      %p193 = pneg %p80
      %p194 = pneg %p104
      %p195 = pneg %p101
      %p196 = pneg %p130
      %p197 = pneg %p127
      %p198 = scmp.lt.s32.totalorder %s15, 1
      %s199 = scalar_select %p198, %s15, 1
      %s200 = smul.addr %s199, 8
      %s201 = smul.addr %s200, 8
      %s202 = scalar_lea.vmem %s4, %s201
      %p203 = scmp.lt.s32.totalorder %s15, 1
      %s204 = scalar_select %p203, %s15, 1
      %s205 = smul.addr %s204, 8
      %s206 = smul.addr %s205, 8
      %s207 = scalar_lea.vmem %s0, %s206
      %p208 = scmp.lt.s32.totalorder %s15, 1
      %s209 = scalar_select %p208, %s15, 1
      %s210 = smul.addr %s209, 8
      %s211 = smul.addr %s210, 8
      %s212 = scalar_lea.vmem %s1, %s211
      %p213 = scmp.lt.s32.totalorder %s15, 1
      %s214 = scalar_select %p213, %s15, 1
      %s215 = smul.addr %s214, 8
      %s216 = smul.addr %s215, 8
      %s217 = scalar_lea.vmem %s4, %s216
      %vm218 = vcmask 130048
      %219 = vst.msk [vmem:[#allocation2] sm:$0xff] %vm218, 0.0
      %vm220 = vcmask 123904
      %221 = vst.msk [vmem:[#allocation2 + $0x8] sm:$0x3] %vm220, 0.0
      %s222 = scalar_lea.vmem [#allocation2], 144
      %223 = vst.msk [vmem:[%s222] sm:$0xff] %vm218, 0.0
      %224 = vst.msk [vmem:[%s222 + $0x8] sm:$0x3] %vm220, 0.0
      %s225 = scalar_lea.vmem [#allocation2], 16
      %vm226 = vcmask 122880
      %227 = vst.msk [vmem:[%s225] sm:$0x1] %vm226, 0.0
      %228 = vst.msk [vmem:[%s225 + $0x10] sm:$0x1] %vm226, 0.0
      %229 = vst.msk [vmem:[%s225 + $0x20] sm:$0x1] %vm226, 0.0
      %230 = vst.msk [vmem:[%s225 + $0x30] sm:$0x1] %vm226, 0.0
      %231 = vst.msk [vmem:[%s225 + $0x40] sm:$0x1] %vm226, 0.0
      %232 = vst.msk [vmem:[%s225 + $0x50] sm:$0x1] %vm226, 0.0
      %233 = vst.msk [vmem:[%s225 + $0x60] sm:$0x1] %vm226, 0.0
      %234 = vst.msk [vmem:[%s225 + $0x70] sm:$0x1] %vm226, 0.0
      %235 = vst.msk [vmem:[%s225 + $0x9] sm:$0x1] %vm226, 0.0
      %236 = vst.msk [vmem:[%s225 + $0x19] sm:$0x1] %vm226, 0.0
      %237 = vst.msk [vmem:[%s225 + $0x29] sm:$0x1] %vm226, 0.0
      %238 = vst.msk [vmem:[%s225 + $0x39] sm:$0x1] %vm226, 0.0
      %239 = vst.msk [vmem:[%s225 + $0x49] sm:$0x1] %vm226, 0.0
      %240 = vst.msk [vmem:[%s225 + $0x59] sm:$0x1] %vm226, 0.0
      %241 = vst.msk [vmem:[%s225 + $0x69] sm:$0x1] %vm226, 0.0
      %242 = vst.msk [vmem:[%s225 + $0x79] sm:$0x1] %vm226, 0.0
      %v243 = vld [vmem:[%s207] sm:$0xff]
      %v244 = vld [vmem:[%s207 + $0x8] sm:$0xff]
      %v245 = vld [vmem:[%s207 + $0x10] sm:$0xff]
      %v246 = vld [vmem:[%s207 + $0x18] sm:$0xff]
      %v247 = vld [vmem:[%s207 + $0x20] sm:$0xff]
      %v248 = vld [vmem:[%s207 + $0x28] sm:$0xff]
      %v249 = vld [vmem:[%s207 + $0x30] sm:$0xff]
      %v250 = vld [vmem:[%s207 + $0x38] sm:$0xff]
      %v251 = vmax.f32 %v243, 0.0
      %v252 = vmax.f32 %v244, 0.0
      %v253 = vmax.f32 %v245, 0.0
      %v254 = vmax.f32 %v246, 0.0
      %v255 = vmax.f32 %v247, 0.0
      %v256 = vmax.f32 %v248, 0.0
      %v257 = vmax.f32 %v249, 0.0
      %v258 = vmax.f32 %v250, 0.0
      %vm259 = vcmask 64512
      %260 = vst.msk [vmem:[%s225 + $0x1] sm:$0xff] %vm259, %v251
      %261 = vst.msk [vmem:[%s225 + $0x11] sm:$0xff] %vm259, %v252
      %262 = vst.msk [vmem:[%s225 + $0x21] sm:$0xff] %vm259, %v253
      %263 = vst.msk [vmem:[%s225 + $0x31] sm:$0xff] %vm259, %v254
      %264 = vst.msk [vmem:[%s225 + $0x41] sm:$0xff] %vm259, %v255
      %265 = vst.msk [vmem:[%s225 + $0x51] sm:$0xff] %vm259, %v256
      %266 = vst.msk [vmem:[%s225 + $0x61] sm:$0xff] %vm259, %v257
      %267 = vst.msk [vmem:[%s225 + $0x71] sm:$0xff] %vm259, %v258
      %v268 = vld [vmem:[%s212] sm:$0xff]
      %v269 = vld [vmem:[%s212 + $0x8] sm:$0xff]
      %v270 = vld [vmem:[%s212 + $0x10] sm:$0xff]
      %v271 = vld [vmem:[%s212 + $0x18] sm:$0xff]
      %v272 = vld [vmem:[%s212 + $0x20] sm:$0xff]
      %v273 = vld [vmem:[%s212 + $0x28] sm:$0xff]
      %v274 = vld [vmem:[%s212 + $0x30] sm:$0xff]
      %v275 = vld [vmem:[%s212 + $0x38] sm:$0xff]
      %v276 = vmax.f32 %v268, 0.0
      %v277 = vmax.f32 %v269, 0.0
      %v278 = vmax.f32 %v270, 0.0
      %v279 = vmax.f32 %v271, 0.0
      %v280 = vmax.f32 %v272, 0.0
      %v281 = vmax.f32 %v273, 0.0
      %v282 = vmax.f32 %v274, 0.0
      %v283 = vmax.f32 %v275, 0.0
      %292 = vrot.lane.b32.xlu0 %v276, 8
      %v293 = vpop.permute.xlu0 %292
      %294 = vrot.lane.b32.xlu0 %v277, 8
      %v295 = vpop.permute.xlu0 %294
      %296 = vrot.lane.b32.xlu0 %v278, 8
      %v297 = vpop.permute.xlu0 %296
      %298 = vrot.lane.b32.xlu0 %v279, 8
      %v299 = vpop.permute.xlu0 %298
      %300 = vrot.lane.b32.xlu0 %v280, 8
      %v301 = vpop.permute.xlu0 %300
      %302 = vrot.lane.b32.xlu0 %v281, 8
      %v303 = vpop.permute.xlu0 %302
      %304 = vrot.lane.b32.xlu0 %v282, 8
      %v305 = vpop.permute.xlu0 %304
      %306 = vrot.lane.b32.xlu0 %v283, 8
      %v307 = vpop.permute.xlu0 %306
      %vm316 = vcmask 130112
      %317 = vst.msk [vmem:[%s225 + $0x1] sm:$0xff] %vm316, %v293
      %318 = vst.msk [vmem:[%s225 + $0x11] sm:$0xff] %vm316, %v295
      %319 = vst.msk [vmem:[%s225 + $0x21] sm:$0xff] %vm316, %v297
      %320 = vst.msk [vmem:[%s225 + $0x31] sm:$0xff] %vm316, %v299
      %321 = vst.msk [vmem:[%s225 + $0x41] sm:$0xff] %vm316, %v301
      %322 = vst.msk [vmem:[%s225 + $0x51] sm:$0xff] %vm316, %v303
      %323 = vst.msk [vmem:[%s225 + $0x61] sm:$0xff] %vm316, %v305
      %324 = vst.msk [vmem:[%s225 + $0x71] sm:$0xff] %vm316, %v307
      %v325 = vld [vmem:[#allocation2] sm:$0xff]
      %v326 = vld [vmem:[#allocation2 + $0x10] sm:$0xff]
      %v327 = vld [vmem:[#allocation2 + $0x20] sm:$0xff]
      %v328 = vld [vmem:[#allocation2 + $0x30] sm:$0xff]
      %v329 = vld [vmem:[#allocation2 + $0x40] sm:$0xff]
      %v330 = vld [vmem:[#allocation2 + $0x50] sm:$0xff]
      %v331 = vld [vmem:[#allocation2 + $0x60] sm:$0xff]
      %v332 = vld [vmem:[#allocation2 + $0x70] sm:$0xff]
      %333 = vst.msk [vmem:[#allocation3] sm:$0xff] %vm218, %v325
      %334 = vst.msk [vmem:[#allocation3 + $0x10] sm:$0xff] %vm218, %v326
      %335 = vst.msk [vmem:[#allocation3 + $0x20] sm:$0xff] %vm218, %v327
      %336 = vst.msk [vmem:[#allocation3 + $0x30] sm:$0xff] %vm218, %v328
      %337 = vst.msk [vmem:[#allocation3 + $0x40] sm:$0xff] %vm218, %v329
      %338 = vst.msk [vmem:[#allocation3 + $0x50] sm:$0xff] %vm218, %v330
      %339 = vst.msk [vmem:[#allocation3 + $0x60] sm:$0xff] %vm218, %v331
      %340 = vst.msk [vmem:[#allocation3 + $0x70] sm:$0xff] %vm218, %v332
      %v341 = vld [vmem:[#allocation2 + $0x1] sm:$0xff]
      %v342 = vld [vmem:[#allocation2 + $0x11] sm:$0xff]
      %v343 = vld [vmem:[#allocation2 + $0x21] sm:$0xff]
      %v344 = vld [vmem:[#allocation2 + $0x31] sm:$0xff]
      %v345 = vld [vmem:[#allocation2 + $0x41] sm:$0xff]
      %v346 = vld [vmem:[#allocation2 + $0x51] sm:$0xff]
      %v347 = vld [vmem:[#allocation2 + $0x61] sm:$0xff]
      %v348 = vld [vmem:[#allocation2 + $0x71] sm:$0xff]
      %357 = vrot.lane.b32.xlu0 %v341, 16
      %v358 = vpop.permute.xlu0 %357
      %359 = vrot.lane.b32.xlu0 %v342, 16
      %v360 = vpop.permute.xlu0 %359
      %361 = vrot.lane.b32.xlu0 %v343, 16
      %v362 = vpop.permute.xlu0 %361
      %363 = vrot.lane.b32.xlu0 %v344, 16
      %v364 = vpop.permute.xlu0 %363
      %365 = vrot.lane.b32.xlu0 %v345, 16
      %v366 = vpop.permute.xlu0 %365
      %367 = vrot.lane.b32.xlu0 %v346, 16
      %v368 = vpop.permute.xlu0 %367
      %369 = vrot.lane.b32.xlu0 %v347, 16
      %v370 = vpop.permute.xlu0 %369
      %371 = vrot.lane.b32.xlu0 %v348, 16
      %v372 = vpop.permute.xlu0 %371
      %vm381 = vcmask 261248
      %382 = vst.msk [vmem:[#allocation3] sm:$0xff] %vm381, %v358
      %383 = vst.msk [vmem:[#allocation3 + $0x10] sm:$0xff] %vm381, %v360
      %384 = vst.msk [vmem:[#allocation3 + $0x20] sm:$0xff] %vm381, %v362
      %385 = vst.msk [vmem:[#allocation3 + $0x30] sm:$0xff] %vm381, %v364
      %386 = vst.msk [vmem:[#allocation3 + $0x40] sm:$0xff] %vm381, %v366
      %387 = vst.msk [vmem:[#allocation3 + $0x50] sm:$0xff] %vm381, %v368
      %388 = vst.msk [vmem:[#allocation3 + $0x60] sm:$0xff] %vm381, %v370
      %389 = vst.msk [vmem:[#allocation3 + $0x70] sm:$0xff] %vm381, %v372
      %v390 = vld [vmem:[#allocation2 + $0x2] sm:$0xff]
      %v391 = vld [vmem:[#allocation2 + $0x12] sm:$0xff]
      %v392 = vld [vmem:[#allocation2 + $0x22] sm:$0xff]
      %v393 = vld [vmem:[#allocation2 + $0x32] sm:$0xff]
      %v394 = vld [vmem:[#allocation2 + $0x42] sm:$0xff]
      %v395 = vld [vmem:[#allocation2 + $0x52] sm:$0xff]
      %v396 = vld [vmem:[#allocation2 + $0x62] sm:$0xff]
      %v397 = vld [vmem:[#allocation2 + $0x72] sm:$0xff]
      %406 = vrot.lane.b32.xlu0 %v390, 32
      %v407 = vpop.permute.xlu0 %406
      %408 = vrot.lane.b32.xlu0 %v391, 32
      %v409 = vpop.permute.xlu0 %408
      %410 = vrot.lane.b32.xlu0 %v392, 32
      %v411 = vpop.permute.xlu0 %410
      %412 = vrot.lane.b32.xlu0 %v393, 32
      %v413 = vpop.permute.xlu0 %412
      %414 = vrot.lane.b32.xlu0 %v394, 32
      %v415 = vpop.permute.xlu0 %414
      %416 = vrot.lane.b32.xlu0 %v395, 32
      %v417 = vpop.permute.xlu0 %416
      %418 = vrot.lane.b32.xlu0 %v396, 32
      %v419 = vpop.permute.xlu0 %418
      %420 = vrot.lane.b32.xlu0 %v397, 32
      %v421 = vpop.permute.xlu0 %420
      %vm430 = vcmask 392448
      %431 = vst.msk [vmem:[#allocation3] sm:$0xff] %vm430, %v407
      %432 = vst.msk [vmem:[#allocation3 + $0x10] sm:$0xff] %vm430, %v409
      %433 = vst.msk [vmem:[#allocation3 + $0x20] sm:$0xff] %vm430, %v411
      %434 = vst.msk [vmem:[#allocation3 + $0x30] sm:$0xff] %vm430, %v413
      %435 = vst.msk [vmem:[#allocation3 + $0x40] sm:$0xff] %vm430, %v415
      %436 = vst.msk [vmem:[#allocation3 + $0x50] sm:$0xff] %vm430, %v417
      %437 = vst.msk [vmem:[#allocation3 + $0x60] sm:$0xff] %vm430, %v419
      %438 = vst.msk [vmem:[#allocation3 + $0x70] sm:$0xff] %vm430, %v421
      %v439 = vld [vmem:[%s225] sm:$0xff]
      %v440 = vld [vmem:[%s225 + $0x10] sm:$0xff]
      %v441 = vld [vmem:[%s225 + $0x20] sm:$0xff]
      %v442 = vld [vmem:[%s225 + $0x30] sm:$0xff]
      %v443 = vld [vmem:[%s225 + $0x40] sm:$0xff]
      %v444 = vld [vmem:[%s225 + $0x50] sm:$0xff]
      %v445 = vld [vmem:[%s225 + $0x60] sm:$0xff]
      %v446 = vld [vmem:[%s225 + $0x70] sm:$0xff]
      %455 = vrot.lane.b32.xlu0 %v439, 48
      %v456 = vpop.permute.xlu0 %455
      %457 = vrot.lane.b32.xlu0 %v440, 48
      %v458 = vpop.permute.xlu0 %457
      %459 = vrot.lane.b32.xlu0 %v441, 48
      %v460 = vpop.permute.xlu0 %459
      %461 = vrot.lane.b32.xlu0 %v442, 48
      %v462 = vpop.permute.xlu0 %461
      %463 = vrot.lane.b32.xlu0 %v443, 48
      %v464 = vpop.permute.xlu0 %463
      %465 = vrot.lane.b32.xlu0 %v444, 48
      %v466 = vpop.permute.xlu0 %465
      %467 = vrot.lane.b32.xlu0 %v445, 48
      %v468 = vpop.permute.xlu0 %467
      %469 = vrot.lane.b32.xlu0 %v446, 48
      %v470 = vpop.permute.xlu0 %469
      %vm479 = vcmask 523648
      %480 = vst.msk [vmem:[#allocation3] sm:$0xff] %vm479, %v456
      %481 = vst.msk [vmem:[#allocation3 + $0x10] sm:$0xff] %vm479, %v458
      %482 = vst.msk [vmem:[#allocation3 + $0x20] sm:$0xff] %vm479, %v460
      %483 = vst.msk [vmem:[#allocation3 + $0x30] sm:$0xff] %vm479, %v462
      %484 = vst.msk [vmem:[#allocation3 + $0x40] sm:$0xff] %vm479, %v464
      %485 = vst.msk [vmem:[#allocation3 + $0x50] sm:$0xff] %vm479, %v466
      %486 = vst.msk [vmem:[#allocation3 + $0x60] sm:$0xff] %vm479, %v468
      %487 = vst.msk [vmem:[#allocation3 + $0x70] sm:$0xff] %vm479, %v470
      %v488 = vld [vmem:[%s225 + $0x1] sm:$0xff]
      %v489 = vld [vmem:[%s225 + $0x11] sm:$0xff]
      %v490 = vld [vmem:[%s225 + $0x21] sm:$0xff]
      %v491 = vld [vmem:[%s225 + $0x31] sm:$0xff]
      %v492 = vld [vmem:[%s225 + $0x41] sm:$0xff]
      %v493 = vld [vmem:[%s225 + $0x51] sm:$0xff]
      %v494 = vld [vmem:[%s225 + $0x61] sm:$0xff]
      %v495 = vld [vmem:[%s225 + $0x71] sm:$0xff]
      %504 = vrot.lane.b32.xlu0 %v488, 64
      %v505 = vpop.permute.xlu0 %504
      %506 = vrot.lane.b32.xlu0 %v489, 64
      %v507 = vpop.permute.xlu0 %506
      %508 = vrot.lane.b32.xlu0 %v490, 64
      %v509 = vpop.permute.xlu0 %508
      %510 = vrot.lane.b32.xlu0 %v491, 64
      %v511 = vpop.permute.xlu0 %510
      %512 = vrot.lane.b32.xlu0 %v492, 64
      %v513 = vpop.permute.xlu0 %512
      %514 = vrot.lane.b32.xlu0 %v493, 64
      %v515 = vpop.permute.xlu0 %514
      %516 = vrot.lane.b32.xlu0 %v494, 64
      %v517 = vpop.permute.xlu0 %516
      %518 = vrot.lane.b32.xlu0 %v495, 64
      %v519 = vpop.permute.xlu0 %518
      %vm528 = vcmask 654848
      %529 = vst.msk [vmem:[#allocation3] sm:$0xff] %vm528, %v505
      %530 = vst.msk [vmem:[#allocation3 + $0x10] sm:$0xff] %vm528, %v507
      %531 = vst.msk [vmem:[#allocation3 + $0x20] sm:$0xff] %vm528, %v509
      %532 = vst.msk [vmem:[#allocation3 + $0x30] sm:$0xff] %vm528, %v511
      %533 = vst.msk [vmem:[#allocation3 + $0x40] sm:$0xff] %vm528, %v513
      %534 = vst.msk [vmem:[#allocation3 + $0x50] sm:$0xff] %vm528, %v515
      %535 = vst.msk [vmem:[#allocation3 + $0x60] sm:$0xff] %vm528, %v517
      %536 = vst.msk [vmem:[#allocation3 + $0x70] sm:$0xff] %vm528, %v519
      %v537 = vld [vmem:[%s225 + $0x2] sm:$0xff]
      %v538 = vld [vmem:[%s225 + $0x12] sm:$0xff]
      %v539 = vld [vmem:[%s225 + $0x22] sm:$0xff]
      %v540 = vld [vmem:[%s225 + $0x32] sm:$0xff]
      %v541 = vld [vmem:[%s225 + $0x42] sm:$0xff]
      %v542 = vld [vmem:[%s225 + $0x52] sm:$0xff]
      %v543 = vld [vmem:[%s225 + $0x62] sm:$0xff]
      %v544 = vld [vmem:[%s225 + $0x72] sm:$0xff]
      %553 = vrot.lane.b32.xlu0 %v537, 80
      %v554 = vpop.permute.xlu0 %553
      %555 = vrot.lane.b32.xlu0 %v538, 80
      %v556 = vpop.permute.xlu0 %555
      %557 = vrot.lane.b32.xlu0 %v539, 80
      %v558 = vpop.permute.xlu0 %557
      %559 = vrot.lane.b32.xlu0 %v540, 80
      %v560 = vpop.permute.xlu0 %559
      %561 = vrot.lane.b32.xlu0 %v541, 80
      %v562 = vpop.permute.xlu0 %561
      %563 = vrot.lane.b32.xlu0 %v542, 80
      %v564 = vpop.permute.xlu0 %563
      %565 = vrot.lane.b32.xlu0 %v543, 80
      %v566 = vpop.permute.xlu0 %565
      %567 = vrot.lane.b32.xlu0 %v544, 80
      %v568 = vpop.permute.xlu0 %567
      %vm577 = vcmask 786048
      %578 = vst.msk [vmem:[#allocation3] sm:$0xff] %vm577, %v554
      %579 = vst.msk [vmem:[#allocation3 + $0x10] sm:$0xff] %vm577, %v556
      %580 = vst.msk [vmem:[#allocation3 + $0x20] sm:$0xff] %vm577, %v558
      %581 = vst.msk [vmem:[#allocation3 + $0x30] sm:$0xff] %vm577, %v560
      %582 = vst.msk [vmem:[#allocation3 + $0x40] sm:$0xff] %vm577, %v562
      %583 = vst.msk [vmem:[#allocation3 + $0x50] sm:$0xff] %vm577, %v564
      %584 = vst.msk [vmem:[#allocation3 + $0x60] sm:$0xff] %vm577, %v566
      %585 = vst.msk [vmem:[#allocation3 + $0x70] sm:$0xff] %vm577, %v568
      %s586 = scalar_lea.vmem [#allocation2], 32
      %v587 = vld [vmem:[%s586] sm:$0xff]
      %v588 = vld [vmem:[%s586 + $0x10] sm:$0xff]
      %v589 = vld [vmem:[%s586 + $0x20] sm:$0xff]
      %v590 = vld [vmem:[%s586 + $0x30] sm:$0xff]
      %v591 = vld [vmem:[%s586 + $0x40] sm:$0xff]
      %v592 = vld [vmem:[%s586 + $0x50] sm:$0xff]
      %v593 = vld [vmem:[%s586 + $0x60] sm:$0xff]
      %v594 = vld [vmem:[%s586 + $0x70] sm:$0xff]
      %603 = vrot.lane.b32.xlu0 %v587, 96
      %v604 = vpop.permute.xlu0 %603
      %605 = vrot.lane.b32.xlu0 %v588, 96
      %v606 = vpop.permute.xlu0 %605
      %607 = vrot.lane.b32.xlu0 %v589, 96
      %v608 = vpop.permute.xlu0 %607
      %609 = vrot.lane.b32.xlu0 %v590, 96
      %v610 = vpop.permute.xlu0 %609
      %611 = vrot.lane.b32.xlu0 %v591, 96
      %v612 = vpop.permute.xlu0 %611
      %613 = vrot.lane.b32.xlu0 %v592, 96
      %v614 = vpop.permute.xlu0 %613
      %615 = vrot.lane.b32.xlu0 %v593, 96
      %v616 = vpop.permute.xlu0 %615
      %617 = vrot.lane.b32.xlu0 %v594, 96
      %v618 = vpop.permute.xlu0 %617
      %vm627 = vcmask 917248
      %628 = vst.msk [vmem:[#allocation3] sm:$0xff] %vm627, %v604
      %629 = vst.msk [vmem:[#allocation3 + $0x10] sm:$0xff] %vm627, %v606
      %630 = vst.msk [vmem:[#allocation3 + $0x20] sm:$0xff] %vm627, %v608
      %631 = vst.msk [vmem:[#allocation3 + $0x30] sm:$0xff] %vm627, %v610
      %632 = vst.msk [vmem:[#allocation3 + $0x40] sm:$0xff] %vm627, %v612
      %633 = vst.msk [vmem:[#allocation3 + $0x50] sm:$0xff] %vm627, %v614
      %634 = vst.msk [vmem:[#allocation3 + $0x60] sm:$0xff] %vm627, %v616
      %635 = vst.msk [vmem:[#allocation3 + $0x70] sm:$0xff] %vm627, %v618
      %v636 = vld [vmem:[%s586 + $0x1] sm:$0xff]
      %v637 = vld [vmem:[%s586 + $0x11] sm:$0xff]
      %v638 = vld [vmem:[%s586 + $0x21] sm:$0xff]
      %v639 = vld [vmem:[%s586 + $0x31] sm:$0xff]
      %v640 = vld [vmem:[%s586 + $0x41] sm:$0xff]
      %v641 = vld [vmem:[%s586 + $0x51] sm:$0xff]
      %v642 = vld [vmem:[%s586 + $0x61] sm:$0xff]
      %v643 = vld [vmem:[%s586 + $0x71] sm:$0xff]
      %652 = vrot.lane.b32.xlu0 %v636, 112
      %v653 = vpop.permute.xlu0 %652
      %654 = vrot.lane.b32.xlu0 %v637, 112
      %v655 = vpop.permute.xlu0 %654
      %656 = vrot.lane.b32.xlu0 %v638, 112
      %v657 = vpop.permute.xlu0 %656
      %658 = vrot.lane.b32.xlu0 %v639, 112
      %v659 = vpop.permute.xlu0 %658
      %660 = vrot.lane.b32.xlu0 %v640, 112
      %v661 = vpop.permute.xlu0 %660
      %662 = vrot.lane.b32.xlu0 %v641, 112
      %v663 = vpop.permute.xlu0 %662
      %664 = vrot.lane.b32.xlu0 %v642, 112
      %v665 = vpop.permute.xlu0 %664
      %666 = vrot.lane.b32.xlu0 %v643, 112
      %v667 = vpop.permute.xlu0 %666
      %vm676 = vcmask 1048448
      %677 = vst.msk [vmem:[#allocation3] sm:$0xff] %vm676, %v653
      %678 = vst.msk [vmem:[#allocation3 + $0x10] sm:$0xff] %vm676, %v655
      %679 = vst.msk [vmem:[#allocation3 + $0x20] sm:$0xff] %vm676, %v657
      %680 = vst.msk [vmem:[#allocation3 + $0x30] sm:$0xff] %vm676, %v659
      %681 = vst.msk [vmem:[#allocation3 + $0x40] sm:$0xff] %vm676, %v661
      %682 = vst.msk [vmem:[#allocation3 + $0x50] sm:$0xff] %vm676, %v663
      %683 = vst.msk [vmem:[#allocation3 + $0x60] sm:$0xff] %vm676, %v665
      %684 = vst.msk [vmem:[#allocation3 + $0x70] sm:$0xff] %vm676, %v667
      %v685 = vld [vmem:[%s586 + $0x2] sm:$0xff]
      %v686 = vld [vmem:[%s586 + $0x12] sm:$0xff]
      %v687 = vld [vmem:[%s586 + $0x22] sm:$0xff]
      %v688 = vld [vmem:[%s586 + $0x32] sm:$0xff]
      %v689 = vld [vmem:[%s586 + $0x42] sm:$0xff]
      %v690 = vld [vmem:[%s586 + $0x52] sm:$0xff]
      %v691 = vld [vmem:[%s586 + $0x62] sm:$0xff]
      %v692 = vld [vmem:[%s586 + $0x72] sm:$0xff]
      %693 = vst.msk [vmem:[#allocation3 + $0x8] sm:$0xff] %vm218, %v685
      %694 = vst.msk [vmem:[#allocation3 + $0x18] sm:$0xff] %vm218, %v686
      %695 = vst.msk [vmem:[#allocation3 + $0x28] sm:$0xff] %vm218, %v687
      %696 = vst.msk [vmem:[#allocation3 + $0x38] sm:$0xff] %vm218, %v688
      %697 = vst.msk [vmem:[#allocation3 + $0x48] sm:$0xff] %vm218, %v689
      %698 = vst.msk [vmem:[#allocation3 + $0x58] sm:$0xff] %vm218, %v690
      %699 = vst.msk [vmem:[#allocation3 + $0x68] sm:$0xff] %vm218, %v691
      %700 = vst.msk [vmem:[#allocation3 + $0x78] sm:$0xff] %vm218, %v692
      %v701 = vld [vmem:[#allocation3] sm:$0xff]
      %v702 = vld [vmem:[#allocation3 + $0x8] sm:$0xff]
      %v703 = vld [vmem:[#allocation3 + $0x10] sm:$0xff]
      %v704 = vld [vmem:[#allocation3 + $0x18] sm:$0xff]
      %v705 = vld [vmem:[#allocation3 + $0x20] sm:$0xff]
      %v706 = vld [vmem:[#allocation3 + $0x28] sm:$0xff]
      %v707 = vld [vmem:[#allocation3 + $0x30] sm:$0xff]
      %v708 = vld [vmem:[#allocation3 + $0x38] sm:$0xff]
      %v709 = vld [vmem:[#allocation3 + $0x40] sm:$0xff]
      %v710 = vld [vmem:[#allocation3 + $0x48] sm:$0xff]
      %v711 = vld [vmem:[#allocation3 + $0x50] sm:$0xff]
      %v712 = vld [vmem:[#allocation3 + $0x58] sm:$0xff]
      %v713 = vld [vmem:[#allocation3 + $0x60] sm:$0xff]
      %v714 = vld [vmem:[#allocation3 + $0x68] sm:$0xff]
      %v715 = vld [vmem:[#allocation3 + $0x70] sm:$0xff]
      %v716 = vld [vmem:[#allocation3 + $0x78] sm:$0xff]
      %v717 = vld [vmem:[%s2] sm:$0xff]
      %v718 = vld [vmem:[%s2 + $0x8] sm:$0xff]
      %v719 = vld [vmem:[%s2 + $0x10] sm:$0xff]
      %v720 = vld [vmem:[%s2 + $0x18] sm:$0xff]
      %v721 = vld [vmem:[%s2 + $0x20] sm:$0xff]
      %v722 = vld [vmem:[%s2 + $0x28] sm:$0xff]
      %v723 = vld [vmem:[%s2 + $0x30] sm:$0xff]
      %v724 = vld [vmem:[%s2 + $0x38] sm:$0xff]
      %v725 = vld [vmem:[%s2 + $0x40] sm:$0xff]
      %v726 = vld [vmem:[%s2 + $0x48] sm:$0xff]
      %v727 = vld [vmem:[%s2 + $0x50] sm:$0xff]
      %v728 = vld [vmem:[%s2 + $0x58] sm:$0xff]
      %v729 = vld [vmem:[%s2 + $0x60] sm:$0xff]
      %v730 = vld [vmem:[%s2 + $0x68] sm:$0xff]
      %v731 = vld [vmem:[%s2 + $0x70] sm:$0xff]
      %v732 = vld [vmem:[%s2 + $0x78] sm:$0xff]
      %v733 = vld [vmem:[%s2 + $0x80] sm:$0xff]
      %v734 = vld [vmem:[%s2 + $0x88] sm:$0xff]
      %v735 = vld [vmem:[%s3] sm:$0x1]
      %v737 = vlaneseq
      %v738 = vshrl.u32 %v737, 7
      %v739 = vsub.s32 0, %v738
      %v740 = vrot.slane %v735, %v739
      %v743 = vsel %vm218, %v702, 0
      %v746 = vsel %vm218, %v704, 0
      %v749 = vsel %vm218, %v706, 0
      %v752 = vsel %vm218, %v708, 0
      %v755 = vsel %vm218, %v710, 0
      %v758 = vsel %vm218, %v712, 0
      %v761 = vsel %vm218, %v714, 0
      %v764 = vsel %vm218, %v716, 0
      %766 = vmatprep.subr.mxu0 0.0
      %767 = vmatpush1.msra.mxu0 %v732
      %768 = vmatprep.subr.mxu0 0.0
      %769 = vmatpush1.msra.mxu0 %v731
      %770 = vmatprep.subr.mxu0 0.0
      %771 = vmatpush1.msra.mxu0 %v730
      %772 = vmatprep.subr.mxu0 0.0
      %773 = vmatpush1.msra.mxu0 %v729
      %774 = vmatprep.subr.mxu0 0.0
      %775 = vmatpush1.msra.mxu0 %v728
      %776 = vmatprep.subr.mxu0 0.0
      %777 = vmatpush1.msra.mxu0 %v727
      %778 = vmatprep.subr.mxu0 0.0
      %779 = vmatpush1.msra.mxu0 %v726
      %780 = vmatprep.subr.mxu0 0.0
      %781 = vmatpush1.msra.mxu0 %v725
      %782 = vmatprep.subr.mxu0 0.0
      %783 = vmatpush1.msra.mxu0 %v724
      %784 = vmatprep.subr.mxu0 0.0
      %785 = vmatpush1.msra.mxu0 %v723
      %786 = vmatprep.subr.mxu0 0.0
      %787 = vmatpush1.msra.mxu0 %v722
      %788 = vmatprep.subr.mxu0 0.0
      %789 = vmatpush1.msra.mxu0 %v721
      %790 = vmatprep.subr.mxu0 0.0
      %791 = vmatpush1.msra.mxu0 %v720
      %792 = vmatprep.subr.mxu0 0.0
      %793 = vmatpush1.msra.mxu0 %v719
      %794 = vmatprep.subr.mxu0 0.0
      %795 = vmatpush1.msra.mxu0 %v718
      %796 = vmatprep.subr.mxu0 0.0
      %797 = vmatpush1.msra.mxu0 %v717
      %798 = vmatprep.subr.mxu0 0.0
      %799 = vmatpush2.msra.mxu0 0.0
      %800 = vmatprep.subr.mxu0 0.0
      %801 = vmatpush2.msra.mxu0 0.0
      %802 = vmatprep.subr.mxu0 0.0
      %803 = vmatpush2.msra.mxu0 0.0
      %804 = vmatprep.subr.mxu0 0.0
      %805 = vmatpush2.msra.mxu0 0.0
      %806 = vmatprep.subr.mxu0 0.0
      %807 = vmatpush2.msra.mxu0 0.0
      %808 = vmatprep.subr.mxu0 0.0
      %809 = vmatpush2.msra.mxu0 0.0
      %810 = vmatprep.subr.mxu0 0.0
      %811 = vmatpush2.msra.mxu0 0.0
      %812 = vmatprep.subr.mxu0 0.0
      %813 = vmatpush2.msra.mxu0 0.0
      %814 = vmatprep.subr.mxu0 0.0
      %815 = vmatpush2.msra.mxu0 0.0
      %816 = vmatprep.subr.mxu0 0.0
      %817 = vmatpush2.msra.mxu0 0.0
      %818 = vmatprep.subr.mxu0 0.0
      %819 = vmatpush2.msra.mxu0 0.0
      %820 = vmatprep.subr.mxu0 0.0
      %821 = vmatpush2.msra.mxu0 0.0
      %822 = vmatprep.subr.mxu0 0.0
      %823 = vmatpush2.msra.mxu0 0.0
      %824 = vmatprep.subr.mxu0 0.0
      %825 = vmatpush2.msra.mxu0 0.0
      %826 = vmatprep.subr.mxu0 0.0
      %827 = vmatpush2.msra.mxu0 %v734
      %828 = vmatprep.subr.mxu0 0.0
      %829 = vmatpush2.msra.mxu0 %v733
      %830 = vmatprep.mubr.f32.mxu0 %v743
      %831 = vmatmul.mubr.f32.gmra.mxu0 %v701
      %v832 = vpop.f32.mrf.mxu0
      %v833 = vadd.f32 %v740, %v832
      %v834 = vpop.f32.mrf.mxu0
      %835 = vmatprep.mubr.f32.mxu0 %v746
      %836 = vmatmul.mubr.f32.gmra.mxu0 %v703
      %v837 = vpop.f32.mrf.mxu0
      %v838 = vadd.f32 %v740, %v837
      %v839 = vpop.f32.mrf.mxu0
      %840 = vmatprep.mubr.f32.mxu0 %v749
      %841 = vmatmul.mubr.f32.gmra.mxu0 %v705
      %v842 = vpop.f32.mrf.mxu0
      %v843 = vadd.f32 %v740, %v842
      %v844 = vpop.f32.mrf.mxu0
      %845 = vmatprep.mubr.f32.mxu0 %v752
      %846 = vmatmul.mubr.f32.gmra.mxu0 %v707
      %v847 = vpop.f32.mrf.mxu0
      %v848 = vadd.f32 %v740, %v847
      %v849 = vpop.f32.mrf.mxu0
      %850 = vmatprep.mubr.f32.mxu0 %v755
      %851 = vmatmul.mubr.f32.gmra.mxu0 %v709
      %v852 = vpop.f32.mrf.mxu0
      %v853 = vadd.f32 %v740, %v852
      %v854 = vpop.f32.mrf.mxu0
      %855 = vmatprep.mubr.f32.mxu0 %v758
      %856 = vmatmul.mubr.f32.gmra.mxu0 %v711
      %v857 = vpop.f32.mrf.mxu0
      %v858 = vadd.f32 %v740, %v857
      %v859 = vpop.f32.mrf.mxu0
      %860 = vmatprep.mubr.f32.mxu0 %v761
      %861 = vmatmul.mubr.f32.gmra.mxu0 %v713
      %v862 = vpop.f32.mrf.mxu0
      %v863 = vadd.f32 %v740, %v862
      %v864 = vpop.f32.mrf.mxu0
      %865 = vmatprep.mubr.f32.mxu0 %v764
      %866 = vmatmul.mubr.f32.gmra.mxu0 %v715
      %v867 = vpop.f32.mrf.mxu0
      %v868 = vadd.f32 %v740, %v867
      %v869 = vpop.f32.mrf.mxu0
      %870 = vdwg.mxu0
      %v871 = vtanh.pop %v833
      %v872 = vtanh.pop %v838
      %v873 = vtanh.pop %v843
      %v874 = vtanh.pop %v848
      %v875 = vtanh.pop %v853
      %v876 = vtanh.pop %v858
      %v877 = vtanh.pop %v863
      %v878 = vtanh.pop %v868
      %vm879 = vcmask 97280
      %880 = vst.msk [vmem:[%s217] sm:$0xff] %vm879, %v871
      %881 = vst.msk [vmem:[%s217 + $0x8] sm:$0xff] %vm879, %v872
      %882 = vst.msk [vmem:[%s217 + $0x10] sm:$0xff] %vm879, %v873
      %883 = vst.msk [vmem:[%s217 + $0x18] sm:$0xff] %vm879, %v874
      %884 = vst.msk [vmem:[%s217 + $0x20] sm:$0xff] %vm879, %v875
      %885 = vst.msk [vmem:[%s217 + $0x28] sm:$0xff] %vm879, %v876
      %886 = vst.msk [vmem:[%s217 + $0x30] sm:$0xff] %vm879, %v877
      %887 = vst.msk [vmem:[%s217 + $0x38] sm:$0xff] %vm879, %v878
      %p888 = scmp.lt.s32.totalorder %s15, 1
      %s889 = scalar_select %p888, %s15, 1
      %s890 = smul.addr %s889, 8
      %s891 = smul.addr %s890, 8
      %s892 = scalar_lea.vmem %s4, %s891
      // Predicated region
      $region37: #{unet_apply.7} parent=35 // pred_check
        %p893 = pneg %p127
      $region38: #{unet_apply.7} parent=35 // pred_check_branch
        %895 = sbr.rel (%p893) target = $region40
      $region39: #{unet_apply.7} parent=35 // pred_region
        _
      $region40: #{unet_apply.7} parent=35 // pred_fallthru
        _
    $region36: #{unet_apply.7} parent=5 // pred_fallthru
      _
    %p896 = scmp.le.s32.totalorder 2, %s10
    // Predicated region
    $region41: #{unet_apply.7} parent=5 // pred_check
      %p897 = pneg %p896
    $region42: #{unet_apply.7} parent=5 // pred_check_branch
      %899 = sbr.rel (%p897) target = $region44
    $region43: #{unet_apply.7} parent=5 // pred_region
      %s900 = ssub.s32 %s10, 2
      // Predicated region
      $region45: #{unet_apply.7} parent=43 // pred_check
        %p901 = pneg %p133
      $region46: #{unet_apply.7} parent=43 // pred_check_branch
        %903 = sbr.rel (%p901) target = $region48
      $region47: #{unet_apply.7} parent=43 // pred_region
        %p904 = scmp.lt.s32.totalorder %s16, 1
        %s905 = scalar_select %p904, %s16, 1
        %s906 = smul.addr %s905, 8
        %s907 = smul.addr %s906, 8
        %s908 = scalar_lea.vmem %s4, %s907
      $region48: #{unet_apply.7} parent=43 // pred_fallthru
        _
    $region44: #{unet_apply.7} parent=5 // pred_fallthru
      _
  $region6: #{unet_apply.7} parent=0 // loop_footer
    %s14 = sadd.s32 1, %s10
  $region7: #{unet_apply.7} parent=0 // loop_footer_branch
    %9 = sbr.rel target = $region3
  $region8: #{unet_apply.7} parent=0 // loop_exit
    _

</llo_original>
